<compile_context>
chip_gen: v6e
topology: v6e:2x2x1
jax: 0.10.0
libtpu: 0.0.40
codegen_flags: <defaults>
</compile_context>

<pallas_src>
import functools
import math

import jax
import jax.numpy as jnp
from jax.experimental import pallas as pl
from jax.experimental.pallas import tpu as pltpu


def _tpu_generation():
    """Best-effort TPU generation from device_kind (6 == v6e/v7x/newer)."""
    try:
        kind = jax.devices()[0].device_kind.lower()
    except Exception:
        return 6
    for g in (2, 3, 4, 5):
        if f"v{g}" in kind:
            return g
    return 6


def _flash_causal_kernel(qi_tab, ki_tab, q_ref, kt_ref, va_ref, o_ref,
                         qs_sc, m_sc, acc_sc, *, scale, tq, tk, d,
                         use_bf16_exp):
    """One (batch*head, triangular-step) grid point of causal flash attention.

    Scratch layout:
      qs_sc : (tq, d)   bf16  pre-scaled Q, written once per query-tile run
      m_sc  : (tq, 1)   f32   running row max
      acc_sc: (tq, 2*d) f32   [:, :d] = unnormalized P@V accumulator,
                              [:, d:] = running softmax denominator l
                              (every lane, since the right half of V is ones).
    """
    t = pl.program_id(1)
    qi = qi_tab[t]
    ki = ki_tab[t]

    # First step of a query-tile run: reset online-softmax state and hoist the
    # Q*scale multiply (Q block stays resident in VMEM for the whole run).
    @pl.when(ki == 0)
    def _():
        qs_sc[...] = (q_ref[0] * scale).astype(qs_sc.dtype)
        m_sc[...] = jnp.full_like(m_sc, -jnp.inf)
        acc_sc[...] = jnp.zeros_like(acc_sc)

    q = qs_sc[...]            # (tq, d)  bf16, already scaled (scale=1/8 exact)
    kt = kt_ref[0]            # (d, tk)  bf16 (K stored pre-transposed)
    va = va_ref[0]            # (tk, 2d) bf16, right half all ones

    # Scores on the MXU, f32 accumulation.  No in-kernel transpose of K.
    s = jnp.dot(q, kt, preferred_element_type=jnp.float32)    # (tq, tk)

    def update(scores):
        m_prev = m_sc[...]                                     # (tq, 1)
        m_new = jnp.maximum(m_prev, scores.max(axis=-1, keepdims=True))
        alpha = jnp.exp(m_prev - m_new)                        # f32 (tq, 1)
        x = scores - m_new
        if use_bf16_exp:
            # v6e/v7x: EUP has a bf16 path -> roughly halves exp pushes.
            p = jnp.exp(x.astype(jnp.bfloat16))
        else:
            # v5e and older: no bf16 EUP/VPU path; keep exp in f32.
            p = jnp.exp(x).astype(jnp.bfloat16)
        # One MXU matmul yields both P@V (lanes 0..d-1) and the row-sum l
        # (lanes d..2d-1): the extra output lanes are free (D=64 << MXU width),
        # and the XLU cross-lane sum disappears.
        acc_sc[...] = alpha * acc_sc[...] + jnp.dot(
            p, va, preferred_element_type=jnp.float32)
        m_sc[...] = m_new

    # Interior block (strictly below the diagonal): no mask needed.
    @pl.when(ki < qi)
    def _():
        update(s)

    # Diagonal block: causal mask, update, finalize (last block of the run).
    @pl.when(ki == qi)
    def _():
        row = jax.lax.broadcasted_iota(jnp.int32, (tq, 1), 0)
        col = jax.lax.broadcasted_iota(jnp.int32, (1, tk), 1)
        update(jnp.where(row >= col, s, -jnp.inf))
        pv = acc_sc[:, :d]
        l = acc_sc[:, d:]
        o_ref[0] = (pv * pl.reciprocal(l, approx=True)).astype(o_ref.dtype)


def _flash_causal(qh, kth, vah, *, tq, tk, use_bf16_exp):
    """qh: (BH,N,D) bf16; kth: (BH,D,N) bf16; vah: (BH,N,2D) bf16 ([V | ones])."""
    BH, N, D = qh.shape
    assert D == 64, 'TK train currently supports head dim 64 only'
    assert tq == tk, 'triangular schedule / diagonal mask assume square tiles'
    assert N % tq == 0
    scale = 1.0 / math.sqrt(D)

    # Query-major triangular schedule: for each query tile qi visit kv tiles
    # ki = 0..qi (inclusive).  The kernel's reset (ki==0) / finalize (ki==qi)
    # gating relies on exactly this order -- keep it if editing the schedule.
    nq = N // tq
    qi_list, ki_list = [], []
    for q_idx in range(nq):
        for k_idx in range(q_idx + 1):
            qi_list.append(q_idx)
            ki_list.append(k_idx)
    assert ki_list[0] == 0 and all(
        (k == 0) or (qi_list[i] == qi_list[i - 1] and k == ki_list[i - 1] + 1)
        for i, k in enumerate(ki_list)), 'schedule must be run-contiguous'
    qi_tab = jnp.asarray(qi_list, dtype=jnp.int32)
    ki_tab = jnp.asarray(ki_list, dtype=jnp.int32)
    n_steps = len(qi_list)

    kernel = functools.partial(_flash_causal_kernel, scale=scale, tq=tq, tk=tk,
                               d=D, use_bf16_exp=use_bf16_exp)

    cost = pl.CostEstimate(
        flops=int(2 * BH * n_steps * tq * tk * 3 * D),   # QK^T + P@[V|1]
        transcendentals=int(BH * n_steps * tq * tk),     # exp
        bytes_accessed=int(4 * BH * N * D                # Q in + O out (bf16)
                           + 6 * BH * n_steps * tk * D), # K / V|1 re-streaming
    )

    return pl.pallas_call(
        kernel,
        out_shape=jax.ShapeDtypeStruct((BH, N, D), jnp.bfloat16),
        grid_spec=pltpu.PrefetchScalarGridSpec(
            num_scalar_prefetch=2,
            grid=(BH, n_steps),
            in_specs=[
                # Q: resident across each query tile's run.
                pl.BlockSpec((1, tq, D), lambda b, t, qt, ktab: (b, qt[t], 0)),
                # K (pre-transposed (BH, D, N)): streamed per kv tile.
                pl.BlockSpec((1, D, tk), lambda b, t, qt, ktab: (b, 0, ktab[t])),
                # [V | ones]: streamed per kv tile.
                pl.BlockSpec((1, tk, 2 * D),
                             lambda b, t, qt, ktab: (b, ktab[t], 0)),
            ],
            out_specs=pl.BlockSpec((1, tq, D),
                                   lambda b, t, qt, ktab: (b, qt[t], 0)),
            scratch_shapes=[
                pltpu.VMEM((tq, D), jnp.bfloat16),      # pre-scaled Q
                pltpu.VMEM((tq, 1), jnp.float32),       # running max m
                pltpu.VMEM((tq, 2 * D), jnp.float32),   # P@V accumulator | l
            ],
        ),
        compiler_params=pltpu.CompilerParams(
            dimension_semantics=("parallel", "arbitrary"),
            vmem_limit_bytes=32 << 20),
        cost_estimate=cost,
    )(qi_tab, ki_tab, qh, kth, vah)


def _pick_tile(n, *, max_tile):
    if n % 128 != 0:
        # Full-sequence single-block fallback: legal, but only sane for small N
        # (it defeats flash blocking and can blow VMEM otherwise).
        assert n <= 1024, 'sequence length must be a multiple of 128 (or <= 1024)'
        return n
    tile = 128
    if n % 256 == 0:
        tile = 256
    # 512-wide tiles only when the triangular skip stays meaningful
    # (diagonal-block waste ~ tile/N) and the chip tolerates the temporaries.
    if max_tile >= 512 and n >= 2048 and n % 512 == 0:
        tile = 512
    return tile


class CustomAttention:
    """JAX/Pallas port of the PyTorch CustomAttention module (forward only)."""

    def __init__(self, b, h, n, d):
        self.b, self.h, self.n, self.d = b, h, n, d
        self.scale = 1.0 / d ** 0.5  # applied inside the kernel

    def __call__(self, q, k, v):
        b, n, hd = q.shape
        h = self.h
        d = hd // h
        assert d == 64, 'TK train currently supports head dim 64 only'

        gen = _tpu_generation()
        use_bf16_exp = gen >= 6            # v6e/v7x EUP is bf16-capable
        max_tile = 512 if gen >= 6 else 256  # v5e: 1 vst slot, smaller scoped VMEM

        def heads(x):
            # (b, n, h*d) -> (b, h, n, d), bf16
            return x.reshape(b, n, h, d).transpose(0, 2, 1, 3).astype(jnp.bfloat16)

        qh = heads(q).reshape(b * h, n, d)
        # K stored (b*h, d, n) so the kernel's score matmul needs no transpose.
        kth = heads(k).transpose(0, 1, 3, 2).reshape(b * h, d, n)
        # V augmented with an all-ones right half: the P@V matmul then also
        # produces the softmax denominator on otherwise-idle MXU output lanes.
        vh = heads(v)
        vah = jnp.concatenate([vh, jnp.ones_like(vh)],
                              axis=-1).reshape(b * h, n, 2 * d)

        tile = _pick_tile(n, max_tile=max_tile)
        out = _flash_causal(qh, kth, vah, tq=tile, tk=tile,
                            use_bf16_exp=use_bf16_exp)
        # (b*h, n, d) -> (b, n, h*d)
        return out.reshape(b, h, n, d).transpose(0, 2, 1, 3).reshape(b, n, hd)


def _reference(q, k, v, h):
    """Pure-JAX reference (causal softmax attention) for validation."""
    b, n, hd = q.shape
    d = hd // h

    def to_heads(x):
        return x.reshape(b, n, h, d).transpose(0, 2, 1, 3).astype(jnp.bfloat16)

    qh, kh, vh = to_heads(q), to_heads(k), to_heads(v)
    s = jnp.einsum('bhqd,bhkd->bhqk', qh, kh,
                   preferred_element_type=jnp.float32) / math.sqrt(d)
    mask = jnp.tril(jnp.ones((n, n), dtype=bool))
    s = jnp.where(mask[None, None], s, -jnp.inf)
    p = jax.nn.softmax(s, axis=-1)
    o = jnp.einsum('bhqk,bhkd->bhqd', p.astype(jnp.bfloat16), vh,
                   preferred_element_type=jnp.float32)
    return o.astype(jnp.bfloat16).transpose(0, 2, 1, 3).reshape(b, n, hd)


if __name__ == "__main__":
    # Small shapes consistent with the module: head dim must be 64.
    # N=512 with 256-wide tiles exercises the triangular schedule
    # (interior + diagonal blocks, multiple query-tile runs).
    B, H, N, D = 2, 2, 512, 64
    key = jax.random.PRNGKey(0)
    kq, kk, kv = jax.random.split(key, 3)
    q = jax.random.normal(kq, (B, N, H * D), dtype=jnp.float32)
    k = jax.random.normal(kk, (B, N, H * D), dtype=jnp.float32)
    v = jax.random.normal(kv, (B, N, H * D), dtype=jnp.float32)

    attn = CustomAttention(B, H, N, D)
    fwd = jax.jit(attn.__call__)
    out = jax.block_until_ready(fwd(q, k, v))

    ref = _reference(q, k, v, H)
    err = jnp.max(jnp.abs(out.astype(jnp.float32) - ref.astype(jnp.float32)))
    assert out.shape == (B, N, H * D) and out.dtype == jnp.bfloat16
    # bf16 exp + bf16 MXU row-sum inside the kernel add ~1% relative error on
    # top of the reference's own bf16 P@V rounding (the PyTorch TK kernel is
    # likewise a bf16 tensor-core kernel).
    assert float(err) < 6e-2, f"max abs error too large: {float(err)}"
    print("KERNEL_OK")
</pallas_src>

<mosaic_0001>
module attributes {stable_mosaic.version = 11 : i64} {
  func.func @_flash_causal_kernel(%arg0: i32, %arg1: i32, %arg2: memref<3xi32, #tpu.memory_space<smem>>, %arg3: memref<3xi32, #tpu.memory_space<smem>>, %arg4: memref<1x256x64xbf16, #tpu.memory_space<vmem>>, %arg5: memref<1x64x256xbf16, #tpu.memory_space<vmem>>, %arg6: memref<1x256x128xbf16, #tpu.memory_space<vmem>>, %arg7: memref<1x256x64xbf16, #tpu.memory_space<vmem>>, %arg8: memref<256x64xbf16, #tpu.memory_space<vmem>>, %arg9: memref<256x1xf32, #tpu.memory_space<vmem>>, %arg10: memref<256x128xf32, #tpu.memory_space<vmem>>) attributes {dimension_semantics = [#tpu.dimension_semantics<parallel>, #tpu.dimension_semantics<arbitrary>], iteration_bounds = array<i64: 4, 3>, scalar_prefetch = 2 : i64, scratch_operands = 3 : i64, tpu.core_type = #tpu.core_type<tc>, window_params = [{transform_indices = @transform_0, window_bounds = array<i64: 1, 256, 64>}, {transform_indices = @transform_1, window_bounds = array<i64: 1, 64, 256>}, {transform_indices = @transform_2, window_bounds = array<i64: 1, 256, 128>}, {transform_indices = @transform_3, window_bounds = array<i64: 1, 256, 64>}]} {
    %0 = arith.index_cast %arg1 : i32 to index
    %1 = memref.load %arg2[%0] : memref<3xi32, #tpu.memory_space<smem>>
    %2 = arith.index_cast %arg1 : i32 to index
    %3 = memref.load %arg3[%2] : memref<3xi32, #tpu.memory_space<smem>>
    %c0_i32 = arith.constant 0 : i32
    %4 = arith.cmpi eq, %3, %c0_i32 : i32
    %5 = arith.extui %4 : i1 to i32
    %c0_i32_0 = arith.constant 0 : i32
    %6 = arith.cmpi ne, %5, %c0_i32_0 : i32
    scf.if %6 {
      %c0_10 = arith.constant 0 : index
      %c0_11 = arith.constant 0 : index
      %c0_12 = arith.constant 0 : index
      %19 = vector.load %arg4[%c0_10, %c0_11, %c0_12] : memref<1x256x64xbf16, #tpu.memory_space<vmem>>, vector<1x256x64xbf16>
      %20 = vector.shape_cast %19 : vector<1x256x64xbf16> to vector<256x64xbf16>
      %cst_13 = arith.constant 1.250000e-01 : bf16
      %21 = vector.broadcast %cst_13 : bf16 to vector<256x64xbf16>
      %22 = arith.mulf %20, %21 : vector<256x64xbf16>
      %c0_14 = arith.constant 0 : index
      %c0_15 = arith.constant 0 : index
      %23 = vector.load %arg8[%c0_14, %c0_15] : memref<256x64xbf16, #tpu.memory_space<vmem>>, vector<256x64xbf16>
      tpu.vector_store %arg8[%c0_14, %c0_15], %22 {strides = array<i32>} : memref<256x64xbf16, #tpu.memory_space<vmem>>, vector<256x64xbf16>,
      %cst_16 = arith.constant 0xFF800000 : f32
      %24 = vector.broadcast %cst_16 : f32 to vector<256x1xf32>
      %c0_17 = arith.constant 0 : index
      %c0_18 = arith.constant 0 : index
      %25 = vector.load %arg9[%c0_17, %c0_18] : memref<256x1xf32, #tpu.memory_space<vmem>>, vector<256x1xf32>
      tpu.vector_store %arg9[%c0_17, %c0_18], %24 {strides = array<i32>} : memref<256x1xf32, #tpu.memory_space<vmem>>, vector<256x1xf32>,
      %cst_19 = arith.constant 0.000000e+00 : f32
      %26 = vector.broadcast %cst_19 : f32 to vector<256x128xf32>
      %c0_20 = arith.constant 0 : index
      %c0_21 = arith.constant 0 : index
      %27 = vector.load %arg10[%c0_20, %c0_21] : memref<256x128xf32, #tpu.memory_space<vmem>>, vector<256x128xf32>
      tpu.vector_store %arg10[%c0_20, %c0_21], %26 {strides = array<i32>} : memref<256x128xf32, #tpu.memory_space<vmem>>, vector<256x128xf32>,
    } else {
    }
    %c0 = arith.constant 0 : index
    %c0_1 = arith.constant 0 : index
    %7 = vector.load %arg8[%c0, %c0_1] : memref<256x64xbf16, #tpu.memory_space<vmem>>, vector<256x64xbf16>
    %c0_2 = arith.constant 0 : index
    %c0_3 = arith.constant 0 : index
    %c0_4 = arith.constant 0 : index
    %8 = vector.load %arg5[%c0_2, %c0_3, %c0_4] : memref<1x64x256xbf16, #tpu.memory_space<vmem>>, vector<1x64x256xbf16>
    %9 = vector.shape_cast %8 : vector<1x64x256xbf16> to vector<64x256xbf16>
    %c0_5 = arith.constant 0 : index
    %c0_6 = arith.constant 0 : index
    %c0_7 = arith.constant 0 : index
    %10 = vector.load %arg6[%c0_5, %c0_6, %c0_7] : memref<1x256x128xbf16, #tpu.memory_space<vmem>>, vector<1x256x128xbf16>
    %11 = vector.shape_cast %10 : vector<1x256x128xbf16> to vector<256x128xbf16>
    %cst = arith.constant dense<0.000000e+00> : vector<256x256xf32>
    %12 = tpu.matmul %7, %9, %cst {dimension_numbers = #tpu.dot_dimension_numbers<[1], [0], [0], [1], [0, 0, 1, 1], [], []>} : vector<256x64xbf16>, vector<64x256xbf16>, vector<256x256xf32> -> vector<256x256xf32>
    %13 = arith.cmpi slt, %3, %1 : i32
    %14 = arith.extui %13 : i1 to i32
    %c0_i32_8 = arith.constant 0 : i32
    %15 = arith.cmpi ne, %14, %c0_i32_8 : i32
    scf.if %15 {
      %c0_10 = arith.constant 0 : index
      %c0_11 = arith.constant 0 : index
      %19 = vector.load %arg9[%c0_10, %c0_11] : memref<256x1xf32, #tpu.memory_space<vmem>>, vector<256x1xf32>
      %cst_12 = arith.constant dense<0xFF800000> : vector<256xf32>
      %20 = vector.multi_reduction <maximumf>, %12, %cst_12 [1] : vector<256x256xf32> to vector<256xf32>
      %21 = vector.shape_cast %20 : vector<256xf32> to vector<256x1xf32>
      %22 = arith.maximumf %19, %21 : vector<256x1xf32>
      %23 = arith.subf %19, %22 : vector<256x1xf32>
      %24 = math.exp %23 : vector<256x1xf32>
      %25 = vector.broadcast %22 : vector<256x1xf32> to vector<256x256xf32>
      %26 = arith.subf %12, %25 : vector<256x256xf32>
      %27 = arith.truncf %26 : vector<256x256xf32> to vector<256x256xbf16>
      %28 = math.exp %27 : vector<256x256xbf16>
      %c0_13 = arith.constant 0 : index
      %c0_14 = arith.constant 0 : index
      %29 = vector.load %arg10[%c0_13, %c0_14] : memref<256x128xf32, #tpu.memory_space<vmem>>, vector<256x128xf32>
      %30 = vector.broadcast %24 : vector<256x1xf32> to vector<256x128xf32>
      %31 = arith.mulf %30, %29 : vector<256x128xf32>
      %cst_15 = arith.constant dense<0.000000e+00> : vector<256x128xf32>
      %32 = tpu.matmul %28, %11, %cst_15 {dimension_numbers = #tpu.dot_dimension_numbers<[1], [0], [0], [1], [0, 0, 1, 1], [], []>} : vector<256x256xbf16>, vector<256x128xbf16>, vector<256x128xf32> -> vector<256x128xf32>
      %33 = arith.addf %31, %32 : vector<256x128xf32>
      %c0_16 = arith.constant 0 : index
      %c0_17 = arith.constant 0 : index
      %34 = vector.load %arg10[%c0_16, %c0_17] : memref<256x128xf32, #tpu.memory_space<vmem>>, vector<256x128xf32>
      tpu.vector_store %arg10[%c0_16, %c0_17], %33 {strides = array<i32>} : memref<256x128xf32, #tpu.memory_space<vmem>>, vector<256x128xf32>,
      %c0_18 = arith.constant 0 : index
      %c0_19 = arith.constant 0 : index
      %35 = vector.load %arg9[%c0_18, %c0_19] : memref<256x1xf32, #tpu.memory_space<vmem>>, vector<256x1xf32>
      tpu.vector_store %arg9[%c0_18, %c0_19], %22 {strides = array<i32>} : memref<256x1xf32, #tpu.memory_space<vmem>>, vector<256x1xf32>,
    } else {
    }
    %16 = arith.cmpi eq, %3, %1 : i32
    %17 = arith.extui %16 : i1 to i32
    %c0_i32_9 = arith.constant 0 : i32
    %18 = arith.cmpi ne, %17, %c0_i32_9 : i32
    scf.if %18 {
      %19 = tpu.iota {dimensions = array<i32: 0>} : vector<256x1xi32>
      %20 = tpu.iota {dimensions = array<i32: 1>} : vector<1x256xi32>
      %21 = vector.broadcast %19 : vector<256x1xi32> to vector<256x256xi32>
      %22 = vector.broadcast %20 : vector<1x256xi32> to vector<256x256xi32>
      %23 = arith.cmpi sge, %21, %22 : vector<256x256xi32>
      %cst_10 = arith.constant 0xFF800000 : f32
      %24 = vector.broadcast %cst_10 : f32 to vector<256x256xf32>
      %25 = arith.select %23, %12, %24 : vector<256x256xi1>, vector<256x256xf32>
      %c0_11 = arith.constant 0 : index
      %c0_12 = arith.constant 0 : index
      %26 = vector.load %arg9[%c0_11, %c0_12] : memref<256x1xf32, #tpu.memory_space<vmem>>, vector<256x1xf32>
      %cst_13 = arith.constant dense<0xFF800000> : vector<256xf32>
      %27 = vector.multi_reduction <maximumf>, %25, %cst_13 [1] : vector<256x256xf32> to vector<256xf32>
      %28 = vector.shape_cast %27 : vector<256xf32> to vector<256x1xf32>
      %29 = arith.maximumf %26, %28 : vector<256x1xf32>
      %30 = arith.subf %26, %29 : vector<256x1xf32>
      %31 = math.exp %30 : vector<256x1xf32>
      %32 = vector.broadcast %29 : vector<256x1xf32> to vector<256x256xf32>
      %33 = arith.subf %25, %32 : vector<256x256xf32>
      %34 = arith.truncf %33 : vector<256x256xf32> to vector<256x256xbf16>
      %35 = math.exp %34 : vector<256x256xbf16>
      %c0_14 = arith.constant 0 : index
      %c0_15 = arith.constant 0 : index
      %36 = vector.load %arg10[%c0_14, %c0_15] : memref<256x128xf32, #tpu.memory_space<vmem>>, vector<256x128xf32>
      %37 = vector.broadcast %31 : vector<256x1xf32> to vector<256x128xf32>
      %38 = arith.mulf %37, %36 : vector<256x128xf32>
      %cst_16 = arith.constant dense<0.000000e+00> : vector<256x128xf32>
      %39 = tpu.matmul %35, %11, %cst_16 {dimension_numbers = #tpu.dot_dimension_numbers<[1], [0], [0], [1], [0, 0, 1, 1], [], []>} : vector<256x256xbf16>, vector<256x128xbf16>, vector<256x128xf32> -> vector<256x128xf32>
      %40 = arith.addf %38, %39 : vector<256x128xf32>
      %c0_17 = arith.constant 0 : index
      %c0_18 = arith.constant 0 : index
      %41 = vector.load %arg10[%c0_17, %c0_18] : memref<256x128xf32, #tpu.memory_space<vmem>>, vector<256x128xf32>
      tpu.vector_store %arg10[%c0_17, %c0_18], %40 {strides = array<i32>} : memref<256x128xf32, #tpu.memory_space<vmem>>, vector<256x128xf32>,
      %c0_19 = arith.constant 0 : index
      %c0_20 = arith.constant 0 : index
      %42 = vector.load %arg9[%c0_19, %c0_20] : memref<256x1xf32, #tpu.memory_space<vmem>>, vector<256x1xf32>
      tpu.vector_store %arg9[%c0_19, %c0_20], %29 {strides = array<i32>} : memref<256x1xf32, #tpu.memory_space<vmem>>, vector<256x1xf32>,
      %c0_21 = arith.constant 0 : index
      %c0_22 = arith.constant 0 : index
      %43 = vector.load %arg10[%c0_21, %c0_22] : memref<256x128xf32, #tpu.memory_space<vmem>>, vector<256x64xf32>
      %c0_23 = arith.constant 0 : index
      %c64 = arith.constant 64 : index
      %44 = vector.load %arg10[%c0_23, %c64] : memref<256x128xf32, #tpu.memory_space<vmem>>, vector<256x64xf32>
      %45 = tpu.reciprocal %44 {approx = true} : vector<256x64xf32> -> vector<256x64xf32>
      %46 = arith.mulf %43, %45 : vector<256x64xf32>
      %47 = arith.truncf %46 : vector<256x64xf32> to vector<256x64xbf16>
      %c0_24 = arith.constant 0 : index
      %c0_25 = arith.constant 0 : index
      %c0_26 = arith.constant 0 : index
      %48 = vector.load %arg7[%c0_24, %c0_25, %c0_26] : memref<1x256x64xbf16, #tpu.memory_space<vmem>>, vector<1x256x64xbf16>
      %49 = vector.shape_cast %48 : vector<1x256x64xbf16> to vector<256x64xbf16>
      %50 = vector.shape_cast %47 : vector<256x64xbf16> to vector<1x256x64xbf16>
      tpu.vector_store %arg7[%c0_24, %c0_25, %c0_26], %50 {strides = array<i32>} : memref<1x256x64xbf16, #tpu.memory_space<vmem>>, vector<1x256x64xbf16>,
    } else {
    }
    return
  }
  func.func @transform_0(%arg0: i32, %arg1: i32, %arg2: memref<3xi32, #tpu.memory_space<smem>>, %arg3: memref<3xi32, #tpu.memory_space<smem>>) -> (i32, i32, i32) {
    %0 = arith.index_cast %arg1 : i32 to index
    %1 = memref.load %arg2[%0] : memref<3xi32, #tpu.memory_space<smem>>
    %c0_i32 = arith.constant 0 : i32
    %c0_i32_0 = arith.constant 0 : i32
    return %arg0, %1, %c0_i32 : i32, i32, i32
  }
  func.func @transform_1(%arg0: i32, %arg1: i32, %arg2: memref<3xi32, #tpu.memory_space<smem>>, %arg3: memref<3xi32, #tpu.memory_space<smem>>) -> (i32, i32, i32) {
    %0 = arith.index_cast %arg1 : i32 to index
    %1 = memref.load %arg3[%0] : memref<3xi32, #tpu.memory_space<smem>>
    %c0_i32 = arith.constant 0 : i32
    %c0_i32_0 = arith.constant 0 : i32
    return %arg0, %c0_i32, %1 : i32, i32, i32
  }
  func.func @transform_2(%arg0: i32, %arg1: i32, %arg2: memref<3xi32, #tpu.memory_space<smem>>, %arg3: memref<3xi32, #tpu.memory_space<smem>>) -> (i32, i32, i32) {
    %0 = arith.index_cast %arg1 : i32 to index
    %1 = memref.load %arg3[%0] : memref<3xi32, #tpu.memory_space<smem>>
    %c0_i32 = arith.constant 0 : i32
    %c0_i32_0 = arith.constant 0 : i32
    return %arg0, %1, %c0_i32 : i32, i32, i32
  }
  func.func @transform_3(%arg0: i32, %arg1: i32, %arg2: memref<3xi32, #tpu.memory_space<smem>>, %arg3: memref<3xi32, #tpu.memory_space<smem>>) -> (i32, i32, i32) {
    %0 = arith.index_cast %arg1 : i32 to index
    %1 = memref.load %arg2[%0] : memref<3xi32, #tpu.memory_space<smem>>
    %c0_i32 = arith.constant 0 : i32
    %c0_i32_0 = arith.constant 0 : i32
    return %arg0, %1, %c0_i32 : i32, i32, i32
  }
}

</mosaic_0001>

<llo_original>
// kernel: a_call__.1
$region0: #{a_call__.1}
  #allocation0 [shape = 'u32[]', space=smem, size = 0x4, offset = 0x4, fixed_abs, tag = 'smem constant byte address 0x4 - core index']
  #allocation1 [shape = 'u32[144,128]{1,0:T(1,128)}', space=vmem, size = 0x12000, scoped, tag = 'internal scratch']
  #allocation2 [shape = 'bf16[256,64]{1,0:T(8,128)(2,1)}', space=vmem, size = 0x10000, scoped, tag = 'scratch operand']
  #allocation3 [shape = 'f32[256,1]{1,0:T(8,128)}', space=vmem, size = 0x20000, scoped, tag = 'scratch operand']
  #allocation4 [shape = 'f32[256,128]{1,0:T(8,128)}', space=vmem, size = 0x20000, scoped, tag = 'scratch operand']
  #allocation5 [shape = 's32[1]{0}', space=sflag, size = 0x4, scoped, tag = 'scoped memory for a_call__.1']
  #allocation6 [shape = 'u8[512]{0}', space=smem, size = 0x200, scoped, tag = 'prefetched SMEM operand 0']
  #allocation7 [shape = 'u8[512]{0}', space=smem, size = 0x200, scoped, tag = 'prefetched SMEM operand 1']
  %s0 = inlined_call_operand.vmem [shape: s32[3], index: 0, kind: input, shape index: {}]
  %s1 = inlined_call_operand.vmem [shape: s32[3], index: 1, kind: input, shape index: {}]
  %s2 = inlined_call_operand.vmem [shape: bf16[4,512,64], index: 2, kind: input, shape index: {}]
  %s3 = inlined_call_operand.vmem [shape: bf16[4,64,512], index: 3, kind: input, shape index: {}]
  %s4 = inlined_call_operand.vmem [shape: bf16[4,512,128], index: 4, kind: input, shape index: {}]
  %s5 = inlined_call_operand.vmem [shape: bf16[4,512,64], index: 5, kind: output, shape index: {}]
  %s6 = sld [smem:[#allocation0]]
  $region95: #{a_call__.1} parent=0
    _
  %s8 = ssub.s32 1, %s6
  %s9 = scalar_select 0, %s8, %s6
  %s10 = sshll.u32 %s0, 4
  %s11 = int_to_ptr.vmem [resolvable:$true] %s10
  %13 = dma.vmem_to_smem %s11, 16, [#allocation6], [#allocation5]
  %s14 = sshll.u32 %s1, 4
  %s15 = int_to_ptr.vmem [resolvable:$true] %s14
  %17 = dma.vmem_to_smem %s15, 16, [#allocation7], [#allocation5]
  %18 = dma.done [#allocation5], 32
  %19 = sfence
  $region1: #{a_call__.1} parent=0
    #allocation8 [shape = 'u8[65536]{0}', space=vmem, size = 0x10000, scoped, tag = 'input window, operand 3']
    loop: start=0, step=1, limit=14
    $region2: #{a_call__.1} parent=1 // loop_pre_header
      _
    $region3: #{a_call__.1} parent=1 // loop_header
      %s21 = sphi 0, %s25
      %p22 = scmp.ge.s32.totalorder %s21, 14
      %s28 = sphi 0, %s40
      %s29 = sphi 0, %s36
      %s30 = sphi 0, %s28
      %s31 = sphi 0, %s29
      %s32 = sphi 0, %s30
      %s33 = sphi 0, %s31
      %s47 = sphi 0, %s49
      %s50 = sphi 0, %s47
      %s51 = sphi 0, %s50
      %s67 = sphi 0, %s51
      %s77 = sphi 0, %s79
      %s80 = sphi 0, %s77
      %s81 = sphi 0, %s80
      %s97 = sphi 0, %s81
      %s107 = sphi 0, %s109
      %s110 = sphi 0, %s107
      %s111 = sphi 0, %s110
      %s127 = sphi 0, %s111
      %s137 = sphi 0, %s139
      %s140 = sphi 0, %s137
      %s141 = sphi 0, %s140
      %s157 = sphi 0, %s141
    $region4: #{a_call__.1} parent=1 // loop_header_branch
      %24 = sbr.rel (%p22) target = $region8
    $region5: #{a_call__.1} parent=1 // loop_body
      %s26 = ssub.s32 %s21, 1
      %s27 = ssub.s32 %s21, 2
      %s34 = sadd.s32 1, %s29
      %p35 = scmp.ge.s32.totalorder %s34, 3
      %s36 = scalar_select %p35, 0, %s34
      %s37 = sadd.s32 1, %s28
      %s38 = scalar_select %p35, %s37, %s28
      %p39 = scmp.ge.s32.totalorder %s38, 4
      %s40 = scalar_select %p39, 0, %s38
      %s41 = sld [smem:[#allocation6 + %s29]]
      %s42 = sld [smem:[#allocation6 + %s36]]
      %s43 = ssub.s32 %s28, %s40
      %s44 = ssub.s32 %s41, %s42
      %s45 = sor.u32 %s43, %s44
      %p46 = scmp.eq.s32.totalorder %s45, 0
      %s48 = sadd.s32 %s47, 1
      %s49 = scalar_select %p46, %s47, %s48
      %p52 = pneg %p46
      %p53 = scmp.eq.s32.totalorder %s21, 11
      %p54 = por %p52, %p53
      %p55 = scmp.ne.s32.totalorder %s47, %s50
      %p56 = scmp.eq.s32.totalorder %s21, 0
      %p57 = por %p55, %p56
      %p58 = scmp.ne.s32.totalorder %s47, %s50
      %p59 = scmp.eq.s32.totalorder %s26, 11
      %p60 = por %p58, %p59
      %p61 = scmp.ne.s32.totalorder %s50, %s51
      %p62 = scmp.eq.s32.totalorder %s26, 0
      %p63 = por %p61, %p62
      %p64 = scmp.ne.s32.totalorder %s50, %s51
      %p65 = scmp.eq.s32.totalorder %s27, 11
      %p66 = por %p64, %p65
      %p68 = scmp.ne.s32.totalorder %s51, %s67
      %p69 = scmp.eq.s32.totalorder %s27, 0
      %p70 = por %p68, %p69
      %s71 = sld [smem:[#allocation7 + %s29]]
      %s72 = sld [smem:[#allocation7 + %s36]]
      %s73 = ssub.s32 %s28, %s40
      %s74 = ssub.s32 %s71, %s72
      %s75 = sor.u32 %s73, %s74
      %p76 = scmp.eq.s32.totalorder %s75, 0
      %s78 = sadd.s32 %s77, 1
      %s79 = scalar_select %p76, %s77, %s78
      %p82 = pneg %p76
      %p83 = scmp.eq.s32.totalorder %s21, 11
      %p84 = por %p82, %p83
      %p85 = scmp.ne.s32.totalorder %s77, %s80
      %p86 = scmp.eq.s32.totalorder %s21, 0
      %p87 = por %p85, %p86
      %p88 = scmp.ne.s32.totalorder %s77, %s80
      %p89 = scmp.eq.s32.totalorder %s26, 11
      %p90 = por %p88, %p89
      %p91 = scmp.ne.s32.totalorder %s80, %s81
      %p92 = scmp.eq.s32.totalorder %s26, 0
      %p93 = por %p91, %p92
      %p94 = scmp.ne.s32.totalorder %s80, %s81
      %p95 = scmp.eq.s32.totalorder %s27, 11
      %p96 = por %p94, %p95
      %p98 = scmp.ne.s32.totalorder %s81, %s97
      %p99 = scmp.eq.s32.totalorder %s27, 0
      %p100 = por %p98, %p99
      %s101 = sld [smem:[#allocation7 + %s29]]
      %s102 = sld [smem:[#allocation7 + %s36]]
      %s103 = ssub.s32 %s28, %s40
      %s104 = ssub.s32 %s101, %s102
      %s105 = sor.u32 %s103, %s104
      %p106 = scmp.eq.s32.totalorder %s105, 0
      %s108 = sadd.s32 %s107, 1
      %s109 = scalar_select %p106, %s107, %s108
      %p112 = pneg %p106
      %p113 = scmp.eq.s32.totalorder %s21, 11
      %p114 = por %p112, %p113
      %p115 = scmp.ne.s32.totalorder %s107, %s110
      %p116 = scmp.eq.s32.totalorder %s21, 0
      %p117 = por %p115, %p116
      %p118 = scmp.ne.s32.totalorder %s107, %s110
      %p119 = scmp.eq.s32.totalorder %s26, 11
      %p120 = por %p118, %p119
      %p121 = scmp.ne.s32.totalorder %s110, %s111
      %p122 = scmp.eq.s32.totalorder %s26, 0
      %p123 = por %p121, %p122
      %p124 = scmp.ne.s32.totalorder %s110, %s111
      %p125 = scmp.eq.s32.totalorder %s27, 11
      %p126 = por %p124, %p125
      %p128 = scmp.ne.s32.totalorder %s111, %s127
      %p129 = scmp.eq.s32.totalorder %s27, 0
      %p130 = por %p128, %p129
      %s131 = sld [smem:[#allocation6 + %s29]]
      %s132 = sld [smem:[#allocation6 + %s36]]
      %s133 = ssub.s32 %s28, %s40
      %s134 = ssub.s32 %s131, %s132
      %s135 = sor.u32 %s133, %s134
      %p136 = scmp.eq.s32.totalorder %s135, 0
      %s138 = sadd.s32 %s137, 1
      %s139 = scalar_select %p136, %s137, %s138
      %p142 = pneg %p136
      %p143 = scmp.eq.s32.totalorder %s21, 11
      %p144 = por %p142, %p143
      %p145 = scmp.ne.s32.totalorder %s137, %s140
      %p146 = scmp.eq.s32.totalorder %s21, 0
      %p147 = por %p145, %p146
      %p148 = scmp.ne.s32.totalorder %s137, %s140
      %p149 = scmp.eq.s32.totalorder %s26, 11
      %p150 = por %p148, %p149
      %p151 = scmp.ne.s32.totalorder %s140, %s141
      %p152 = scmp.eq.s32.totalorder %s26, 0
      %p153 = por %p151, %p152
      %p154 = scmp.ne.s32.totalorder %s140, %s141
      %p155 = scmp.eq.s32.totalorder %s27, 11
      %p156 = por %p154, %p155
      %p158 = scmp.ne.s32.totalorder %s141, %s157
      %p159 = scmp.eq.s32.totalorder %s27, 0
      %p160 = por %p158, %p159
      %p161 = scmp.le.s32.totalorder 1, %s21
      %p162 = scmp.lt.s32.totalorder %s21, 13
      %p163 = pnand %p161, %p162
      %p164 = pneg %p163
      // Predicated region
      $region9: #{a_call__.1} parent=5 // pred_check
        _
      $region10: #{a_call__.1} parent=5 // pred_check_branch
        %166 = sbr.rel (%p163) target = $region12
      $region11: #{a_call__.1} parent=5 // pred_region
        %s167 = ssub.s32 %s21, 1
      $region12: #{a_call__.1} parent=5 // pred_fallthru
        _
      %p168 = scmp.lt.s32.totalorder %s21, 12
      // Predicated region
      $region13: #{a_call__.1} parent=5 // pred_check
        %p169 = pneg %p168
      $region14: #{a_call__.1} parent=5 // pred_check_branch
        %171 = sbr.rel (%p169) target = $region16
      $region15: #{a_call__.1} parent=5 // pred_region
        // Predicated region
        $region17: #{a_call__.1} parent=15 // pred_check
          %p172 = pneg %p57
        $region18: #{a_call__.1} parent=15 // pred_check_branch
          %174 = sbr.rel (%p172) target = $region20
        $region19: #{a_call__.1} parent=15 // pred_region
          %s175 = sld [smem:[#allocation6 + %s29]]
          %s176 = smul.u32 32, %s175
          %p177 = scmp.lt.s32.totalorder %s28, 3
          %s178 = scalar_select %p177, %s28, 3
          %p179 = scmp.lt.s32.totalorder %s176, 63
          %s180 = scalar_select %p179, %s176, 63
          %s181 = smul.addr %s178, 64
          %s182 = sadd.s32 %s180, %s181
          %s183 = smul.addr %s182, 4
          %s184 = scalar_lea.vmem %s2, %s183
          %s185 = sld [smem:[#allocation6 + %s29]]
          %s186 = smul.u32 32, %s185
        $region20: #{a_call__.1} parent=15 // pred_fallthru
          _
        // Predicated region
        $region21: #{a_call__.1} parent=15 // pred_check
          %p187 = pneg %p87
        $region22: #{a_call__.1} parent=15 // pred_check_branch
          %189 = sbr.rel (%p187) target = $region24
        $region23: #{a_call__.1} parent=15 // pred_region
          %s190 = sand.u32 %s77, 1
          %s191 = sand.u32 %s77, 1
          %s192 = smul.addr %s191, 64
          %s193 = scalar_lea.vmem [#allocation8], %s192
          %s194 = sld [smem:[#allocation7 + %s29]]
          %s195 = smul.u32 2, %s194
          %s196 = smul.addr %s28, 32
          %s197 = sadd.s32 %s195, %s196
          %s198 = smul.addr %s197, 4
          %s199 = scalar_lea.vmem %s3, %s198
          // Predicated region
          $region25: #{a_call__.1} parent=23 // pred_check
            _
          $region26: #{a_call__.1} parent=23 // pred_check_branch
            %201 = sbr.rel (0) target = $region28
          $region27: #{a_call__.1} parent=23 // pred_region
            // Predicated region
            $region29: #{a_call__.1} parent=27 // pred_check
              _
            $region30: #{a_call__.1} parent=27 // pred_check_branch
              %203 = sbr.rel (0) target = $region32
            $region31: #{a_call__.1} parent=27 // pred_region
              // Predicated region
              $region44: #{a_call__.1} parent=31 // pred_check
                _
              $region45: #{a_call__.1} parent=31 // pred_check_branch
                %233 = sbr.rel (0) target = $region47
              $region46: #{a_call__.1} parent=31 // pred_region
                loop: start=0, step=1, limit=1
                $region48: #{a_call__.1} parent=46 // loop_pre_header
                  _
                $region49: #{a_call__.1} parent=46 // loop_header
                  %s235 = sphi 0, %s239
                  %p236 = scmp.ge.s32.totalorder %s235, 1
                  %s240 = sphi %s199, %s199
                  %s241 = sphi %s193, %s193
                $region50: #{a_call__.1} parent=46 // loop_header_branch
                  %238 = sbr.rel (%p236) target = $region54
                $region51: #{a_call__.1} parent=46 // loop_body
                  %v242 = vld [vmem:[%s240] sm:$0xff]
                  %243 = vst [vmem:[%s241] sm:$0xff] %v242
                  %v244 = vld [vmem:[%s240 + $0x10] sm:$0xff]
                  %245 = vst [vmem:[%s241 + $0x8] sm:$0xff] %v244
                  %v246 = vld [vmem:[%s240 + $0x20] sm:$0xff]
                  %247 = vst [vmem:[%s241 + $0x10] sm:$0xff] %v246
                  %v248 = vld [vmem:[%s240 + $0x30] sm:$0xff]
                  %249 = vst [vmem:[%s241 + $0x18] sm:$0xff] %v248
                  %v250 = vld [vmem:[%s240 + $0x40] sm:$0xff]
                  %251 = vst [vmem:[%s241 + $0x20] sm:$0xff] %v250
                  %v252 = vld [vmem:[%s240 + $0x50] sm:$0xff]
                  %253 = vst [vmem:[%s241 + $0x28] sm:$0xff] %v252
                  %v254 = vld [vmem:[%s240 + $0x60] sm:$0xff]
                  %255 = vst [vmem:[%s241 + $0x30] sm:$0xff] %v254
                  %v256 = vld [vmem:[%s240 + $0x70] sm:$0xff]
                  %257 = vst [vmem:[%s241 + $0x38] sm:$0xff] %v256
                $region52: #{a_call__.1} parent=46 // loop_footer
                  %s239 = sadd.s32 1, %s235
                $region53: #{a_call__.1} parent=46 // loop_footer_branch
                  %234 = sbr.rel target = $region49
                $region54: #{a_call__.1} parent=46 // loop_exit
                  _
              $region47: #{a_call__.1} parent=31 // pred_fallthru
                _
              // Predicated region
              $region55: #{a_call__.1} parent=31 // pred_check
                _
              $region56: #{a_call__.1} parent=31 // pred_check_branch
                %259 = sbr.rel target = $region58
              $region57: #{a_call__.1} parent=31 // pred_region
                _
              $region58: #{a_call__.1} parent=31 // pred_fallthru
                _
            $region32: #{a_call__.1} parent=27 // pred_fallthru
              _
            // Predicated region
            $region33: #{a_call__.1} parent=27 // pred_check
              _
            $region34: #{a_call__.1} parent=27 // pred_check_branch
              %205 = sbr.rel target = $region36
            $region35: #{a_call__.1} parent=27 // pred_region
              %s207 = ssub.s32 256, 1
              loop: start=0, step=1, limit=1
              $region37: #{a_call__.1} parent=35 // loop_pre_header
                _
              $region38: #{a_call__.1} parent=35 // loop_header
                %s209 = sphi 0, %s213
                %p210 = scmp.ge.s32.totalorder %s209, 1
                %s214 = sphi %s199, %s199
                %s215 = sphi %s193, %s193
              $region39: #{a_call__.1} parent=35 // loop_header_branch
                %212 = sbr.rel (%p210) target = $region43
              $region40: #{a_call__.1} parent=35 // loop_body
                %v216 = vld [vmem:[%s214] sm:%s207]
                %217 = vst [vmem:[%s215] sm:%s207] %v216
                %v218 = vld [vmem:[%s214 + $0x10] sm:%s207]
                %219 = vst [vmem:[%s215 + $0x8] sm:%s207] %v218
                %v220 = vld [vmem:[%s214 + $0x20] sm:%s207]
                %221 = vst [vmem:[%s215 + $0x10] sm:%s207] %v220
                %v222 = vld [vmem:[%s214 + $0x30] sm:%s207]
                %223 = vst [vmem:[%s215 + $0x18] sm:%s207] %v222
                %v224 = vld [vmem:[%s214 + $0x40] sm:%s207]
                %225 = vst [vmem:[%s215 + $0x20] sm:%s207] %v224
                %v226 = vld [vmem:[%s214 + $0x50] sm:%s207]
                %227 = vst [vmem:[%s215 + $0x28] sm:%s207] %v226
                %v228 = vld [vmem:[%s214 + $0x60] sm:%s207]
                %229 = vst [vmem:[%s215 + $0x30] sm:%s207] %v228
                %v230 = vld [vmem:[%s214 + $0x70] sm:%s207]
                %231 = vst [vmem:[%s215 + $0x38] sm:%s207] %v230
              $region41: #{a_call__.1} parent=35 // loop_footer
                %s213 = sadd.s32 1, %s209
              $region42: #{a_call__.1} parent=35 // loop_footer_branch
                %208 = sbr.rel target = $region38
              $region43: #{a_call__.1} parent=35 // loop_exit
                _
            $region36: #{a_call__.1} parent=27 // pred_fallthru
              _
          $region28: #{a_call__.1} parent=23 // pred_fallthru
            _
          %260 = vnop
        $region24: #{a_call__.1} parent=15 // pred_fallthru
          _
        // Predicated region
        $region59: #{a_call__.1} parent=15 // pred_check
          %p261 = pneg %p117
        $region60: #{a_call__.1} parent=15 // pred_check_branch
          %263 = sbr.rel (%p261) target = $region62
        $region61: #{a_call__.1} parent=15 // pred_region
          %s264 = sld [smem:[#allocation7 + %s29]]
          %s265 = smul.u32 32, %s264
          %p266 = scmp.lt.s32.totalorder %s28, 3
          %s267 = scalar_select %p266, %s28, 3
          %p268 = scmp.lt.s32.totalorder %s265, 63
          %s269 = scalar_select %p268, %s265, 63
          %s270 = smul.addr %s267, 64
          %s271 = sadd.s32 %s269, %s270
          %s272 = smul.addr %s271, 4
          %s273 = scalar_lea.vmem %s4, %s272
          %s274 = sld [smem:[#allocation7 + %s29]]
          %s275 = smul.u32 32, %s274
        $region62: #{a_call__.1} parent=15 // pred_fallthru
          _
      $region16: #{a_call__.1} parent=5 // pred_fallthru
        _
      %p276 = scmp.le.s32.totalorder 1, %s21
      %p277 = scmp.lt.s32.totalorder %s21, 13
      %p278 = pnand %p276, %p277
      %p279 = pneg %p278
      // Predicated region
      $region63: #{a_call__.1} parent=5 // pred_check
        _
      $region64: #{a_call__.1} parent=5 // pred_check_branch
        %281 = sbr.rel (%p278) target = $region66
      $region65: #{a_call__.1} parent=5 // pred_region
        %s282 = ssub.s32 %s21, 1
        %s283 = sand.u32 %s80, 1
        %s284 = sand.u32 %s80, 1
        %s285 = smul.addr %s284, 64
        %s286 = scalar_lea.vmem [#allocation8], %s285
        // Predicated region
        $region67: #{a_call__.1} parent=65 // pred_check
          %p287 = pneg %p93
        $region68: #{a_call__.1} parent=65 // pred_check_branch
          %289 = sbr.rel (%p287) target = $region70
        $region69: #{a_call__.1} parent=65 // pred_region
          _
        $region70: #{a_call__.1} parent=65 // pred_fallthru
          _
        %s290 = sld [smem:[#allocation6 + %s31]]
        %s291 = smul.u32 32, %s290
        %p292 = scmp.lt.s32.totalorder %s30, 3
        %s293 = scalar_select %p292, %s30, 3
        %p294 = scmp.lt.s32.totalorder %s291, 63
        %s295 = scalar_select %p294, %s291, 63
        %s296 = smul.addr %s293, 64
        %s297 = sadd.s32 %s295, %s296
        %s298 = smul.addr %s297, 4
        %s299 = scalar_lea.vmem %s2, %s298
        %p300 = pneg %p63
        %p301 = pneg %p60
        %s302 = sand.u32 %s80, 1
        %s303 = sand.u32 %s80, 1
        %s304 = smul.addr %s303, 64
        %s305 = scalar_lea.vmem [#allocation8], %s304
        %p306 = pneg %p93
        %p307 = pneg %p90
        %s308 = sld [smem:[#allocation7 + %s31]]
        %s309 = smul.u32 32, %s308
        %p310 = scmp.lt.s32.totalorder %s30, 3
        %s311 = scalar_select %p310, %s30, 3
        %p312 = scmp.lt.s32.totalorder %s309, 63
        %s313 = scalar_select %p312, %s309, 63
        %s314 = smul.addr %s311, 64
        %s315 = sadd.s32 %s313, %s314
        %s316 = smul.addr %s315, 4
        %s317 = scalar_lea.vmem %s4, %s316
        %p318 = pneg %p123
        %p319 = pneg %p120
        %p320 = pneg %p153
        %p321 = pneg %p150
        %s322 = sld [smem:[#allocation6 + %s31]]
        %s323 = smul.u32 32, %s322
        %p324 = scmp.lt.s32.totalorder %s30, 3
        %s325 = scalar_select %p324, %s30, 3
        %p326 = scmp.lt.s32.totalorder %s323, 63
        %s327 = scalar_select %p326, %s323, 63
        %s328 = smul.addr %s325, 64
        %s329 = sadd.s32 %s327, %s328
        %s330 = smul.addr %s329, 4
        %s331 = scalar_lea.vmem %s5, %s330
        %s332 = sld [smem:[#allocation6 + %s31]]
        %s333 = smul.u32 32, %s332
        %p334 = scmp.lt.s32.totalorder %s30, 3
        %s335 = scalar_select %p334, %s30, 3
        %p336 = scmp.lt.s32.totalorder %s333, 63
        %s337 = scalar_select %p336, %s333, 63
        %s338 = smul.addr %s335, 64
        %s339 = sadd.s32 %s337, %s338
        %s340 = smul.addr %s339, 4
        %s341 = scalar_lea.vmem %s2, %s340
        %s342 = sld [smem:[#allocation6 + %s31]]
        %s343 = smul.u32 32, %s342
        %s344 = sld [smem:[#allocation7 + %s31]]
        %s345 = smul.u32 2, %s344
        %s346 = sld [smem:[#allocation7 + %s31]]
        %s347 = smul.u32 32, %s346
        %p348 = scmp.lt.s32.totalorder %s30, 3
        %s349 = scalar_select %p348, %s30, 3
        %p350 = scmp.lt.s32.totalorder %s347, 63
        %s351 = scalar_select %p350, %s347, 63
        %s352 = smul.addr %s349, 64
        %s353 = sadd.s32 %s351, %s352
        %s354 = smul.addr %s353, 4
        %s355 = scalar_lea.vmem %s4, %s354
        %s356 = sld [smem:[#allocation7 + %s31]]
        %s357 = smul.u32 32, %s356
        %s358 = sld [smem:[#allocation6 + %s31]]
        %s359 = smul.u32 32, %s358
        %p360 = scmp.lt.s32.totalorder %s30, 3
        %s361 = scalar_select %p360, %s30, 3
        %p362 = scmp.lt.s32.totalorder %s359, 63
        %s363 = scalar_select %p362, %s359, 63
        %s364 = smul.addr %s361, 64
        %s365 = sadd.s32 %s363, %s364
        %s366 = smul.addr %s365, 4
        %s367 = scalar_lea.vmem %s5, %s366
        %s368 = sld [smem:[#allocation6 + %s31]]
        %s369 = smul.u32 32, %s368
        %s372 = sld [smem:[#allocation6 + %s31]]
        %s373 = sld [smem:[#allocation7 + %s31]]
        %p374 = scmp.eq.s32.totalorder %s373, 0
        // Predicated region
        $region71: #{a_call__.1} parent=65 // pred_check
          %p375 = pneg %p374
        $region72: #{a_call__.1} parent=65 // pred_check_branch
          %377 = sbr.rel (%p375) target = $region74
        $region73: #{a_call__.1} parent=65 // pred_region
          %v378 = vld [vmem:[%s341] sm:$0xf]
          %v379 = vld [vmem:[%s341 + $0x4] sm:$0xf]
          %v380 = vld [vmem:[%s341 + $0x8] sm:$0xf]
          %v381 = vld [vmem:[%s341 + $0xc] sm:$0xf]
          %v382 = vld [vmem:[%s341 + $0x10] sm:$0xf]
          %v383 = vld [vmem:[%s341 + $0x14] sm:$0xf]
          %v384 = vld [vmem:[%s341 + $0x18] sm:$0xf]
          %v385 = vld [vmem:[%s341 + $0x1c] sm:$0xf]
          %v386 = vld [vmem:[%s341 + $0x20] sm:$0xf]
          %v387 = vld [vmem:[%s341 + $0x24] sm:$0xf]
          %v388 = vld [vmem:[%s341 + $0x28] sm:$0xf]
          %v389 = vld [vmem:[%s341 + $0x2c] sm:$0xf]
          %v390 = vld [vmem:[%s341 + $0x30] sm:$0xf]
          %v391 = vld [vmem:[%s341 + $0x34] sm:$0xf]
          %v392 = vld [vmem:[%s341 + $0x38] sm:$0xf]
          %v393 = vld [vmem:[%s341 + $0x3c] sm:$0xf]
          %v394 = vld [vmem:[%s341 + $0x40] sm:$0xf]
          %v395 = vld [vmem:[%s341 + $0x44] sm:$0xf]
          %v396 = vld [vmem:[%s341 + $0x48] sm:$0xf]
          %v397 = vld [vmem:[%s341 + $0x4c] sm:$0xf]
          %v398 = vld [vmem:[%s341 + $0x50] sm:$0xf]
          %v399 = vld [vmem:[%s341 + $0x54] sm:$0xf]
          %v400 = vld [vmem:[%s341 + $0x58] sm:$0xf]
          %v401 = vld [vmem:[%s341 + $0x5c] sm:$0xf]
          %v402 = vld [vmem:[%s341 + $0x60] sm:$0xf]
          %v403 = vld [vmem:[%s341 + $0x64] sm:$0xf]
          %v404 = vld [vmem:[%s341 + $0x68] sm:$0xf]
          %v405 = vld [vmem:[%s341 + $0x6c] sm:$0xf]
          %v406 = vld [vmem:[%s341 + $0x70] sm:$0xf]
          %v407 = vld [vmem:[%s341 + $0x74] sm:$0xf]
          %v408 = vld [vmem:[%s341 + $0x78] sm:$0xf]
          %v409 = vld [vmem:[%s341 + $0x7c] sm:$0xf]
          %v410 = vmul.bf16 %v378, 1040203264
          %v411 = vmul.bf16 %v379, 1040203264
          %v412 = vmul.bf16 %v380, 1040203264
          %v413 = vmul.bf16 %v381, 1040203264
          %v414 = vmul.bf16 %v382, 1040203264
          %v415 = vmul.bf16 %v383, 1040203264
          %v416 = vmul.bf16 %v384, 1040203264
          %v417 = vmul.bf16 %v385, 1040203264
          %v418 = vmul.bf16 %v386, 1040203264
          %v419 = vmul.bf16 %v387, 1040203264
          %v420 = vmul.bf16 %v388, 1040203264
          %v421 = vmul.bf16 %v389, 1040203264
          %v422 = vmul.bf16 %v390, 1040203264
          %v423 = vmul.bf16 %v391, 1040203264
          %v424 = vmul.bf16 %v392, 1040203264
          %v425 = vmul.bf16 %v393, 1040203264
          %v426 = vmul.bf16 %v394, 1040203264
          %v427 = vmul.bf16 %v395, 1040203264
          %v428 = vmul.bf16 %v396, 1040203264
          %v429 = vmul.bf16 %v397, 1040203264
          %v430 = vmul.bf16 %v398, 1040203264
          %v431 = vmul.bf16 %v399, 1040203264
          %v432 = vmul.bf16 %v400, 1040203264
          %v433 = vmul.bf16 %v401, 1040203264
          %v434 = vmul.bf16 %v402, 1040203264
          %v435 = vmul.bf16 %v403, 1040203264
          %v436 = vmul.bf16 %v404, 1040203264
          %v437 = vmul.bf16 %v405, 1040203264
          %v438 = vmul.bf16 %v406, 1040203264
          %v439 = vmul.bf16 %v407, 1040203264
          %v440 = vmul.bf16 %v408, 1040203264
          %v441 = vmul.bf16 %v409, 1040203264
          %vm442 = vcmask 519168
          %443 = vst.msk [vmem:[#allocation2] sm:$0xf] %vm442, %v410
          %444 = vst.msk [vmem:[#allocation2 + $0x4] sm:$0xf] %vm442, %v411
          %445 = vst.msk [vmem:[#allocation2 + $0x8] sm:$0xf] %vm442, %v412
          %446 = vst.msk [vmem:[#allocation2 + $0xc] sm:$0xf] %vm442, %v413
          %447 = vst.msk [vmem:[#allocation2 + $0x10] sm:$0xf] %vm442, %v414
          %448 = vst.msk [vmem:[#allocation2 + $0x14] sm:$0xf] %vm442, %v415
          %449 = vst.msk [vmem:[#allocation2 + $0x18] sm:$0xf] %vm442, %v416
          %450 = vst.msk [vmem:[#allocation2 + $0x1c] sm:$0xf] %vm442, %v417
          %451 = vst.msk [vmem:[#allocation2 + $0x20] sm:$0xf] %vm442, %v418
          %452 = vst.msk [vmem:[#allocation2 + $0x24] sm:$0xf] %vm442, %v419
          %453 = vst.msk [vmem:[#allocation2 + $0x28] sm:$0xf] %vm442, %v420
          %454 = vst.msk [vmem:[#allocation2 + $0x2c] sm:$0xf] %vm442, %v421
          %455 = vst.msk [vmem:[#allocation2 + $0x30] sm:$0xf] %vm442, %v422
          %456 = vst.msk [vmem:[#allocation2 + $0x34] sm:$0xf] %vm442, %v423
          %457 = vst.msk [vmem:[#allocation2 + $0x38] sm:$0xf] %vm442, %v424
          %458 = vst.msk [vmem:[#allocation2 + $0x3c] sm:$0xf] %vm442, %v425
          %459 = vst.msk [vmem:[#allocation2 + $0x40] sm:$0xf] %vm442, %v426
          %460 = vst.msk [vmem:[#allocation2 + $0x44] sm:$0xf] %vm442, %v427
          %461 = vst.msk [vmem:[#allocation2 + $0x48] sm:$0xf] %vm442, %v428
          %462 = vst.msk [vmem:[#allocation2 + $0x4c] sm:$0xf] %vm442, %v429
          %463 = vst.msk [vmem:[#allocation2 + $0x50] sm:$0xf] %vm442, %v430
          %464 = vst.msk [vmem:[#allocation2 + $0x54] sm:$0xf] %vm442, %v431
          %465 = vst.msk [vmem:[#allocation2 + $0x58] sm:$0xf] %vm442, %v432
          %466 = vst.msk [vmem:[#allocation2 + $0x5c] sm:$0xf] %vm442, %v433
          %467 = vst.msk [vmem:[#allocation2 + $0x60] sm:$0xf] %vm442, %v434
          %468 = vst.msk [vmem:[#allocation2 + $0x64] sm:$0xf] %vm442, %v435
          %469 = vst.msk [vmem:[#allocation2 + $0x68] sm:$0xf] %vm442, %v436
          %470 = vst.msk [vmem:[#allocation2 + $0x6c] sm:$0xf] %vm442, %v437
          %471 = vst.msk [vmem:[#allocation2 + $0x70] sm:$0xf] %vm442, %v438
          %472 = vst.msk [vmem:[#allocation2 + $0x74] sm:$0xf] %vm442, %v439
          %473 = vst.msk [vmem:[#allocation2 + $0x78] sm:$0xf] %vm442, %v440
          %474 = vst.msk [vmem:[#allocation2 + $0x7c] sm:$0xf] %vm442, %v441
          %vm475 = vcmask 7168
          %476 = vst.msk [vmem:[#allocation3] sm:$0xff] %vm475, -inf
          %477 = vst.msk [vmem:[#allocation3 + $0x8] sm:$0xff] %vm475, -inf
          %478 = vst.msk [vmem:[#allocation3 + $0x10] sm:$0xff] %vm475, -inf
          %479 = vst.msk [vmem:[#allocation3 + $0x18] sm:$0xff] %vm475, -inf
          %480 = vst.msk [vmem:[#allocation3 + $0x20] sm:$0xff] %vm475, -inf
          %481 = vst.msk [vmem:[#allocation3 + $0x28] sm:$0xff] %vm475, -inf
          %482 = vst.msk [vmem:[#allocation3 + $0x30] sm:$0xff] %vm475, -inf
          %483 = vst.msk [vmem:[#allocation3 + $0x38] sm:$0xff] %vm475, -inf
          %484 = vst.msk [vmem:[#allocation3 + $0x40] sm:$0xff] %vm475, -inf
          %485 = vst.msk [vmem:[#allocation3 + $0x48] sm:$0xff] %vm475, -inf
          %486 = vst.msk [vmem:[#allocation3 + $0x50] sm:$0xff] %vm475, -inf
          %487 = vst.msk [vmem:[#allocation3 + $0x58] sm:$0xff] %vm475, -inf
          %488 = vst.msk [vmem:[#allocation3 + $0x60] sm:$0xff] %vm475, -inf
          %489 = vst.msk [vmem:[#allocation3 + $0x68] sm:$0xff] %vm475, -inf
          %490 = vst.msk [vmem:[#allocation3 + $0x70] sm:$0xff] %vm475, -inf
          %491 = vst.msk [vmem:[#allocation3 + $0x78] sm:$0xff] %vm475, -inf
          %492 = vst.msk [vmem:[#allocation3 + $0x80] sm:$0xff] %vm475, -inf
          %493 = vst.msk [vmem:[#allocation3 + $0x88] sm:$0xff] %vm475, -inf
          %494 = vst.msk [vmem:[#allocation3 + $0x90] sm:$0xff] %vm475, -inf
          %495 = vst.msk [vmem:[#allocation3 + $0x98] sm:$0xff] %vm475, -inf
          %496 = vst.msk [vmem:[#allocation3 + $0xa0] sm:$0xff] %vm475, -inf
          %497 = vst.msk [vmem:[#allocation3 + $0xa8] sm:$0xff] %vm475, -inf
          %498 = vst.msk [vmem:[#allocation3 + $0xb0] sm:$0xff] %vm475, -inf
          %499 = vst.msk [vmem:[#allocation3 + $0xb8] sm:$0xff] %vm475, -inf
          %500 = vst.msk [vmem:[#allocation3 + $0xc0] sm:$0xff] %vm475, -inf
          %501 = vst.msk [vmem:[#allocation3 + $0xc8] sm:$0xff] %vm475, -inf
          %502 = vst.msk [vmem:[#allocation3 + $0xd0] sm:$0xff] %vm475, -inf
          %503 = vst.msk [vmem:[#allocation3 + $0xd8] sm:$0xff] %vm475, -inf
          %504 = vst.msk [vmem:[#allocation3 + $0xe0] sm:$0xff] %vm475, -inf
          %505 = vst.msk [vmem:[#allocation3 + $0xe8] sm:$0xff] %vm475, -inf
          %506 = vst.msk [vmem:[#allocation3 + $0xf0] sm:$0xff] %vm475, -inf
          %507 = vst.msk [vmem:[#allocation3 + $0xf8] sm:$0xff] %vm475, -inf
          %508 = vst [vmem:[#allocation4] sm:$0xff] 0.0
          %509 = vst [vmem:[#allocation4 + $0x8] sm:$0xff] 0.0
          %510 = vst [vmem:[#allocation4 + $0x10] sm:$0xff] 0.0
          %511 = vst [vmem:[#allocation4 + $0x18] sm:$0xff] 0.0
          %512 = vst [vmem:[#allocation4 + $0x20] sm:$0xff] 0.0
          %513 = vst [vmem:[#allocation4 + $0x28] sm:$0xff] 0.0
          %514 = vst [vmem:[#allocation4 + $0x30] sm:$0xff] 0.0
          %515 = vst [vmem:[#allocation4 + $0x38] sm:$0xff] 0.0
          %516 = vst [vmem:[#allocation4 + $0x40] sm:$0xff] 0.0
          %517 = vst [vmem:[#allocation4 + $0x48] sm:$0xff] 0.0
          %518 = vst [vmem:[#allocation4 + $0x50] sm:$0xff] 0.0
          %519 = vst [vmem:[#allocation4 + $0x58] sm:$0xff] 0.0
          %520 = vst [vmem:[#allocation4 + $0x60] sm:$0xff] 0.0
          %521 = vst [vmem:[#allocation4 + $0x68] sm:$0xff] 0.0
          %522 = vst [vmem:[#allocation4 + $0x70] sm:$0xff] 0.0
          %523 = vst [vmem:[#allocation4 + $0x78] sm:$0xff] 0.0
          %524 = vst [vmem:[#allocation4 + $0x80] sm:$0xff] 0.0
          %525 = vst [vmem:[#allocation4 + $0x88] sm:$0xff] 0.0
          %526 = vst [vmem:[#allocation4 + $0x90] sm:$0xff] 0.0
          %527 = vst [vmem:[#allocation4 + $0x98] sm:$0xff] 0.0
          %528 = vst [vmem:[#allocation4 + $0xa0] sm:$0xff] 0.0
          %529 = vst [vmem:[#allocation4 + $0xa8] sm:$0xff] 0.0
          %530 = vst [vmem:[#allocation4 + $0xb0] sm:$0xff] 0.0
          %531 = vst [vmem:[#allocation4 + $0xb8] sm:$0xff] 0.0
          %532 = vst [vmem:[#allocation4 + $0xc0] sm:$0xff] 0.0
          %533 = vst [vmem:[#allocation4 + $0xc8] sm:$0xff] 0.0
          %534 = vst [vmem:[#allocation4 + $0xd0] sm:$0xff] 0.0
          %535 = vst [vmem:[#allocation4 + $0xd8] sm:$0xff] 0.0
          %536 = vst [vmem:[#allocation4 + $0xe0] sm:$0xff] 0.0
          %537 = vst [vmem:[#allocation4 + $0xe8] sm:$0xff] 0.0
          %538 = vst [vmem:[#allocation4 + $0xf0] sm:$0xff] 0.0
          %539 = vst [vmem:[#allocation4 + $0xf8] sm:$0xff] 0.0
        $region74: #{a_call__.1} parent=65 // pred_fallthru
          _
        %v540 = vld [vmem:[#allocation2] sm:$0xf]
        %v541 = vld [vmem:[#allocation2 + $0x4] sm:$0xf]
        %v542 = vld [vmem:[#allocation2 + $0x8] sm:$0xf]
        %v543 = vld [vmem:[#allocation2 + $0xc] sm:$0xf]
        %v544 = vld [vmem:[#allocation2 + $0x10] sm:$0xf]
        %v545 = vld [vmem:[#allocation2 + $0x14] sm:$0xf]
        %v546 = vld [vmem:[#allocation2 + $0x18] sm:$0xf]
        %v547 = vld [vmem:[#allocation2 + $0x1c] sm:$0xf]
        %v548 = vld [vmem:[#allocation2 + $0x20] sm:$0xf]
        %v549 = vld [vmem:[#allocation2 + $0x24] sm:$0xf]
        %v550 = vld [vmem:[#allocation2 + $0x28] sm:$0xf]
        %v551 = vld [vmem:[#allocation2 + $0x2c] sm:$0xf]
        %v552 = vld [vmem:[#allocation2 + $0x30] sm:$0xf]
        %v553 = vld [vmem:[#allocation2 + $0x34] sm:$0xf]
        %v554 = vld [vmem:[#allocation2 + $0x38] sm:$0xf]
        %v555 = vld [vmem:[#allocation2 + $0x3c] sm:$0xf]
        %v556 = vld [vmem:[#allocation2 + $0x40] sm:$0xf]
        %v557 = vld [vmem:[#allocation2 + $0x44] sm:$0xf]
        %v558 = vld [vmem:[#allocation2 + $0x48] sm:$0xf]
        %v559 = vld [vmem:[#allocation2 + $0x4c] sm:$0xf]
        %v560 = vld [vmem:[#allocation2 + $0x50] sm:$0xf]
        %v561 = vld [vmem:[#allocation2 + $0x54] sm:$0xf]
        %v562 = vld [vmem:[#allocation2 + $0x58] sm:$0xf]
        %v563 = vld [vmem:[#allocation2 + $0x5c] sm:$0xf]
        %v564 = vld [vmem:[#allocation2 + $0x60] sm:$0xf]
        %v565 = vld [vmem:[#allocation2 + $0x64] sm:$0xf]
        %v566 = vld [vmem:[#allocation2 + $0x68] sm:$0xf]
        %v567 = vld [vmem:[#allocation2 + $0x6c] sm:$0xf]
        %v568 = vld [vmem:[#allocation2 + $0x70] sm:$0xf]
        %v569 = vld [vmem:[#allocation2 + $0x74] sm:$0xf]
        %v570 = vld [vmem:[#allocation2 + $0x78] sm:$0xf]
        %v571 = vld [vmem:[#allocation2 + $0x7c] sm:$0xf]
        %v572 = vld [vmem:[%s286] sm:$0xff]
        %v573 = vld [vmem:[%s286 + $0x8] sm:$0xff]
        %v574 = vld [vmem:[%s286 + $0x10] sm:$0xff]
        %v575 = vld [vmem:[%s286 + $0x18] sm:$0xff]
        %v576 = vld [vmem:[%s286 + $0x20] sm:$0xff]
        %v577 = vld [vmem:[%s286 + $0x28] sm:$0xff]
        %v578 = vld [vmem:[%s286 + $0x30] sm:$0xff]
        %v579 = vld [vmem:[%s286 + $0x38] sm:$0xff]
        %v580 = vld [vmem:[%s355] sm:$0xf]
        %v581 = vld [vmem:[%s355 + $0x4] sm:$0xf]
        %v582 = vld [vmem:[%s355 + $0x8] sm:$0xf]
        %v583 = vld [vmem:[%s355 + $0xc] sm:$0xf]
        %v584 = vld [vmem:[%s355 + $0x10] sm:$0xf]
        %v585 = vld [vmem:[%s355 + $0x14] sm:$0xf]
        %v586 = vld [vmem:[%s355 + $0x18] sm:$0xf]
        %v587 = vld [vmem:[%s355 + $0x1c] sm:$0xf]
        %v588 = vld [vmem:[%s355 + $0x20] sm:$0xf]
        %v589 = vld [vmem:[%s355 + $0x24] sm:$0xf]
        %v590 = vld [vmem:[%s355 + $0x28] sm:$0xf]
        %v591 = vld [vmem:[%s355 + $0x2c] sm:$0xf]
        %v592 = vld [vmem:[%s355 + $0x30] sm:$0xf]
        %v593 = vld [vmem:[%s355 + $0x34] sm:$0xf]
        %v594 = vld [vmem:[%s355 + $0x38] sm:$0xf]
        %v595 = vld [vmem:[%s355 + $0x3c] sm:$0xf]
        %v596 = vld [vmem:[%s355 + $0x40] sm:$0xf]
        %v597 = vld [vmem:[%s355 + $0x44] sm:$0xf]
        %v598 = vld [vmem:[%s355 + $0x48] sm:$0xf]
        %v599 = vld [vmem:[%s355 + $0x4c] sm:$0xf]
        %v600 = vld [vmem:[%s355 + $0x50] sm:$0xf]
        %v601 = vld [vmem:[%s355 + $0x54] sm:$0xf]
        %v602 = vld [vmem:[%s355 + $0x58] sm:$0xf]
        %v603 = vld [vmem:[%s355 + $0x5c] sm:$0xf]
        %v604 = vld [vmem:[%s355 + $0x60] sm:$0xf]
        %v605 = vld [vmem:[%s355 + $0x64] sm:$0xf]
        %v606 = vld [vmem:[%s355 + $0x68] sm:$0xf]
        %v607 = vld [vmem:[%s355 + $0x6c] sm:$0xf]
        %v608 = vld [vmem:[%s355 + $0x70] sm:$0xf]
        %v609 = vld [vmem:[%s355 + $0x74] sm:$0xf]
        %v610 = vld [vmem:[%s355 + $0x78] sm:$0xf]
        %v611 = vld [vmem:[%s355 + $0x7c] sm:$0xf]
        %v644 = vunpack.c.l.b16 %v540
        %v645 = vunpack.c.l.b16 %v541
        %v646 = vunpack.c.l.b16 %v542
        %v647 = vunpack.c.l.b16 %v543
        %v648 = vunpack.c.l.b16 %v544
        %v649 = vunpack.c.l.b16 %v545
        %v650 = vunpack.c.l.b16 %v546
        %v651 = vunpack.c.l.b16 %v547
        %v652 = vunpack.c.l.b16 %v548
        %v653 = vunpack.c.l.b16 %v549
        %v654 = vunpack.c.l.b16 %v550
        %v655 = vunpack.c.l.b16 %v551
        %v656 = vunpack.c.l.b16 %v552
        %v657 = vunpack.c.l.b16 %v553
        %v658 = vunpack.c.l.b16 %v554
        %v659 = vunpack.c.l.b16 %v555
        %v660 = vunpack.c.l.b16 %v556
        %v661 = vunpack.c.l.b16 %v557
        %v662 = vunpack.c.l.b16 %v558
        %v663 = vunpack.c.l.b16 %v559
        %v664 = vunpack.c.l.b16 %v560
        %v665 = vunpack.c.l.b16 %v561
        %v666 = vunpack.c.l.b16 %v562
        %v667 = vunpack.c.l.b16 %v563
        %v668 = vunpack.c.l.b16 %v564
        %v669 = vunpack.c.l.b16 %v565
        %v670 = vunpack.c.l.b16 %v566
        %v671 = vunpack.c.l.b16 %v567
        %v672 = vunpack.c.l.b16 %v568
        %v673 = vunpack.c.l.b16 %v569
        %v674 = vunpack.c.l.b16 %v570
        %v675 = vunpack.c.l.b16 %v571
        %v676 = vpack.c.b16 %v645, %v644
        %v677 = vpack.c.b16 %v647, %v646
        %v678 = vpack.c.b16 %v649, %v648
        %v679 = vpack.c.b16 %v651, %v650
        %v680 = vpack.c.b16 %v653, %v652
        %v681 = vpack.c.b16 %v655, %v654
        %v682 = vpack.c.b16 %v657, %v656
        %v683 = vpack.c.b16 %v659, %v658
        %v684 = vpack.c.b16 %v661, %v660
        %v685 = vpack.c.b16 %v663, %v662
        %v686 = vpack.c.b16 %v665, %v664
        %v687 = vpack.c.b16 %v667, %v666
        %v688 = vpack.c.b16 %v669, %v668
        %v689 = vpack.c.b16 %v671, %v670
        %v690 = vpack.c.b16 %v673, %v672
        %v691 = vpack.c.b16 %v675, %v674
        %v700 = vunpack.c.l.b16 %v572
        %v701 = vunpack.c.h.b16 %v572
        %v702 = vunpack.c.l.b16 %v573
        %v703 = vunpack.c.h.b16 %v573
        %v704 = vunpack.c.l.b16 %v574
        %v705 = vunpack.c.h.b16 %v574
        %v706 = vunpack.c.l.b16 %v575
        %v707 = vunpack.c.h.b16 %v575
        %v708 = vunpack.c.l.b16 %v576
        %v709 = vunpack.c.h.b16 %v576
        %v710 = vunpack.c.l.b16 %v577
        %v711 = vunpack.c.h.b16 %v577
        %v712 = vunpack.c.l.b16 %v578
        %v713 = vunpack.c.h.b16 %v578
        %v714 = vunpack.c.l.b16 %v579
        %v715 = vunpack.c.h.b16 %v579
        %v716 = vpack.c.b16 %v702, %v700
        %v717 = vpack.c.b16 %v703, %v701
        %v718 = vpack.c.b16 %v706, %v704
        %v719 = vpack.c.b16 %v707, %v705
        %v720 = vpack.c.b16 %v710, %v708
        %v721 = vpack.c.b16 %v711, %v709
        %v722 = vpack.c.b16 %v714, %v712
        %v723 = vpack.c.b16 %v715, %v713
        %vm732 = vcmask 523264
        %v734 = vsel %vm732, %v676, 0
        %v737 = vsel %vm732, %v677, 0
        %v740 = vsel %vm732, %v678, 0
        %v743 = vsel %vm732, %v679, 0
        %v746 = vsel %vm732, %v680, 0
        %v749 = vsel %vm732, %v681, 0
        %v752 = vsel %vm732, %v682, 0
        %v755 = vsel %vm732, %v683, 0
        %v758 = vsel %vm732, %v684, 0
        %v761 = vsel %vm732, %v685, 0
        %v764 = vsel %vm732, %v686, 0
        %v767 = vsel %vm732, %v687, 0
        %v770 = vsel %vm732, %v688, 0
        %v773 = vsel %vm732, %v689, 0
        %v776 = vsel %vm732, %v690, 0
        %v779 = vsel %vm732, %v691, 0
        %781 = vmatprep.subr.bf16.mxu0 0
        %782 = vmatpush1.bf16.msra.mxu0 0
        %783 = vmatprep.subr.bf16.mxu0 0
        %784 = vmatpush1.bf16.msra.mxu0 0
        %785 = vmatprep.subr.bf16.mxu0 0
        %786 = vmatpush1.bf16.msra.mxu0 0
        %787 = vmatprep.subr.bf16.mxu0 0
        %788 = vmatpush1.bf16.msra.mxu0 0
        %789 = vmatprep.subr.bf16.mxu0 %v723
        %790 = vmatpush1.bf16.msra.mxu0 %v722
        %791 = vmatprep.subr.bf16.mxu0 %v721
        %792 = vmatpush1.bf16.msra.mxu0 %v720
        %793 = vmatprep.subr.bf16.mxu0 %v719
        %794 = vmatpush1.bf16.msra.mxu0 %v718
        %795 = vmatprep.subr.bf16.mxu0 %v717
        %796 = vmatpush1.bf16.msra.mxu0 %v716
        %797 = vmatprep.subr.bf16.mxu0 0
        %798 = vmatpush2.bf16.msra.mxu0 0
        %799 = vmatprep.subr.bf16.mxu0 0
        %800 = vmatpush2.bf16.msra.mxu0 0
        %801 = vmatprep.subr.bf16.mxu0 0
        %802 = vmatpush2.bf16.msra.mxu0 0
        %803 = vmatprep.subr.bf16.mxu0 0
        %804 = vmatpush2.bf16.msra.mxu0 0
        %805 = vmatprep.subr.bf16.mxu0 0
        %806 = vmatpush2.bf16.msra.mxu0 0
        %807 = vmatprep.subr.bf16.mxu0 0
        %808 = vmatpush2.bf16.msra.mxu0 0
        %809 = vmatprep.subr.bf16.mxu0 0
        %810 = vmatpush2.bf16.msra.mxu0 0
        %811 = vmatprep.subr.bf16.mxu0 0
        %812 = vmatpush2.bf16.msra.mxu0 0
        %813 = vmatprep.mubr.bf16.mxu0 0
        %814 = vmatmul.mubr.bf16.gmra.mxu0 %v734
        %v815 = vpop.f32.mrf.mxu0
        %v816 = vadd.f32 0.0, %v815
        %v817 = vpop.f32.mrf.mxu0
        %v818 = vadd.f32 0.0, %v817
        %v819 = vpop.f32.mrf.mxu0
        %v820 = vadd.f32 0.0, %v819
        %v821 = vpop.f32.mrf.mxu0
        %v822 = vadd.f32 0.0, %v821
        %823 = vmatprep.mubr.bf16.mxu0 0
        %824 = vmatmul.mubr.bf16.gmra.mxu0 %v737
        %v825 = vpop.f32.mrf.mxu0
        %v826 = vadd.f32 0.0, %v825
        %v827 = vpop.f32.mrf.mxu0
        %v828 = vadd.f32 0.0, %v827
        %v829 = vpop.f32.mrf.mxu0
        %v830 = vadd.f32 0.0, %v829
        %v831 = vpop.f32.mrf.mxu0
        %v832 = vadd.f32 0.0, %v831
        %833 = vmatprep.mubr.bf16.mxu0 0
        %834 = vmatmul.mubr.bf16.gmra.mxu0 %v740
        %v835 = vpop.f32.mrf.mxu0
        %v836 = vadd.f32 0.0, %v835
        %v837 = vpop.f32.mrf.mxu0
        %v838 = vadd.f32 0.0, %v837
        %v839 = vpop.f32.mrf.mxu0
        %v840 = vadd.f32 0.0, %v839
        %v841 = vpop.f32.mrf.mxu0
        %v842 = vadd.f32 0.0, %v841
        %843 = vmatprep.mubr.bf16.mxu0 0
        %844 = vmatmul.mubr.bf16.gmra.mxu0 %v743
        %v845 = vpop.f32.mrf.mxu0
        %v846 = vadd.f32 0.0, %v845
        %v847 = vpop.f32.mrf.mxu0
        %v848 = vadd.f32 0.0, %v847
        %v849 = vpop.f32.mrf.mxu0
        %v850 = vadd.f32 0.0, %v849
        %v851 = vpop.f32.mrf.mxu0
        %v852 = vadd.f32 0.0, %v851
        %853 = vmatprep.mubr.bf16.mxu0 0
        %854 = vmatmul.mubr.bf16.gmra.mxu0 %v746
        %v855 = vpop.f32.mrf.mxu0
        %v856 = vadd.f32 0.0, %v855
        %v857 = vpop.f32.mrf.mxu0
        %v858 = vadd.f32 0.0, %v857
        %v859 = vpop.f32.mrf.mxu0
        %v860 = vadd.f32 0.0, %v859
        %v861 = vpop.f32.mrf.mxu0
        %v862 = vadd.f32 0.0, %v861
        %863 = vmatprep.mubr.bf16.mxu0 0
        %864 = vmatmul.mubr.bf16.gmra.mxu0 %v749
        %v865 = vpop.f32.mrf.mxu0
        %v866 = vadd.f32 0.0, %v865
        %v867 = vpop.f32.mrf.mxu0
        %v868 = vadd.f32 0.0, %v867
        %v869 = vpop.f32.mrf.mxu0
        %v870 = vadd.f32 0.0, %v869
        %v871 = vpop.f32.mrf.mxu0
        %v872 = vadd.f32 0.0, %v871
        %873 = vmatprep.mubr.bf16.mxu0 0
        %874 = vmatmul.mubr.bf16.gmra.mxu0 %v752
        %v875 = vpop.f32.mrf.mxu0
        %v876 = vadd.f32 0.0, %v875
        %v877 = vpop.f32.mrf.mxu0
        %v878 = vadd.f32 0.0, %v877
        %v879 = vpop.f32.mrf.mxu0
        %v880 = vadd.f32 0.0, %v879
        %v881 = vpop.f32.mrf.mxu0
        %v882 = vadd.f32 0.0, %v881
        %883 = vmatprep.mubr.bf16.mxu0 0
        %884 = vmatmul.mubr.bf16.gmra.mxu0 %v755
        %v885 = vpop.f32.mrf.mxu0
        %v886 = vadd.f32 0.0, %v885
        %v887 = vpop.f32.mrf.mxu0
        %v888 = vadd.f32 0.0, %v887
        %v889 = vpop.f32.mrf.mxu0
        %v890 = vadd.f32 0.0, %v889
        %v891 = vpop.f32.mrf.mxu0
        %v892 = vadd.f32 0.0, %v891
        %893 = vmatprep.mubr.bf16.mxu0 0
        %894 = vmatmul.mubr.bf16.gmra.mxu0 %v758
        %v895 = vpop.f32.mrf.mxu0
        %v896 = vadd.f32 0.0, %v895
        %v897 = vpop.f32.mrf.mxu0
        %v898 = vadd.f32 0.0, %v897
        %v899 = vpop.f32.mrf.mxu0
        %v900 = vadd.f32 0.0, %v899
        %v901 = vpop.f32.mrf.mxu0
        %v902 = vadd.f32 0.0, %v901
        %903 = vmatprep.mubr.bf16.mxu0 0
        %904 = vmatmul.mubr.bf16.gmra.mxu0 %v761
        %v905 = vpop.f32.mrf.mxu0
        %v906 = vadd.f32 0.0, %v905
        %v907 = vpop.f32.mrf.mxu0
        %v908 = vadd.f32 0.0, %v907
        %v909 = vpop.f32.mrf.mxu0
        %v910 = vadd.f32 0.0, %v909
        %v911 = vpop.f32.mrf.mxu0
        %v912 = vadd.f32 0.0, %v911
        %913 = vmatprep.mubr.bf16.mxu0 0
        %914 = vmatmul.mubr.bf16.gmra.mxu0 %v764
        %v915 = vpop.f32.mrf.mxu0
        %v916 = vadd.f32 0.0, %v915
        %v917 = vpop.f32.mrf.mxu0
        %v918 = vadd.f32 0.0, %v917
        %v919 = vpop.f32.mrf.mxu0
        %v920 = vadd.f32 0.0, %v919
        %v921 = vpop.f32.mrf.mxu0
        %v922 = vadd.f32 0.0, %v921
        %923 = vmatprep.mubr.bf16.mxu0 0
        %924 = vmatmul.mubr.bf16.gmra.mxu0 %v767
        %v925 = vpop.f32.mrf.mxu0
        %v926 = vadd.f32 0.0, %v925
        %v927 = vpop.f32.mrf.mxu0
        %v928 = vadd.f32 0.0, %v927
        %v929 = vpop.f32.mrf.mxu0
        %v930 = vadd.f32 0.0, %v929
        %v931 = vpop.f32.mrf.mxu0
        %v932 = vadd.f32 0.0, %v931
        %933 = vmatprep.mubr.bf16.mxu0 0
        %934 = vmatmul.mubr.bf16.gmra.mxu0 %v770
        %v935 = vpop.f32.mrf.mxu0
        %v936 = vadd.f32 0.0, %v935
        %v937 = vpop.f32.mrf.mxu0
        %v938 = vadd.f32 0.0, %v937
        %v939 = vpop.f32.mrf.mxu0
        %v940 = vadd.f32 0.0, %v939
        %v941 = vpop.f32.mrf.mxu0
        %v942 = vadd.f32 0.0, %v941
        %943 = vmatprep.mubr.bf16.mxu0 0
        %944 = vmatmul.mubr.bf16.gmra.mxu0 %v773
        %v945 = vpop.f32.mrf.mxu0
        %v946 = vadd.f32 0.0, %v945
        %v947 = vpop.f32.mrf.mxu0
        %v948 = vadd.f32 0.0, %v947
        %v949 = vpop.f32.mrf.mxu0
        %v950 = vadd.f32 0.0, %v949
        %v951 = vpop.f32.mrf.mxu0
        %v952 = vadd.f32 0.0, %v951
        %953 = vmatprep.mubr.bf16.mxu0 0
        %954 = vmatmul.mubr.bf16.gmra.mxu0 %v776
        %v955 = vpop.f32.mrf.mxu0
        %v956 = vadd.f32 0.0, %v955
        %v957 = vpop.f32.mrf.mxu0
        %v958 = vadd.f32 0.0, %v957
        %v959 = vpop.f32.mrf.mxu0
        %v960 = vadd.f32 0.0, %v959
        %v961 = vpop.f32.mrf.mxu0
        %v962 = vadd.f32 0.0, %v961
        %963 = vmatprep.mubr.bf16.mxu0 0
        %964 = vmatmul.mubr.bf16.gmra.mxu0 %v779
        %v965 = vpop.f32.mrf.mxu0
        %v966 = vadd.f32 0.0, %v965
        %v967 = vpop.f32.mrf.mxu0
        %v968 = vadd.f32 0.0, %v967
        %v969 = vpop.f32.mrf.mxu0
        %v970 = vadd.f32 0.0, %v969
        %v971 = vpop.f32.mrf.mxu0
        %v972 = vadd.f32 0.0, %v971
        %973 = vdwg.mxu0
        %p974 = scmp.lt.s32.totalorder %s373, %s372
        // Predicated region
        $region75: #{a_call__.1} parent=65 // pred_check
          %p975 = pneg %p974
        $region76: #{a_call__.1} parent=65 // pred_check_branch
          %977 = sbr.rel (%p975) target = $region78
        $region77: #{a_call__.1} parent=65 // pred_region
          %v978 = vld [vmem:[#allocation3] sm:$0xff]
          %v979 = vld [vmem:[#allocation3 + $0x8] sm:$0xff]
          %v980 = vld [vmem:[#allocation3 + $0x10] sm:$0xff]
          %v981 = vld [vmem:[#allocation3 + $0x18] sm:$0xff]
          %v982 = vld [vmem:[#allocation3 + $0x20] sm:$0xff]
          %v983 = vld [vmem:[#allocation3 + $0x28] sm:$0xff]
          %v984 = vld [vmem:[#allocation3 + $0x30] sm:$0xff]
          %v985 = vld [vmem:[#allocation3 + $0x38] sm:$0xff]
          %v986 = vld [vmem:[#allocation3 + $0x40] sm:$0xff]
          %v987 = vld [vmem:[#allocation3 + $0x48] sm:$0xff]
          %v988 = vld [vmem:[#allocation3 + $0x50] sm:$0xff]
          %v989 = vld [vmem:[#allocation3 + $0x58] sm:$0xff]
          %v990 = vld [vmem:[#allocation3 + $0x60] sm:$0xff]
          %v991 = vld [vmem:[#allocation3 + $0x68] sm:$0xff]
          %v992 = vld [vmem:[#allocation3 + $0x70] sm:$0xff]
          %v993 = vld [vmem:[#allocation3 + $0x78] sm:$0xff]
          %v994 = vld [vmem:[#allocation3 + $0x80] sm:$0xff]
          %v995 = vld [vmem:[#allocation3 + $0x88] sm:$0xff]
          %v996 = vld [vmem:[#allocation3 + $0x90] sm:$0xff]
          %v997 = vld [vmem:[#allocation3 + $0x98] sm:$0xff]
          %v998 = vld [vmem:[#allocation3 + $0xa0] sm:$0xff]
          %v999 = vld [vmem:[#allocation3 + $0xa8] sm:$0xff]
          %v1000 = vld [vmem:[#allocation3 + $0xb0] sm:$0xff]
          %v1001 = vld [vmem:[#allocation3 + $0xb8] sm:$0xff]
          %v1002 = vld [vmem:[#allocation3 + $0xc0] sm:$0xff]
          %v1003 = vld [vmem:[#allocation3 + $0xc8] sm:$0xff]
          %v1004 = vld [vmem:[#allocation3 + $0xd0] sm:$0xff]
          %v1005 = vld [vmem:[#allocation3 + $0xd8] sm:$0xff]
          %v1006 = vld [vmem:[#allocation3 + $0xe0] sm:$0xff]
          %v1007 = vld [vmem:[#allocation3 + $0xe8] sm:$0xff]
          %v1008 = vld [vmem:[#allocation3 + $0xf0] sm:$0xff]
          %v1009 = vld [vmem:[#allocation3 + $0xf8] sm:$0xff]
          %v1010 = vmax.f32 %v816, %v818
          %1011 = vmax.xlane.f32.xlu0 %v1010
          %v1012 = vpop.xlane.xlu0 %1011
          %v1013 = vmax.f32 %v820, %v822
          %1014 = vmax.xlane.f32.xlu0 %v1013
          %v1015 = vpop.xlane.xlu0 %1014
          %v1016 = vmax.f32 %v826, %v828
          %1017 = vmax.xlane.f32.xlu0 %v1016
          %v1018 = vpop.xlane.xlu0 %1017
          %v1019 = vmax.f32 %v830, %v832
          %1020 = vmax.xlane.f32.xlu0 %v1019
          %v1021 = vpop.xlane.xlu0 %1020
          %v1022 = vmax.f32 %v836, %v838
          %1023 = vmax.xlane.f32.xlu0 %v1022
          %v1024 = vpop.xlane.xlu0 %1023
          %v1025 = vmax.f32 %v840, %v842
          %1026 = vmax.xlane.f32.xlu0 %v1025
          %v1027 = vpop.xlane.xlu0 %1026
          %v1028 = vmax.f32 %v846, %v848
          %1029 = vmax.xlane.f32.xlu0 %v1028
          %v1030 = vpop.xlane.xlu0 %1029
          %v1031 = vmax.f32 %v850, %v852
          %1032 = vmax.xlane.f32.xlu0 %v1031
          %v1033 = vpop.xlane.xlu0 %1032
          %v1034 = vmax.f32 %v856, %v858
          %1035 = vmax.xlane.f32.xlu0 %v1034
          %v1036 = vpop.xlane.xlu0 %1035
          %v1037 = vmax.f32 %v860, %v862
          %1038 = vmax.xlane.f32.xlu0 %v1037
          %v1039 = vpop.xlane.xlu0 %1038
          %v1040 = vmax.f32 %v866, %v868
          %1041 = vmax.xlane.f32.xlu0 %v1040
          %v1042 = vpop.xlane.xlu0 %1041
          %v1043 = vmax.f32 %v870, %v872
          %1044 = vmax.xlane.f32.xlu0 %v1043
          %v1045 = vpop.xlane.xlu0 %1044
          %v1046 = vmax.f32 %v876, %v878
          %1047 = vmax.xlane.f32.xlu0 %v1046
          %v1048 = vpop.xlane.xlu0 %1047
          %v1049 = vmax.f32 %v880, %v882
          %1050 = vmax.xlane.f32.xlu0 %v1049
          %v1051 = vpop.xlane.xlu0 %1050
          %v1052 = vmax.f32 %v886, %v888
          %1053 = vmax.xlane.f32.xlu0 %v1052
          %v1054 = vpop.xlane.xlu0 %1053
          %v1055 = vmax.f32 %v890, %v892
          %1056 = vmax.xlane.f32.xlu0 %v1055
          %v1057 = vpop.xlane.xlu0 %1056
          %v1058 = vmax.f32 %v896, %v898
          %1059 = vmax.xlane.f32.xlu0 %v1058
          %v1060 = vpop.xlane.xlu0 %1059
          %v1061 = vmax.f32 %v900, %v902
          %1062 = vmax.xlane.f32.xlu0 %v1061
          %v1063 = vpop.xlane.xlu0 %1062
          %v1064 = vmax.f32 %v906, %v908
          %1065 = vmax.xlane.f32.xlu0 %v1064
          %v1066 = vpop.xlane.xlu0 %1065
          %v1067 = vmax.f32 %v910, %v912
          %1068 = vmax.xlane.f32.xlu0 %v1067
          %v1069 = vpop.xlane.xlu0 %1068
          %v1070 = vmax.f32 %v916, %v918
          %1071 = vmax.xlane.f32.xlu0 %v1070
          %v1072 = vpop.xlane.xlu0 %1071
          %v1073 = vmax.f32 %v920, %v922
          %1074 = vmax.xlane.f32.xlu0 %v1073
          %v1075 = vpop.xlane.xlu0 %1074
          %v1076 = vmax.f32 %v926, %v928
          %1077 = vmax.xlane.f32.xlu0 %v1076
          %v1078 = vpop.xlane.xlu0 %1077
          %v1079 = vmax.f32 %v930, %v932
          %1080 = vmax.xlane.f32.xlu0 %v1079
          %v1081 = vpop.xlane.xlu0 %1080
          %v1082 = vmax.f32 %v936, %v938
          %1083 = vmax.xlane.f32.xlu0 %v1082
          %v1084 = vpop.xlane.xlu0 %1083
          %v1085 = vmax.f32 %v940, %v942
          %1086 = vmax.xlane.f32.xlu0 %v1085
          %v1087 = vpop.xlane.xlu0 %1086
          %v1088 = vmax.f32 %v946, %v948
          %1089 = vmax.xlane.f32.xlu0 %v1088
          %v1090 = vpop.xlane.xlu0 %1089
          %v1091 = vmax.f32 %v950, %v952
          %1092 = vmax.xlane.f32.xlu0 %v1091
          %v1093 = vpop.xlane.xlu0 %1092
          %v1094 = vmax.f32 %v956, %v958
          %1095 = vmax.xlane.f32.xlu0 %v1094
          %v1096 = vpop.xlane.xlu0 %1095
          %v1097 = vmax.f32 %v960, %v962
          %1098 = vmax.xlane.f32.xlu0 %v1097
          %v1099 = vpop.xlane.xlu0 %1098
          %v1100 = vmax.f32 %v966, %v968
          %1101 = vmax.xlane.f32.xlu0 %v1100
          %v1102 = vpop.xlane.xlu0 %1101
          %v1103 = vmax.f32 %v970, %v972
          %1104 = vmax.xlane.f32.xlu0 %v1103
          %v1105 = vpop.xlane.xlu0 %1104
          %v1106 = vmax.f32 %v978, %v1012
          %v1107 = vmax.f32 %v979, %v1015
          %v1108 = vmax.f32 %v980, %v1018
          %v1109 = vmax.f32 %v981, %v1021
          %v1110 = vmax.f32 %v982, %v1024
          %v1111 = vmax.f32 %v983, %v1027
          %v1112 = vmax.f32 %v984, %v1030
          %v1113 = vmax.f32 %v985, %v1033
          %v1114 = vmax.f32 %v986, %v1036
          %v1115 = vmax.f32 %v987, %v1039
          %v1116 = vmax.f32 %v988, %v1042
          %v1117 = vmax.f32 %v989, %v1045
          %v1118 = vmax.f32 %v990, %v1048
          %v1119 = vmax.f32 %v991, %v1051
          %v1120 = vmax.f32 %v992, %v1054
          %v1121 = vmax.f32 %v993, %v1057
          %v1122 = vmax.f32 %v994, %v1060
          %v1123 = vmax.f32 %v995, %v1063
          %v1124 = vmax.f32 %v996, %v1066
          %v1125 = vmax.f32 %v997, %v1069
          %v1126 = vmax.f32 %v998, %v1072
          %v1127 = vmax.f32 %v999, %v1075
          %v1128 = vmax.f32 %v1000, %v1078
          %v1129 = vmax.f32 %v1001, %v1081
          %v1130 = vmax.f32 %v1002, %v1084
          %v1131 = vmax.f32 %v1003, %v1087
          %v1132 = vmax.f32 %v1004, %v1090
          %v1133 = vmax.f32 %v1005, %v1093
          %v1134 = vmax.f32 %v1006, %v1096
          %v1135 = vmax.f32 %v1007, %v1099
          %v1136 = vmax.f32 %v1008, %v1102
          %v1137 = vmax.f32 %v1009, %v1105
          %v1138 = vsub.f32 %v978, %v1106
          %v1139 = vsub.f32 %v979, %v1107
          %v1140 = vsub.f32 %v980, %v1108
          %v1141 = vsub.f32 %v981, %v1109
          %v1142 = vsub.f32 %v982, %v1110
          %v1143 = vsub.f32 %v983, %v1111
          %v1144 = vsub.f32 %v984, %v1112
          %v1145 = vsub.f32 %v985, %v1113
          %v1146 = vsub.f32 %v986, %v1114
          %v1147 = vsub.f32 %v987, %v1115
          %v1148 = vsub.f32 %v988, %v1116
          %v1149 = vsub.f32 %v989, %v1117
          %v1150 = vsub.f32 %v990, %v1118
          %v1151 = vsub.f32 %v991, %v1119
          %v1152 = vsub.f32 %v992, %v1120
          %v1153 = vsub.f32 %v993, %v1121
          %v1154 = vsub.f32 %v994, %v1122
          %v1155 = vsub.f32 %v995, %v1123
          %v1156 = vsub.f32 %v996, %v1124
          %v1157 = vsub.f32 %v997, %v1125
          %v1158 = vsub.f32 %v998, %v1126
          %v1159 = vsub.f32 %v999, %v1127
          %v1160 = vsub.f32 %v1000, %v1128
          %v1161 = vsub.f32 %v1001, %v1129
          %v1162 = vsub.f32 %v1002, %v1130
          %v1163 = vsub.f32 %v1003, %v1131
          %v1164 = vsub.f32 %v1004, %v1132
          %v1165 = vsub.f32 %v1005, %v1133
          %v1166 = vsub.f32 %v1006, %v1134
          %v1167 = vsub.f32 %v1007, %v1135
          %v1168 = vsub.f32 %v1008, %v1136
          %v1169 = vsub.f32 %v1009, %v1137
          %v1170 = vmul.f32 %v1138, 1.442695
          %v1171 = vpow.pop %v1170
          %v1172 = vmul.f32 %v1139, 1.442695
          %v1173 = vpow.pop %v1172
          %v1174 = vmul.f32 %v1140, 1.442695
          %v1175 = vpow.pop %v1174
          %v1176 = vmul.f32 %v1141, 1.442695
          %v1177 = vpow.pop %v1176
          %v1178 = vmul.f32 %v1142, 1.442695
          %v1179 = vpow.pop %v1178
          %v1180 = vmul.f32 %v1143, 1.442695
          %v1181 = vpow.pop %v1180
          %v1182 = vmul.f32 %v1144, 1.442695
          %v1183 = vpow.pop %v1182
          %v1184 = vmul.f32 %v1145, 1.442695
          %v1185 = vpow.pop %v1184
          %v1186 = vmul.f32 %v1146, 1.442695
          %v1187 = vpow.pop %v1186
          %v1188 = vmul.f32 %v1147, 1.442695
          %v1189 = vpow.pop %v1188
          %v1190 = vmul.f32 %v1148, 1.442695
          %v1191 = vpow.pop %v1190
          %v1192 = vmul.f32 %v1149, 1.442695
          %v1193 = vpow.pop %v1192
          %v1194 = vmul.f32 %v1150, 1.442695
          %v1195 = vpow.pop %v1194
          %v1196 = vmul.f32 %v1151, 1.442695
          %v1197 = vpow.pop %v1196
          %v1198 = vmul.f32 %v1152, 1.442695
          %v1199 = vpow.pop %v1198
          %v1200 = vmul.f32 %v1153, 1.442695
          %v1201 = vpow.pop %v1200
          %v1202 = vmul.f32 %v1154, 1.442695
          %v1203 = vpow.pop %v1202
          %v1204 = vmul.f32 %v1155, 1.442695
          %v1205 = vpow.pop %v1204
          %v1206 = vmul.f32 %v1156, 1.442695
          %v1207 = vpow.pop %v1206
          %v1208 = vmul.f32 %v1157, 1.442695
          %v1209 = vpow.pop %v1208
          %v1210 = vmul.f32 %v1158, 1.442695
          %v1211 = vpow.pop %v1210
          %v1212 = vmul.f32 %v1159, 1.442695
          %v1213 = vpow.pop %v1212
          %v1214 = vmul.f32 %v1160, 1.442695
          %v1215 = vpow.pop %v1214
          %v1216 = vmul.f32 %v1161, 1.442695
          %v1217 = vpow.pop %v1216
          %v1218 = vmul.f32 %v1162, 1.442695
          %v1219 = vpow.pop %v1218
          %v1220 = vmul.f32 %v1163, 1.442695
          %v1221 = vpow.pop %v1220
          %v1222 = vmul.f32 %v1164, 1.442695
          %v1223 = vpow.pop %v1222
          %v1224 = vmul.f32 %v1165, 1.442695
          %v1225 = vpow.pop %v1224
          %v1226 = vmul.f32 %v1166, 1.442695
          %v1227 = vpow.pop %v1226
          %v1228 = vmul.f32 %v1167, 1.442695
          %v1229 = vpow.pop %v1228
          %v1230 = vmul.f32 %v1168, 1.442695
          %v1231 = vpow.pop %v1230
          %v1232 = vmul.f32 %v1169, 1.442695
          %v1233 = vpow.pop %v1232
          %1235 = vset.pattern.permute.xlu0 0
          %1236 = vperm.xlu0 %1235, %v1106
          %v1237 = vpop.permute.xlu0 %1236
          %1240 = vset.pattern.permute.xlu0 0
          %1241 = vperm.xlu0 %1240, %v1107
          %v1242 = vpop.permute.xlu0 %1241
          %1245 = vset.pattern.permute.xlu0 0
          %1246 = vperm.xlu0 %1245, %v1108
          %v1247 = vpop.permute.xlu0 %1246
          %1250 = vset.pattern.permute.xlu0 0
          %1251 = vperm.xlu0 %1250, %v1109
          %v1252 = vpop.permute.xlu0 %1251
          %1255 = vset.pattern.permute.xlu0 0
          %1256 = vperm.xlu0 %1255, %v1110
          %v1257 = vpop.permute.xlu0 %1256
          %1260 = vset.pattern.permute.xlu0 0
          %1261 = vperm.xlu0 %1260, %v1111
          %v1262 = vpop.permute.xlu0 %1261
          %1265 = vset.pattern.permute.xlu0 0
          %1266 = vperm.xlu0 %1265, %v1112
          %v1267 = vpop.permute.xlu0 %1266
          %1270 = vset.pattern.permute.xlu0 0
          %1271 = vperm.xlu0 %1270, %v1113
          %v1272 = vpop.permute.xlu0 %1271
          %1275 = vset.pattern.permute.xlu0 0
          %1276 = vperm.xlu0 %1275, %v1114
          %v1277 = vpop.permute.xlu0 %1276
          %1280 = vset.pattern.permute.xlu0 0
          %1281 = vperm.xlu0 %1280, %v1115
          %v1282 = vpop.permute.xlu0 %1281
          %1285 = vset.pattern.permute.xlu0 0
          %1286 = vperm.xlu0 %1285, %v1116
          %v1287 = vpop.permute.xlu0 %1286
          %1290 = vset.pattern.permute.xlu0 0
          %1291 = vperm.xlu0 %1290, %v1117
          %v1292 = vpop.permute.xlu0 %1291
          %1295 = vset.pattern.permute.xlu0 0
          %1296 = vperm.xlu0 %1295, %v1118
          %v1297 = vpop.permute.xlu0 %1296
          %1300 = vset.pattern.permute.xlu0 0
          %1301 = vperm.xlu0 %1300, %v1119
          %v1302 = vpop.permute.xlu0 %1301
          %1305 = vset.pattern.permute.xlu0 0
          %1306 = vperm.xlu0 %1305, %v1120
          %v1307 = vpop.permute.xlu0 %1306
          %1310 = vset.pattern.permute.xlu0 0
          %1311 = vperm.xlu0 %1310, %v1121
          %v1312 = vpop.permute.xlu0 %1311
          %1315 = vset.pattern.permute.xlu0 0
          %1316 = vperm.xlu0 %1315, %v1122
          %v1317 = vpop.permute.xlu0 %1316
          %1320 = vset.pattern.permute.xlu0 0
          %1321 = vperm.xlu0 %1320, %v1123
          %v1322 = vpop.permute.xlu0 %1321
          %1325 = vset.pattern.permute.xlu0 0
          %1326 = vperm.xlu0 %1325, %v1124
          %v1327 = vpop.permute.xlu0 %1326
          %1330 = vset.pattern.permute.xlu0 0
          %1331 = vperm.xlu0 %1330, %v1125
          %v1332 = vpop.permute.xlu0 %1331
          %1335 = vset.pattern.permute.xlu0 0
          %1336 = vperm.xlu0 %1335, %v1126
          %v1337 = vpop.permute.xlu0 %1336
          %1340 = vset.pattern.permute.xlu0 0
          %1341 = vperm.xlu0 %1340, %v1127
          %v1342 = vpop.permute.xlu0 %1341
          %1345 = vset.pattern.permute.xlu0 0
          %1346 = vperm.xlu0 %1345, %v1128
          %v1347 = vpop.permute.xlu0 %1346
          %1350 = vset.pattern.permute.xlu0 0
          %1351 = vperm.xlu0 %1350, %v1129
          %v1352 = vpop.permute.xlu0 %1351
          %1355 = vset.pattern.permute.xlu0 0
          %1356 = vperm.xlu0 %1355, %v1130
          %v1357 = vpop.permute.xlu0 %1356
          %1360 = vset.pattern.permute.xlu0 0
          %1361 = vperm.xlu0 %1360, %v1131
          %v1362 = vpop.permute.xlu0 %1361
          %1365 = vset.pattern.permute.xlu0 0
          %1366 = vperm.xlu0 %1365, %v1132
          %v1367 = vpop.permute.xlu0 %1366
          %1370 = vset.pattern.permute.xlu0 0
          %1371 = vperm.xlu0 %1370, %v1133
          %v1372 = vpop.permute.xlu0 %1371
          %1375 = vset.pattern.permute.xlu0 0
          %1376 = vperm.xlu0 %1375, %v1134
          %v1377 = vpop.permute.xlu0 %1376
          %1380 = vset.pattern.permute.xlu0 0
          %1381 = vperm.xlu0 %1380, %v1135
          %v1382 = vpop.permute.xlu0 %1381
          %1385 = vset.pattern.permute.xlu0 0
          %1386 = vperm.xlu0 %1385, %v1136
          %v1387 = vpop.permute.xlu0 %1386
          %1390 = vset.pattern.permute.xlu0 0
          %1391 = vperm.xlu0 %1390, %v1137
          %v1392 = vpop.permute.xlu0 %1391
          %v1394 = vsub.f32 %v816, %v1237
          %v1395 = vsub.f32 %v818, %v1237
          %v1396 = vsub.f32 %v820, %v1242
          %v1397 = vsub.f32 %v822, %v1242
          %v1398 = vsub.f32 %v826, %v1247
          %v1399 = vsub.f32 %v828, %v1247
          %v1400 = vsub.f32 %v830, %v1252
          %v1401 = vsub.f32 %v832, %v1252
          %v1402 = vsub.f32 %v836, %v1257
          %v1403 = vsub.f32 %v838, %v1257
          %v1404 = vsub.f32 %v840, %v1262
          %v1405 = vsub.f32 %v842, %v1262
          %v1406 = vsub.f32 %v846, %v1267
          %v1407 = vsub.f32 %v848, %v1267
          %v1408 = vsub.f32 %v850, %v1272
          %v1409 = vsub.f32 %v852, %v1272
          %v1410 = vsub.f32 %v856, %v1277
          %v1411 = vsub.f32 %v858, %v1277
          %v1412 = vsub.f32 %v860, %v1282
          %v1413 = vsub.f32 %v862, %v1282
          %v1414 = vsub.f32 %v866, %v1287
          %v1415 = vsub.f32 %v868, %v1287
          %v1416 = vsub.f32 %v870, %v1292
          %v1417 = vsub.f32 %v872, %v1292
          %v1418 = vsub.f32 %v876, %v1297
          %v1419 = vsub.f32 %v878, %v1297
          %v1420 = vsub.f32 %v880, %v1302
          %v1421 = vsub.f32 %v882, %v1302
          %v1422 = vsub.f32 %v886, %v1307
          %v1423 = vsub.f32 %v888, %v1307
          %v1424 = vsub.f32 %v890, %v1312
          %v1425 = vsub.f32 %v892, %v1312
          %v1426 = vsub.f32 %v896, %v1317
          %v1427 = vsub.f32 %v898, %v1317
          %v1428 = vsub.f32 %v900, %v1322
          %v1429 = vsub.f32 %v902, %v1322
          %v1430 = vsub.f32 %v906, %v1327
          %v1431 = vsub.f32 %v908, %v1327
          %v1432 = vsub.f32 %v910, %v1332
          %v1433 = vsub.f32 %v912, %v1332
          %v1434 = vsub.f32 %v916, %v1337
          %v1435 = vsub.f32 %v918, %v1337
          %v1436 = vsub.f32 %v920, %v1342
          %v1437 = vsub.f32 %v922, %v1342
          %v1438 = vsub.f32 %v926, %v1347
          %v1439 = vsub.f32 %v928, %v1347
          %v1440 = vsub.f32 %v930, %v1352
          %v1441 = vsub.f32 %v932, %v1352
          %v1442 = vsub.f32 %v936, %v1357
          %v1443 = vsub.f32 %v938, %v1357
          %v1444 = vsub.f32 %v940, %v1362
          %v1445 = vsub.f32 %v942, %v1362
          %v1446 = vsub.f32 %v946, %v1367
          %v1447 = vsub.f32 %v948, %v1367
          %v1448 = vsub.f32 %v950, %v1372
          %v1449 = vsub.f32 %v952, %v1372
          %v1450 = vsub.f32 %v956, %v1377
          %v1451 = vsub.f32 %v958, %v1377
          %v1452 = vsub.f32 %v960, %v1382
          %v1453 = vsub.f32 %v962, %v1382
          %v1454 = vsub.f32 %v966, %v1387
          %v1455 = vsub.f32 %v968, %v1387
          %v1456 = vsub.f32 %v970, %v1392
          %v1457 = vsub.f32 %v972, %v1392
          %v1458 = vpack.c.bf16 %v1396, %v1394
          %v1459 = vpack.c.bf16 %v1397, %v1395
          %v1460 = vpack.c.bf16 %v1400, %v1398
          %v1461 = vpack.c.bf16 %v1401, %v1399
          %v1462 = vpack.c.bf16 %v1404, %v1402
          %v1463 = vpack.c.bf16 %v1405, %v1403
          %v1464 = vpack.c.bf16 %v1408, %v1406
          %v1465 = vpack.c.bf16 %v1409, %v1407
          %v1466 = vpack.c.bf16 %v1412, %v1410
          %v1467 = vpack.c.bf16 %v1413, %v1411
          %v1468 = vpack.c.bf16 %v1416, %v1414
          %v1469 = vpack.c.bf16 %v1417, %v1415
          %v1470 = vpack.c.bf16 %v1420, %v1418
          %v1471 = vpack.c.bf16 %v1421, %v1419
          %v1472 = vpack.c.bf16 %v1424, %v1422
          %v1473 = vpack.c.bf16 %v1425, %v1423
          %v1474 = vpack.c.bf16 %v1428, %v1426
          %v1475 = vpack.c.bf16 %v1429, %v1427
          %v1476 = vpack.c.bf16 %v1432, %v1430
          %v1477 = vpack.c.bf16 %v1433, %v1431
          %v1478 = vpack.c.bf16 %v1436, %v1434
          %v1479 = vpack.c.bf16 %v1437, %v1435
          %v1480 = vpack.c.bf16 %v1440, %v1438
          %v1481 = vpack.c.bf16 %v1441, %v1439
          %v1482 = vpack.c.bf16 %v1444, %v1442
          %v1483 = vpack.c.bf16 %v1445, %v1443
          %v1484 = vpack.c.bf16 %v1448, %v1446
          %v1485 = vpack.c.bf16 %v1449, %v1447
          %v1486 = vpack.c.bf16 %v1452, %v1450
          %v1487 = vpack.c.bf16 %v1453, %v1451
          %v1488 = vpack.c.bf16 %v1456, %v1454
          %v1489 = vpack.c.bf16 %v1457, %v1455
          %v1491 = vmul.bf16 %v1458, 1069105081
          %v1492 = vpow.bf16.pop %v1491
          %v1494 = vmul.bf16 %v1459, 1069105081
          %v1495 = vpow.bf16.pop %v1494
          %v1497 = vmul.bf16 %v1460, 1069105081
          %v1498 = vpow.bf16.pop %v1497
          %v1500 = vmul.bf16 %v1461, 1069105081
          %v1501 = vpow.bf16.pop %v1500
          %v1503 = vmul.bf16 %v1462, 1069105081
          %v1504 = vpow.bf16.pop %v1503
          %v1506 = vmul.bf16 %v1463, 1069105081
          %v1507 = vpow.bf16.pop %v1506
          %v1509 = vmul.bf16 %v1464, 1069105081
          %v1510 = vpow.bf16.pop %v1509
          %v1512 = vmul.bf16 %v1465, 1069105081
          %v1513 = vpow.bf16.pop %v1512
          %v1515 = vmul.bf16 %v1466, 1069105081
          %v1516 = vpow.bf16.pop %v1515
          %v1518 = vmul.bf16 %v1467, 1069105081
          %v1519 = vpow.bf16.pop %v1518
          %v1521 = vmul.bf16 %v1468, 1069105081
          %v1522 = vpow.bf16.pop %v1521
          %v1524 = vmul.bf16 %v1469, 1069105081
          %v1525 = vpow.bf16.pop %v1524
          %v1527 = vmul.bf16 %v1470, 1069105081
          %v1528 = vpow.bf16.pop %v1527
          %v1530 = vmul.bf16 %v1471, 1069105081
          %v1531 = vpow.bf16.pop %v1530
          %v1533 = vmul.bf16 %v1472, 1069105081
          %v1534 = vpow.bf16.pop %v1533
          %v1536 = vmul.bf16 %v1473, 1069105081
          %v1537 = vpow.bf16.pop %v1536
          %v1539 = vmul.bf16 %v1474, 1069105081
          %v1540 = vpow.bf16.pop %v1539
          %v1542 = vmul.bf16 %v1475, 1069105081
          %v1543 = vpow.bf16.pop %v1542
          %v1545 = vmul.bf16 %v1476, 1069105081
          %v1546 = vpow.bf16.pop %v1545
          %v1548 = vmul.bf16 %v1477, 1069105081
          %v1549 = vpow.bf16.pop %v1548
          %v1551 = vmul.bf16 %v1478, 1069105081
          %v1552 = vpow.bf16.pop %v1551
          %v1554 = vmul.bf16 %v1479, 1069105081
          %v1555 = vpow.bf16.pop %v1554
          %v1557 = vmul.bf16 %v1480, 1069105081
          %v1558 = vpow.bf16.pop %v1557
          %v1560 = vmul.bf16 %v1481, 1069105081
          %v1561 = vpow.bf16.pop %v1560
          %v1563 = vmul.bf16 %v1482, 1069105081
          %v1564 = vpow.bf16.pop %v1563
          %v1566 = vmul.bf16 %v1483, 1069105081
          %v1567 = vpow.bf16.pop %v1566
          %v1569 = vmul.bf16 %v1484, 1069105081
          %v1570 = vpow.bf16.pop %v1569
          %v1572 = vmul.bf16 %v1485, 1069105081
          %v1573 = vpow.bf16.pop %v1572
          %v1575 = vmul.bf16 %v1486, 1069105081
          %v1576 = vpow.bf16.pop %v1575
          %v1578 = vmul.bf16 %v1487, 1069105081
          %v1579 = vpow.bf16.pop %v1578
          %v1581 = vmul.bf16 %v1488, 1069105081
          %v1582 = vpow.bf16.pop %v1581
          %v1584 = vmul.bf16 %v1489, 1069105081
          %v1585 = vpow.bf16.pop %v1584
          %v1586 = vld [vmem:[#allocation4] sm:$0xff]
          %v1587 = vld [vmem:[#allocation4 + $0x8] sm:$0xff]
          %v1588 = vld [vmem:[#allocation4 + $0x10] sm:$0xff]
          %v1589 = vld [vmem:[#allocation4 + $0x18] sm:$0xff]
          %v1590 = vld [vmem:[#allocation4 + $0x20] sm:$0xff]
          %v1591 = vld [vmem:[#allocation4 + $0x28] sm:$0xff]
          %v1592 = vld [vmem:[#allocation4 + $0x30] sm:$0xff]
          %v1593 = vld [vmem:[#allocation4 + $0x38] sm:$0xff]
          %v1594 = vld [vmem:[#allocation4 + $0x40] sm:$0xff]
          %v1595 = vld [vmem:[#allocation4 + $0x48] sm:$0xff]
          %v1596 = vld [vmem:[#allocation4 + $0x50] sm:$0xff]
          %v1597 = vld [vmem:[#allocation4 + $0x58] sm:$0xff]
          %v1598 = vld [vmem:[#allocation4 + $0x60] sm:$0xff]
          %v1599 = vld [vmem:[#allocation4 + $0x68] sm:$0xff]
          %v1600 = vld [vmem:[#allocation4 + $0x70] sm:$0xff]
          %v1601 = vld [vmem:[#allocation4 + $0x78] sm:$0xff]
          %v1602 = vld [vmem:[#allocation4 + $0x80] sm:$0xff]
          %v1603 = vld [vmem:[#allocation4 + $0x88] sm:$0xff]
          %v1604 = vld [vmem:[#allocation4 + $0x90] sm:$0xff]
          %v1605 = vld [vmem:[#allocation4 + $0x98] sm:$0xff]
          %v1606 = vld [vmem:[#allocation4 + $0xa0] sm:$0xff]
          %v1607 = vld [vmem:[#allocation4 + $0xa8] sm:$0xff]
          %v1608 = vld [vmem:[#allocation4 + $0xb0] sm:$0xff]
          %v1609 = vld [vmem:[#allocation4 + $0xb8] sm:$0xff]
          %v1610 = vld [vmem:[#allocation4 + $0xc0] sm:$0xff]
          %v1611 = vld [vmem:[#allocation4 + $0xc8] sm:$0xff]
          %v1612 = vld [vmem:[#allocation4 + $0xd0] sm:$0xff]
          %v1613 = vld [vmem:[#allocation4 + $0xd8] sm:$0xff]
          %v1614 = vld [vmem:[#allocation4 + $0xe0] sm:$0xff]
          %v1615 = vld [vmem:[#allocation4 + $0xe8] sm:$0xff]
          %v1616 = vld [vmem:[#allocation4 + $0xf0] sm:$0xff]
          %v1617 = vld [vmem:[#allocation4 + $0xf8] sm:$0xff]
          %1619 = vset.pattern.permute.xlu0 0
          %1620 = vperm.xlu0 %1619, %v1171
          %v1621 = vpop.permute.xlu0 %1620
          %1624 = vset.pattern.permute.xlu0 0
          %1625 = vperm.xlu0 %1624, %v1173
          %v1626 = vpop.permute.xlu0 %1625
          %1629 = vset.pattern.permute.xlu0 0
          %1630 = vperm.xlu0 %1629, %v1175
          %v1631 = vpop.permute.xlu0 %1630
          %1634 = vset.pattern.permute.xlu0 0
          %1635 = vperm.xlu0 %1634, %v1177
          %v1636 = vpop.permute.xlu0 %1635
          %1639 = vset.pattern.permute.xlu0 0
          %1640 = vperm.xlu0 %1639, %v1179
          %v1641 = vpop.permute.xlu0 %1640
          %1644 = vset.pattern.permute.xlu0 0
          %1645 = vperm.xlu0 %1644, %v1181
          %v1646 = vpop.permute.xlu0 %1645
          %1649 = vset.pattern.permute.xlu0 0
          %1650 = vperm.xlu0 %1649, %v1183
          %v1651 = vpop.permute.xlu0 %1650
          %1654 = vset.pattern.permute.xlu0 0
          %1655 = vperm.xlu0 %1654, %v1185
          %v1656 = vpop.permute.xlu0 %1655
          %1659 = vset.pattern.permute.xlu0 0
          %1660 = vperm.xlu0 %1659, %v1187
          %v1661 = vpop.permute.xlu0 %1660
          %1664 = vset.pattern.permute.xlu0 0
          %1665 = vperm.xlu0 %1664, %v1189
          %v1666 = vpop.permute.xlu0 %1665
          %1669 = vset.pattern.permute.xlu0 0
          %1670 = vperm.xlu0 %1669, %v1191
          %v1671 = vpop.permute.xlu0 %1670
          %1674 = vset.pattern.permute.xlu0 0
          %1675 = vperm.xlu0 %1674, %v1193
          %v1676 = vpop.permute.xlu0 %1675
          %1679 = vset.pattern.permute.xlu0 0
          %1680 = vperm.xlu0 %1679, %v1195
          %v1681 = vpop.permute.xlu0 %1680
          %1684 = vset.pattern.permute.xlu0 0
          %1685 = vperm.xlu0 %1684, %v1197
          %v1686 = vpop.permute.xlu0 %1685
          %1689 = vset.pattern.permute.xlu0 0
          %1690 = vperm.xlu0 %1689, %v1199
          %v1691 = vpop.permute.xlu0 %1690
          %1694 = vset.pattern.permute.xlu0 0
          %1695 = vperm.xlu0 %1694, %v1201
          %v1696 = vpop.permute.xlu0 %1695
          %1699 = vset.pattern.permute.xlu0 0
          %1700 = vperm.xlu0 %1699, %v1203
          %v1701 = vpop.permute.xlu0 %1700
          %1704 = vset.pattern.permute.xlu0 0
          %1705 = vperm.xlu0 %1704, %v1205
          %v1706 = vpop.permute.xlu0 %1705
          %1709 = vset.pattern.permute.xlu0 0
          %1710 = vperm.xlu0 %1709, %v1207
          %v1711 = vpop.permute.xlu0 %1710
          %1714 = vset.pattern.permute.xlu0 0
          %1715 = vperm.xlu0 %1714, %v1209
          %v1716 = vpop.permute.xlu0 %1715
          %1719 = vset.pattern.permute.xlu0 0
          %1720 = vperm.xlu0 %1719, %v1211
          %v1721 = vpop.permute.xlu0 %1720
          %1724 = vset.pattern.permute.xlu0 0
          %1725 = vperm.xlu0 %1724, %v1213
          %v1726 = vpop.permute.xlu0 %1725
          %1729 = vset.pattern.permute.xlu0 0
          %1730 = vperm.xlu0 %1729, %v1215
          %v1731 = vpop.permute.xlu0 %1730
          %1734 = vset.pattern.permute.xlu0 0
          %1735 = vperm.xlu0 %1734, %v1217
          %v1736 = vpop.permute.xlu0 %1735
          %1739 = vset.pattern.permute.xlu0 0
          %1740 = vperm.xlu0 %1739, %v1219
          %v1741 = vpop.permute.xlu0 %1740
          %1744 = vset.pattern.permute.xlu0 0
          %1745 = vperm.xlu0 %1744, %v1221
          %v1746 = vpop.permute.xlu0 %1745
          %1749 = vset.pattern.permute.xlu0 0
          %1750 = vperm.xlu0 %1749, %v1223
          %v1751 = vpop.permute.xlu0 %1750
          %1754 = vset.pattern.permute.xlu0 0
          %1755 = vperm.xlu0 %1754, %v1225
          %v1756 = vpop.permute.xlu0 %1755
          %1759 = vset.pattern.permute.xlu0 0
          %1760 = vperm.xlu0 %1759, %v1227
          %v1761 = vpop.permute.xlu0 %1760
          %1764 = vset.pattern.permute.xlu0 0
          %1765 = vperm.xlu0 %1764, %v1229
          %v1766 = vpop.permute.xlu0 %1765
          %1769 = vset.pattern.permute.xlu0 0
          %1770 = vperm.xlu0 %1769, %v1231
          %v1771 = vpop.permute.xlu0 %1770
          %1774 = vset.pattern.permute.xlu0 0
          %1775 = vperm.xlu0 %1774, %v1233
          %v1776 = vpop.permute.xlu0 %1775
          %v1778 = vmul.f32 %v1621, %v1586
          %v1779 = vmul.f32 %v1626, %v1587
          %v1780 = vmul.f32 %v1631, %v1588
          %v1781 = vmul.f32 %v1636, %v1589
          %v1782 = vmul.f32 %v1641, %v1590
          %v1783 = vmul.f32 %v1646, %v1591
          %v1784 = vmul.f32 %v1651, %v1592
          %v1785 = vmul.f32 %v1656, %v1593
          %v1786 = vmul.f32 %v1661, %v1594
          %v1787 = vmul.f32 %v1666, %v1595
          %v1788 = vmul.f32 %v1671, %v1596
          %v1789 = vmul.f32 %v1676, %v1597
          %v1790 = vmul.f32 %v1681, %v1598
          %v1791 = vmul.f32 %v1686, %v1599
          %v1792 = vmul.f32 %v1691, %v1600
          %v1793 = vmul.f32 %v1696, %v1601
          %v1794 = vmul.f32 %v1701, %v1602
          %v1795 = vmul.f32 %v1706, %v1603
          %v1796 = vmul.f32 %v1711, %v1604
          %v1797 = vmul.f32 %v1716, %v1605
          %v1798 = vmul.f32 %v1721, %v1606
          %v1799 = vmul.f32 %v1726, %v1607
          %v1800 = vmul.f32 %v1731, %v1608
          %v1801 = vmul.f32 %v1736, %v1609
          %v1802 = vmul.f32 %v1741, %v1610
          %v1803 = vmul.f32 %v1746, %v1611
          %v1804 = vmul.f32 %v1751, %v1612
          %v1805 = vmul.f32 %v1756, %v1613
          %v1806 = vmul.f32 %v1761, %v1614
          %v1807 = vmul.f32 %v1766, %v1615
          %v1808 = vmul.f32 %v1771, %v1616
          %v1809 = vmul.f32 %v1776, %v1617
          %v1842 = vunpack.c.l.b16 %v580
          %v1843 = vunpack.c.l.b16 %v581
          %v1844 = vunpack.c.l.b16 %v582
          %v1845 = vunpack.c.l.b16 %v583
          %v1846 = vunpack.c.l.b16 %v584
          %v1847 = vunpack.c.l.b16 %v585
          %v1848 = vunpack.c.l.b16 %v586
          %v1849 = vunpack.c.l.b16 %v587
          %v1850 = vunpack.c.l.b16 %v588
          %v1851 = vunpack.c.l.b16 %v589
          %v1852 = vunpack.c.l.b16 %v590
          %v1853 = vunpack.c.l.b16 %v591
          %v1854 = vunpack.c.l.b16 %v592
          %v1855 = vunpack.c.l.b16 %v593
          %v1856 = vunpack.c.l.b16 %v594
          %v1857 = vunpack.c.l.b16 %v595
          %v1858 = vunpack.c.l.b16 %v596
          %v1859 = vunpack.c.l.b16 %v597
          %v1860 = vunpack.c.l.b16 %v598
          %v1861 = vunpack.c.l.b16 %v599
          %v1862 = vunpack.c.l.b16 %v600
          %v1863 = vunpack.c.l.b16 %v601
          %v1864 = vunpack.c.l.b16 %v602
          %v1865 = vunpack.c.l.b16 %v603
          %v1866 = vunpack.c.l.b16 %v604
          %v1867 = vunpack.c.l.b16 %v605
          %v1868 = vunpack.c.l.b16 %v606
          %v1869 = vunpack.c.l.b16 %v607
          %v1870 = vunpack.c.l.b16 %v608
          %v1871 = vunpack.c.l.b16 %v609
          %v1872 = vunpack.c.l.b16 %v610
          %v1873 = vunpack.c.l.b16 %v611
          %v1874 = vpack.c.b16 %v1843, %v1842
          %v1875 = vpack.c.b16 %v1845, %v1844
          %v1876 = vpack.c.b16 %v1847, %v1846
          %v1877 = vpack.c.b16 %v1849, %v1848
          %v1878 = vpack.c.b16 %v1851, %v1850
          %v1879 = vpack.c.b16 %v1853, %v1852
          %v1880 = vpack.c.b16 %v1855, %v1854
          %v1881 = vpack.c.b16 %v1857, %v1856
          %v1882 = vpack.c.b16 %v1859, %v1858
          %v1883 = vpack.c.b16 %v1861, %v1860
          %v1884 = vpack.c.b16 %v1863, %v1862
          %v1885 = vpack.c.b16 %v1865, %v1864
          %v1886 = vpack.c.b16 %v1867, %v1866
          %v1887 = vpack.c.b16 %v1869, %v1868
          %v1888 = vpack.c.b16 %v1871, %v1870
          %v1889 = vpack.c.b16 %v1873, %v1872
          %1906 = vmatprep.subr.bf16.mxu0 0
          %1907 = vmatpush1.bf16.msra.mxu0 %v1881
          %1908 = vmatprep.subr.bf16.mxu0 0
          %1909 = vmatpush1.bf16.msra.mxu0 %v1880
          %1910 = vmatprep.subr.bf16.mxu0 0
          %1911 = vmatpush1.bf16.msra.mxu0 %v1879
          %1912 = vmatprep.subr.bf16.mxu0 0
          %1913 = vmatpush1.bf16.msra.mxu0 %v1878
          %1914 = vmatprep.subr.bf16.mxu0 0
          %1915 = vmatpush1.bf16.msra.mxu0 %v1877
          %1916 = vmatprep.subr.bf16.mxu0 0
          %1917 = vmatpush1.bf16.msra.mxu0 %v1876
          %1918 = vmatprep.subr.bf16.mxu0 0
          %1919 = vmatpush1.bf16.msra.mxu0 %v1875
          %1920 = vmatprep.subr.bf16.mxu0 0
          %1921 = vmatpush1.bf16.msra.mxu0 %v1874
          %1922 = vmatprep.subr.bf16.mxu0 0
          %1923 = vmatpush2.bf16.msra.mxu0 %v1889
          %1924 = vmatprep.subr.bf16.mxu0 0
          %1925 = vmatpush2.bf16.msra.mxu0 %v1888
          %1926 = vmatprep.subr.bf16.mxu0 0
          %1927 = vmatpush2.bf16.msra.mxu0 %v1887
          %1928 = vmatprep.subr.bf16.mxu0 0
          %1929 = vmatpush2.bf16.msra.mxu0 %v1886
          %1930 = vmatprep.subr.bf16.mxu0 0
          %1931 = vmatpush2.bf16.msra.mxu0 %v1885
          %1932 = vmatprep.subr.bf16.mxu0 0
          %1933 = vmatpush2.bf16.msra.mxu0 %v1884
          %1934 = vmatprep.subr.bf16.mxu0 0
          %1935 = vmatpush2.bf16.msra.mxu0 %v1883
          %1936 = vmatprep.subr.bf16.mxu0 0
          %1937 = vmatpush2.bf16.msra.mxu0 %v1882
          %1938 = vmatprep.mubr.bf16.mxu0 %v1495
          %1939 = vmatmul.mubr.bf16.gmra.mxu0 %v1492
          %v1940 = vpop.f32.mrf.mxu0
          %v1941 = vadd.f32 0.0, %v1940
          %v1942 = vpop.f32.mrf.mxu0
          %v1943 = vpop.f32.mrf.mxu0
          %v1944 = vadd.f32 0.0, %v1943
          %v1945 = vpop.f32.mrf.mxu0
          %1946 = vmatprep.mubr.bf16.mxu0 %v1501
          %1947 = vmatmul.mubr.bf16.gmra.mxu0 %v1498
          %v1948 = vpop.f32.mrf.mxu0
          %v1949 = vadd.f32 0.0, %v1948
          %v1950 = vpop.f32.mrf.mxu0
          %v1951 = vpop.f32.mrf.mxu0
          %v1952 = vadd.f32 0.0, %v1951
          %v1953 = vpop.f32.mrf.mxu0
          %1954 = vmatprep.mubr.bf16.mxu0 %v1507
          %1955 = vmatmul.mubr.bf16.gmra.mxu0 %v1504
          %v1956 = vpop.f32.mrf.mxu0
          %v1957 = vadd.f32 0.0, %v1956
          %v1958 = vpop.f32.mrf.mxu0
          %v1959 = vpop.f32.mrf.mxu0
          %v1960 = vadd.f32 0.0, %v1959
          %v1961 = vpop.f32.mrf.mxu0
          %1962 = vmatprep.mubr.bf16.mxu0 %v1513
          %1963 = vmatmul.mubr.bf16.gmra.mxu0 %v1510
          %v1964 = vpop.f32.mrf.mxu0
          %v1965 = vadd.f32 0.0, %v1964
          %v1966 = vpop.f32.mrf.mxu0
          %v1967 = vpop.f32.mrf.mxu0
          %v1968 = vadd.f32 0.0, %v1967
          %v1969 = vpop.f32.mrf.mxu0
          %1970 = vmatprep.mubr.bf16.mxu0 %v1519
          %1971 = vmatmul.mubr.bf16.gmra.mxu0 %v1516
          %v1972 = vpop.f32.mrf.mxu0
          %v1973 = vadd.f32 0.0, %v1972
          %v1974 = vpop.f32.mrf.mxu0
          %v1975 = vpop.f32.mrf.mxu0
          %v1976 = vadd.f32 0.0, %v1975
          %v1977 = vpop.f32.mrf.mxu0
          %1978 = vmatprep.mubr.bf16.mxu0 %v1525
          %1979 = vmatmul.mubr.bf16.gmra.mxu0 %v1522
          %v1980 = vpop.f32.mrf.mxu0
          %v1981 = vadd.f32 0.0, %v1980
          %v1982 = vpop.f32.mrf.mxu0
          %v1983 = vpop.f32.mrf.mxu0
          %v1984 = vadd.f32 0.0, %v1983
          %v1985 = vpop.f32.mrf.mxu0
          %1986 = vmatprep.mubr.bf16.mxu0 %v1531
          %1987 = vmatmul.mubr.bf16.gmra.mxu0 %v1528
          %v1988 = vpop.f32.mrf.mxu0
          %v1989 = vadd.f32 0.0, %v1988
          %v1990 = vpop.f32.mrf.mxu0
          %v1991 = vpop.f32.mrf.mxu0
          %v1992 = vadd.f32 0.0, %v1991
          %v1993 = vpop.f32.mrf.mxu0
          %1994 = vmatprep.mubr.bf16.mxu0 %v1537
          %1995 = vmatmul.mubr.bf16.gmra.mxu0 %v1534
          %v1996 = vpop.f32.mrf.mxu0
          %v1997 = vadd.f32 0.0, %v1996
          %v1998 = vpop.f32.mrf.mxu0
          %v1999 = vpop.f32.mrf.mxu0
          %v2000 = vadd.f32 0.0, %v1999
          %v2001 = vpop.f32.mrf.mxu0
          %2002 = vmatprep.mubr.bf16.mxu0 %v1543
          %2003 = vmatmul.mubr.bf16.gmra.mxu0 %v1540
          %v2004 = vpop.f32.mrf.mxu0
          %v2005 = vadd.f32 0.0, %v2004
          %v2006 = vpop.f32.mrf.mxu0
          %v2007 = vpop.f32.mrf.mxu0
          %v2008 = vadd.f32 0.0, %v2007
          %v2009 = vpop.f32.mrf.mxu0
          %2010 = vmatprep.mubr.bf16.mxu0 %v1549
          %2011 = vmatmul.mubr.bf16.gmra.mxu0 %v1546
          %v2012 = vpop.f32.mrf.mxu0
          %v2013 = vadd.f32 0.0, %v2012
          %v2014 = vpop.f32.mrf.mxu0
          %v2015 = vpop.f32.mrf.mxu0
          %v2016 = vadd.f32 0.0, %v2015
          %v2017 = vpop.f32.mrf.mxu0
          %2018 = vmatprep.mubr.bf16.mxu0 %v1555
          %2019 = vmatmul.mubr.bf16.gmra.mxu0 %v1552
          %v2020 = vpop.f32.mrf.mxu0
          %v2021 = vadd.f32 0.0, %v2020
          %v2022 = vpop.f32.mrf.mxu0
          %v2023 = vpop.f32.mrf.mxu0
          %v2024 = vadd.f32 0.0, %v2023
          %v2025 = vpop.f32.mrf.mxu0
          %2026 = vmatprep.mubr.bf16.mxu0 %v1561
          %2027 = vmatmul.mubr.bf16.gmra.mxu0 %v1558
          %v2028 = vpop.f32.mrf.mxu0
          %v2029 = vadd.f32 0.0, %v2028
          %v2030 = vpop.f32.mrf.mxu0
          %v2031 = vpop.f32.mrf.mxu0
          %v2032 = vadd.f32 0.0, %v2031
          %v2033 = vpop.f32.mrf.mxu0
          %2034 = vmatprep.mubr.bf16.mxu0 %v1567
          %2035 = vmatmul.mubr.bf16.gmra.mxu0 %v1564
          %v2036 = vpop.f32.mrf.mxu0
          %v2037 = vadd.f32 0.0, %v2036
          %v2038 = vpop.f32.mrf.mxu0
          %v2039 = vpop.f32.mrf.mxu0
          %v2040 = vadd.f32 0.0, %v2039
          %v2041 = vpop.f32.mrf.mxu0
          %2042 = vmatprep.mubr.bf16.mxu0 %v1573
          %2043 = vmatmul.mubr.bf16.gmra.mxu0 %v1570
          %v2044 = vpop.f32.mrf.mxu0
          %v2045 = vadd.f32 0.0, %v2044
          %v2046 = vpop.f32.mrf.mxu0
          %v2047 = vpop.f32.mrf.mxu0
          %v2048 = vadd.f32 0.0, %v2047
          %v2049 = vpop.f32.mrf.mxu0
          %2050 = vmatprep.mubr.bf16.mxu0 %v1579
          %2051 = vmatmul.mubr.bf16.gmra.mxu0 %v1576
          %v2052 = vpop.f32.mrf.mxu0
          %v2053 = vadd.f32 0.0, %v2052
          %v2054 = vpop.f32.mrf.mxu0
          %v2055 = vpop.f32.mrf.mxu0
          %v2056 = vadd.f32 0.0, %v2055
          %v2057 = vpop.f32.mrf.mxu0
          %2058 = vmatprep.mubr.bf16.mxu0 %v1585
          %2059 = vmatmul.mubr.bf16.gmra.mxu0 %v1582
          %v2060 = vpop.f32.mrf.mxu0
          %v2061 = vadd.f32 0.0, %v2060
          %v2062 = vpop.f32.mrf.mxu0
          %v2063 = vpop.f32.mrf.mxu0
          %v2064 = vadd.f32 0.0, %v2063
          %v2065 = vpop.f32.mrf.mxu0
          %2066 = vdwg.mxu0
          %v2067 = vadd.f32 %v1778, %v1941
          %v2068 = vadd.f32 %v1779, %v1944
          %v2069 = vadd.f32 %v1780, %v1949
          %v2070 = vadd.f32 %v1781, %v1952
          %v2071 = vadd.f32 %v1782, %v1957
          %v2072 = vadd.f32 %v1783, %v1960
          %v2073 = vadd.f32 %v1784, %v1965
          %v2074 = vadd.f32 %v1785, %v1968
          %v2075 = vadd.f32 %v1786, %v1973
          %v2076 = vadd.f32 %v1787, %v1976
          %v2077 = vadd.f32 %v1788, %v1981
          %v2078 = vadd.f32 %v1789, %v1984
          %v2079 = vadd.f32 %v1790, %v1989
          %v2080 = vadd.f32 %v1791, %v1992
          %v2081 = vadd.f32 %v1792, %v1997
          %v2082 = vadd.f32 %v1793, %v2000
          %v2083 = vadd.f32 %v1794, %v2005
          %v2084 = vadd.f32 %v1795, %v2008
          %v2085 = vadd.f32 %v1796, %v2013
          %v2086 = vadd.f32 %v1797, %v2016
          %v2087 = vadd.f32 %v1798, %v2021
          %v2088 = vadd.f32 %v1799, %v2024
          %v2089 = vadd.f32 %v1800, %v2029
          %v2090 = vadd.f32 %v1801, %v2032
          %v2091 = vadd.f32 %v1802, %v2037
          %v2092 = vadd.f32 %v1803, %v2040
          %v2093 = vadd.f32 %v1804, %v2045
          %v2094 = vadd.f32 %v1805, %v2048
          %v2095 = vadd.f32 %v1806, %v2053
          %v2096 = vadd.f32 %v1807, %v2056
          %v2097 = vadd.f32 %v1808, %v2061
          %v2098 = vadd.f32 %v1809, %v2064
          %2099 = vst [vmem:[#allocation4] sm:$0xff] %v2067
          %2100 = vst [vmem:[#allocation4 + $0x8] sm:$0xff] %v2068
          %2101 = vst [vmem:[#allocation4 + $0x10] sm:$0xff] %v2069
          %2102 = vst [vmem:[#allocation4 + $0x18] sm:$0xff] %v2070
          %2103 = vst [vmem:[#allocation4 + $0x20] sm:$0xff] %v2071
          %2104 = vst [vmem:[#allocation4 + $0x28] sm:$0xff] %v2072
          %2105 = vst [vmem:[#allocation4 + $0x30] sm:$0xff] %v2073
          %2106 = vst [vmem:[#allocation4 + $0x38] sm:$0xff] %v2074
          %2107 = vst [vmem:[#allocation4 + $0x40] sm:$0xff] %v2075
          %2108 = vst [vmem:[#allocation4 + $0x48] sm:$0xff] %v2076
          %2109 = vst [vmem:[#allocation4 + $0x50] sm:$0xff] %v2077
          %2110 = vst [vmem:[#allocation4 + $0x58] sm:$0xff] %v2078
          %2111 = vst [vmem:[#allocation4 + $0x60] sm:$0xff] %v2079
          %2112 = vst [vmem:[#allocation4 + $0x68] sm:$0xff] %v2080
          %2113 = vst [vmem:[#allocation4 + $0x70] sm:$0xff] %v2081
          %2114 = vst [vmem:[#allocation4 + $0x78] sm:$0xff] %v2082
          %2115 = vst [vmem:[#allocation4 + $0x80] sm:$0xff] %v2083
          %2116 = vst [vmem:[#allocation4 + $0x88] sm:$0xff] %v2084
          %2117 = vst [vmem:[#allocation4 + $0x90] sm:$0xff] %v2085
          %2118 = vst [vmem:[#allocation4 + $0x98] sm:$0xff] %v2086
          %2119 = vst [vmem:[#allocation4 + $0xa0] sm:$0xff] %v2087
          %2120 = vst [vmem:[#allocation4 + $0xa8] sm:$0xff] %v2088
          %2121 = vst [vmem:[#allocation4 + $0xb0] sm:$0xff] %v2089
          %2122 = vst [vmem:[#allocation4 + $0xb8] sm:$0xff] %v2090
          %2123 = vst [vmem:[#allocation4 + $0xc0] sm:$0xff] %v2091
          %2124 = vst [vmem:[#allocation4 + $0xc8] sm:$0xff] %v2092
          %2125 = vst [vmem:[#allocation4 + $0xd0] sm:$0xff] %v2093
          %2126 = vst [vmem:[#allocation4 + $0xd8] sm:$0xff] %v2094
          %2127 = vst [vmem:[#allocation4 + $0xe0] sm:$0xff] %v2095
          %2128 = vst [vmem:[#allocation4 + $0xe8] sm:$0xff] %v2096
          %2129 = vst [vmem:[#allocation4 + $0xf0] sm:$0xff] %v2097
          %2130 = vst [vmem:[#allocation4 + $0xf8] sm:$0xff] %v2098
          %vm2131 = vcmask 7168
          %2132 = vst.msk [vmem:[#allocation3] sm:$0xff] %vm2131, %v1106
          %2133 = vst.msk [vmem:[#allocation3 + $0x8] sm:$0xff] %vm2131, %v1107
          %2134 = vst.msk [vmem:[#allocation3 + $0x10] sm:$0xff] %vm2131, %v1108
          %2135 = vst.msk [vmem:[#allocation3 + $0x18] sm:$0xff] %vm2131, %v1109
          %2136 = vst.msk [vmem:[#allocation3 + $0x20] sm:$0xff] %vm2131, %v1110
          %2137 = vst.msk [vmem:[#allocation3 + $0x28] sm:$0xff] %vm2131, %v1111
          %2138 = vst.msk [vmem:[#allocation3 + $0x30] sm:$0xff] %vm2131, %v1112
          %2139 = vst.msk [vmem:[#allocation3 + $0x38] sm:$0xff] %vm2131, %v1113
          %2140 = vst.msk [vmem:[#allocation3 + $0x40] sm:$0xff] %vm2131, %v1114
          %2141 = vst.msk [vmem:[#allocation3 + $0x48] sm:$0xff] %vm2131, %v1115
          %2142 = vst.msk [vmem:[#allocation3 + $0x50] sm:$0xff] %vm2131, %v1116
          %2143 = vst.msk [vmem:[#allocation3 + $0x58] sm:$0xff] %vm2131, %v1117
          %2144 = vst.msk [vmem:[#allocation3 + $0x60] sm:$0xff] %vm2131, %v1118
          %2145 = vst.msk [vmem:[#allocation3 + $0x68] sm:$0xff] %vm2131, %v1119
          %2146 = vst.msk [vmem:[#allocation3 + $0x70] sm:$0xff] %vm2131, %v1120
          %2147 = vst.msk [vmem:[#allocation3 + $0x78] sm:$0xff] %vm2131, %v1121
          %2148 = vst.msk [vmem:[#allocation3 + $0x80] sm:$0xff] %vm2131, %v1122
          %2149 = vst.msk [vmem:[#allocation3 + $0x88] sm:$0xff] %vm2131, %v1123
          %2150 = vst.msk [vmem:[#allocation3 + $0x90] sm:$0xff] %vm2131, %v1124
          %2151 = vst.msk [vmem:[#allocation3 + $0x98] sm:$0xff] %vm2131, %v1125
          %2152 = vst.msk [vmem:[#allocation3 + $0xa0] sm:$0xff] %vm2131, %v1126
          %2153 = vst.msk [vmem:[#allocation3 + $0xa8] sm:$0xff] %vm2131, %v1127
          %2154 = vst.msk [vmem:[#allocation3 + $0xb0] sm:$0xff] %vm2131, %v1128
          %2155 = vst.msk [vmem:[#allocation3 + $0xb8] sm:$0xff] %vm2131, %v1129
          %2156 = vst.msk [vmem:[#allocation3 + $0xc0] sm:$0xff] %vm2131, %v1130
          %2157 = vst.msk [vmem:[#allocation3 + $0xc8] sm:$0xff] %vm2131, %v1131
          %2158 = vst.msk [vmem:[#allocation3 + $0xd0] sm:$0xff] %vm2131, %v1132
          %2159 = vst.msk [vmem:[#allocation3 + $0xd8] sm:$0xff] %vm2131, %v1133
          %2160 = vst.msk [vmem:[#allocation3 + $0xe0] sm:$0xff] %vm2131, %v1134
          %2161 = vst.msk [vmem:[#allocation3 + $0xe8] sm:$0xff] %vm2131, %v1135
          %2162 = vst.msk [vmem:[#allocation3 + $0xf0] sm:$0xff] %vm2131, %v1136
          %2163 = vst.msk [vmem:[#allocation3 + $0xf8] sm:$0xff] %vm2131, %v1137
        $region78: #{a_call__.1} parent=65 // pred_fallthru
          _
        %p2164 = scmp.eq.s32.totalorder %s373, %s372
        // Predicated region
        $region79: #{a_call__.1} parent=65 // pred_check
          %p2165 = pneg %p2164
        $region80: #{a_call__.1} parent=65 // pred_check_branch
          %2167 = sbr.rel (%p2165) target = $region82
        $region81: #{a_call__.1} parent=65 // pred_region
          %v2168 = vlaneseq
          %v2169 = vshrl.u32 %v2168, 7
          %v2170 = vadd.s32 %v2169, 8
          %v2171 = vadd.s32 %v2169, 16
          %v2172 = vadd.s32 %v2169, 24
          %v2173 = vadd.s32 %v2169, 32
          %v2174 = vadd.s32 %v2169, 40
          %v2175 = vadd.s32 %v2169, 48
          %v2176 = vadd.s32 %v2169, 56
          %v2177 = vadd.s32 %v2169, 64
          %v2178 = vadd.s32 %v2169, 72
          %v2179 = vadd.s32 %v2169, 80
          %v2180 = vadd.s32 %v2169, 88
          %v2181 = vadd.s32 %v2169, 96
          %v2182 = vadd.s32 %v2169, 104
          %v2183 = vadd.s32 %v2169, 112
          %v2184 = vadd.s32 %v2169, 120
          %v2185 = vadd.s32 %v2169, 128
          %v2186 = vadd.s32 %v2169, 136
          %v2187 = vadd.s32 %v2169, 144
          %v2188 = vadd.s32 %v2169, 152
          %v2189 = vadd.s32 %v2169, 160
          %v2190 = vadd.s32 %v2169, 168
          %v2191 = vadd.s32 %v2169, 176
          %v2192 = vadd.s32 %v2169, 184
          %v2193 = vadd.s32 %v2169, 192
          %v2194 = vadd.s32 %v2169, 200
          %v2195 = vadd.s32 %v2169, 208
          %v2196 = vadd.s32 %v2169, 216
          %v2197 = vadd.s32 %v2169, 224
          %v2198 = vadd.s32 %v2169, 232
          %v2199 = vadd.s32 %v2169, 240
          %v2200 = vadd.s32 %v2169, 248
          %v2201 = vlaneseq
          %v2202 = vand.u32 %v2201, 127
          %v2203 = vadd.s32 %v2202, 128
          %vm2204 = vcmp.ge.s32.totalorder %v2169, %v2202
          %vm2205 = vcmp.ge.s32.totalorder %v2169, %v2203
          %vm2206 = vcmp.ge.s32.totalorder %v2170, %v2202
          %vm2207 = vcmp.ge.s32.totalorder %v2170, %v2203
          %vm2208 = vcmp.ge.s32.totalorder %v2171, %v2202
          %vm2209 = vcmp.ge.s32.totalorder %v2171, %v2203
          %vm2210 = vcmp.ge.s32.totalorder %v2172, %v2202
          %vm2211 = vcmp.ge.s32.totalorder %v2172, %v2203
          %vm2212 = vcmp.ge.s32.totalorder %v2173, %v2202
          %vm2213 = vcmp.ge.s32.totalorder %v2173, %v2203
          %vm2214 = vcmp.ge.s32.totalorder %v2174, %v2202
          %vm2215 = vcmp.ge.s32.totalorder %v2174, %v2203
          %vm2216 = vcmp.ge.s32.totalorder %v2175, %v2202
          %vm2217 = vcmp.ge.s32.totalorder %v2175, %v2203
          %vm2218 = vcmp.ge.s32.totalorder %v2176, %v2202
          %vm2219 = vcmp.ge.s32.totalorder %v2176, %v2203
          %vm2220 = vcmp.ge.s32.totalorder %v2177, %v2202
          %vm2221 = vcmp.ge.s32.totalorder %v2177, %v2203
          %vm2222 = vcmp.ge.s32.totalorder %v2178, %v2202
          %vm2223 = vcmp.ge.s32.totalorder %v2178, %v2203
          %vm2224 = vcmp.ge.s32.totalorder %v2179, %v2202
          %vm2225 = vcmp.ge.s32.totalorder %v2179, %v2203
          %vm2226 = vcmp.ge.s32.totalorder %v2180, %v2202
          %vm2227 = vcmp.ge.s32.totalorder %v2180, %v2203
          %vm2228 = vcmp.ge.s32.totalorder %v2181, %v2202
          %vm2229 = vcmp.ge.s32.totalorder %v2181, %v2203
          %vm2230 = vcmp.ge.s32.totalorder %v2182, %v2202
          %vm2231 = vcmp.ge.s32.totalorder %v2182, %v2203
          %vm2232 = vcmp.ge.s32.totalorder %v2183, %v2202
          %vm2233 = vcmp.ge.s32.totalorder %v2183, %v2203
          %vm2234 = vcmp.ge.s32.totalorder %v2184, %v2202
          %vm2235 = vcmp.ge.s32.totalorder %v2184, %v2203
          %vm2236 = vcmp.ge.s32.totalorder %v2185, %v2202
          %vm2237 = vcmp.ge.s32.totalorder %v2185, %v2203
          %vm2238 = vcmp.ge.s32.totalorder %v2186, %v2202
          %vm2239 = vcmp.ge.s32.totalorder %v2186, %v2203
          %vm2240 = vcmp.ge.s32.totalorder %v2187, %v2202
          %vm2241 = vcmp.ge.s32.totalorder %v2187, %v2203
          %vm2242 = vcmp.ge.s32.totalorder %v2188, %v2202
          %vm2243 = vcmp.ge.s32.totalorder %v2188, %v2203
          %vm2244 = vcmp.ge.s32.totalorder %v2189, %v2202
          %vm2245 = vcmp.ge.s32.totalorder %v2189, %v2203
          %vm2246 = vcmp.ge.s32.totalorder %v2190, %v2202
          %vm2247 = vcmp.ge.s32.totalorder %v2190, %v2203
          %vm2248 = vcmp.ge.s32.totalorder %v2191, %v2202
          %vm2249 = vcmp.ge.s32.totalorder %v2191, %v2203
          %vm2250 = vcmp.ge.s32.totalorder %v2192, %v2202
          %vm2251 = vcmp.ge.s32.totalorder %v2192, %v2203
          %vm2252 = vcmp.ge.s32.totalorder %v2193, %v2202
          %vm2253 = vcmp.ge.s32.totalorder %v2193, %v2203
          %vm2254 = vcmp.ge.s32.totalorder %v2194, %v2202
          %vm2255 = vcmp.ge.s32.totalorder %v2194, %v2203
          %vm2256 = vcmp.ge.s32.totalorder %v2195, %v2202
          %vm2257 = vcmp.ge.s32.totalorder %v2195, %v2203
          %vm2258 = vcmp.ge.s32.totalorder %v2196, %v2202
          %vm2259 = vcmp.ge.s32.totalorder %v2196, %v2203
          %vm2260 = vcmp.ge.s32.totalorder %v2197, %v2202
          %vm2261 = vcmp.ge.s32.totalorder %v2197, %v2203
          %vm2262 = vcmp.ge.s32.totalorder %v2198, %v2202
          %vm2263 = vcmp.ge.s32.totalorder %v2198, %v2203
          %vm2264 = vcmp.ge.s32.totalorder %v2199, %v2202
          %vm2265 = vcmp.ge.s32.totalorder %v2199, %v2203
          %vm2266 = vcmp.ge.s32.totalorder %v2200, %v2202
          %vm2267 = vcmp.ge.s32.totalorder %v2200, %v2203
          %v2268 = vsel %vm2204, %v816, -inf
          %v2269 = vsel %vm2205, %v818, -inf
          %v2270 = vsel %vm2206, %v820, -inf
          %v2271 = vsel %vm2207, %v822, -inf
          %v2272 = vsel %vm2208, %v826, -inf
          %v2273 = vsel %vm2209, %v828, -inf
          %v2274 = vsel %vm2210, %v830, -inf
          %v2275 = vsel %vm2211, %v832, -inf
          %v2276 = vsel %vm2212, %v836, -inf
          %v2277 = vsel %vm2213, %v838, -inf
          %v2278 = vsel %vm2214, %v840, -inf
          %v2279 = vsel %vm2215, %v842, -inf
          %v2280 = vsel %vm2216, %v846, -inf
          %v2281 = vsel %vm2217, %v848, -inf
          %v2282 = vsel %vm2218, %v850, -inf
          %v2283 = vsel %vm2219, %v852, -inf
          %v2284 = vsel %vm2220, %v856, -inf
          %v2285 = vsel %vm2221, %v858, -inf
          %v2286 = vsel %vm2222, %v860, -inf
          %v2287 = vsel %vm2223, %v862, -inf
          %v2288 = vsel %vm2224, %v866, -inf
          %v2289 = vsel %vm2225, %v868, -inf
          %v2290 = vsel %vm2226, %v870, -inf
          %v2291 = vsel %vm2227, %v872, -inf
          %v2292 = vsel %vm2228, %v876, -inf
          %v2293 = vsel %vm2229, %v878, -inf
          %v2294 = vsel %vm2230, %v880, -inf
          %v2295 = vsel %vm2231, %v882, -inf
          %v2296 = vsel %vm2232, %v886, -inf
          %v2297 = vsel %vm2233, %v888, -inf
          %v2298 = vsel %vm2234, %v890, -inf
          %v2299 = vsel %vm2235, %v892, -inf
          %v2300 = vsel %vm2236, %v896, -inf
          %v2301 = vsel %vm2237, %v898, -inf
          %v2302 = vsel %vm2238, %v900, -inf
          %v2303 = vsel %vm2239, %v902, -inf
          %v2304 = vsel %vm2240, %v906, -inf
          %v2305 = vsel %vm2241, %v908, -inf
          %v2306 = vsel %vm2242, %v910, -inf
          %v2307 = vsel %vm2243, %v912, -inf
          %v2308 = vsel %vm2244, %v916, -inf
          %v2309 = vsel %vm2245, %v918, -inf
          %v2310 = vsel %vm2246, %v920, -inf
          %v2311 = vsel %vm2247, %v922, -inf
          %v2312 = vsel %vm2248, %v926, -inf
          %v2313 = vsel %vm2249, %v928, -inf
          %v2314 = vsel %vm2250, %v930, -inf
          %v2315 = vsel %vm2251, %v932, -inf
          %v2316 = vsel %vm2252, %v936, -inf
          %v2317 = vsel %vm2253, %v938, -inf
          %v2318 = vsel %vm2254, %v940, -inf
          %v2319 = vsel %vm2255, %v942, -inf
          %v2320 = vsel %vm2256, %v946, -inf
          %v2321 = vsel %vm2257, %v948, -inf
          %v2322 = vsel %vm2258, %v950, -inf
          %v2323 = vsel %vm2259, %v952, -inf
          %v2324 = vsel %vm2260, %v956, -inf
          %v2325 = vsel %vm2261, %v958, -inf
          %v2326 = vsel %vm2262, %v960, -inf
          %v2327 = vsel %vm2263, %v962, -inf
          %v2328 = vsel %vm2264, %v966, -inf
          %v2329 = vsel %vm2265, %v968, -inf
          %v2330 = vsel %vm2266, %v970, -inf
          %v2331 = vsel %vm2267, %v972, -inf
          %v2332 = vld [vmem:[#allocation3] sm:$0xff]
          %v2333 = vld [vmem:[#allocation3 + $0x8] sm:$0xff]
          %v2334 = vld [vmem:[#allocation3 + $0x10] sm:$0xff]
          %v2335 = vld [vmem:[#allocation3 + $0x18] sm:$0xff]
          %v2336 = vld [vmem:[#allocation3 + $0x20] sm:$0xff]
          %v2337 = vld [vmem:[#allocation3 + $0x28] sm:$0xff]
          %v2338 = vld [vmem:[#allocation3 + $0x30] sm:$0xff]
          %v2339 = vld [vmem:[#allocation3 + $0x38] sm:$0xff]
          %v2340 = vld [vmem:[#allocation3 + $0x40] sm:$0xff]
          %v2341 = vld [vmem:[#allocation3 + $0x48] sm:$0xff]
          %v2342 = vld [vmem:[#allocation3 + $0x50] sm:$0xff]
          %v2343 = vld [vmem:[#allocation3 + $0x58] sm:$0xff]
          %v2344 = vld [vmem:[#allocation3 + $0x60] sm:$0xff]
          %v2345 = vld [vmem:[#allocation3 + $0x68] sm:$0xff]
          %v2346 = vld [vmem:[#allocation3 + $0x70] sm:$0xff]
          %v2347 = vld [vmem:[#allocation3 + $0x78] sm:$0xff]
          %v2348 = vld [vmem:[#allocation3 + $0x80] sm:$0xff]
          %v2349 = vld [vmem:[#allocation3 + $0x88] sm:$0xff]
          %v2350 = vld [vmem:[#allocation3 + $0x90] sm:$0xff]
          %v2351 = vld [vmem:[#allocation3 + $0x98] sm:$0xff]
          %v2352 = vld [vmem:[#allocation3 + $0xa0] sm:$0xff]
          %v2353 = vld [vmem:[#allocation3 + $0xa8] sm:$0xff]
          %v2354 = vld [vmem:[#allocation3 + $0xb0] sm:$0xff]
          %v2355 = vld [vmem:[#allocation3 + $0xb8] sm:$0xff]
          %v2356 = vld [vmem:[#allocation3 + $0xc0] sm:$0xff]
          %v2357 = vld [vmem:[#allocation3 + $0xc8] sm:$0xff]
          %v2358 = vld [vmem:[#allocation3 + $0xd0] sm:$0xff]
          %v2359 = vld [vmem:[#allocation3 + $0xd8] sm:$0xff]
          %v2360 = vld [vmem:[#allocation3 + $0xe0] sm:$0xff]
          %v2361 = vld [vmem:[#allocation3 + $0xe8] sm:$0xff]
          %v2362 = vld [vmem:[#allocation3 + $0xf0] sm:$0xff]
          %v2363 = vld [vmem:[#allocation3 + $0xf8] sm:$0xff]
          %v2364 = vmax.f32 %v2268, %v2269
          %2365 = vmax.xlane.f32.xlu0 %v2364
          %v2366 = vpop.xlane.xlu0 %2365
          %v2367 = vmax.f32 %v2270, %v2271
          %2368 = vmax.xlane.f32.xlu0 %v2367
          %v2369 = vpop.xlane.xlu0 %2368
          %v2370 = vmax.f32 %v2272, %v2273
          %2371 = vmax.xlane.f32.xlu0 %v2370
          %v2372 = vpop.xlane.xlu0 %2371
          %v2373 = vmax.f32 %v2274, %v2275
          %2374 = vmax.xlane.f32.xlu0 %v2373
          %v2375 = vpop.xlane.xlu0 %2374
          %v2376 = vmax.f32 %v2276, %v2277
          %2377 = vmax.xlane.f32.xlu0 %v2376
          %v2378 = vpop.xlane.xlu0 %2377
          %v2379 = vmax.f32 %v2278, %v2279
          %2380 = vmax.xlane.f32.xlu0 %v2379
          %v2381 = vpop.xlane.xlu0 %2380
          %v2382 = vmax.f32 %v2280, %v2281
          %2383 = vmax.xlane.f32.xlu0 %v2382
          %v2384 = vpop.xlane.xlu0 %2383
          %v2385 = vmax.f32 %v2282, %v2283
          %2386 = vmax.xlane.f32.xlu0 %v2385
          %v2387 = vpop.xlane.xlu0 %2386
          %v2388 = vmax.f32 %v2284, %v2285
          %2389 = vmax.xlane.f32.xlu0 %v2388
          %v2390 = vpop.xlane.xlu0 %2389
          %v2391 = vmax.f32 %v2286, %v2287
          %2392 = vmax.xlane.f32.xlu0 %v2391
          %v2393 = vpop.xlane.xlu0 %2392
          %v2394 = vmax.f32 %v2288, %v2289
          %2395 = vmax.xlane.f32.xlu0 %v2394
          %v2396 = vpop.xlane.xlu0 %2395
          %v2397 = vmax.f32 %v2290, %v2291
          %2398 = vmax.xlane.f32.xlu0 %v2397
          %v2399 = vpop.xlane.xlu0 %2398
          %v2400 = vmax.f32 %v2292, %v2293
          %2401 = vmax.xlane.f32.xlu0 %v2400
          %v2402 = vpop.xlane.xlu0 %2401
          %v2403 = vmax.f32 %v2294, %v2295
          %2404 = vmax.xlane.f32.xlu0 %v2403
          %v2405 = vpop.xlane.xlu0 %2404
          %v2406 = vmax.f32 %v2296, %v2297
          %2407 = vmax.xlane.f32.xlu0 %v2406
          %v2408 = vpop.xlane.xlu0 %2407
          %v2409 = vmax.f32 %v2298, %v2299
          %2410 = vmax.xlane.f32.xlu0 %v2409
          %v2411 = vpop.xlane.xlu0 %2410
          %v2412 = vmax.f32 %v2300, %v2301
          %2413 = vmax.xlane.f32.xlu0 %v2412
          %v2414 = vpop.xlane.xlu0 %2413
          %v2415 = vmax.f32 %v2302, %v2303
          %2416 = vmax.xlane.f32.xlu0 %v2415
          %v2417 = vpop.xlane.xlu0 %2416
          %v2418 = vmax.f32 %v2304, %v2305
          %2419 = vmax.xlane.f32.xlu0 %v2418
          %v2420 = vpop.xlane.xlu0 %2419
          %v2421 = vmax.f32 %v2306, %v2307
          %2422 = vmax.xlane.f32.xlu0 %v2421
          %v2423 = vpop.xlane.xlu0 %2422
          %v2424 = vmax.f32 %v2308, %v2309
          %2425 = vmax.xlane.f32.xlu0 %v2424
          %v2426 = vpop.xlane.xlu0 %2425
          %v2427 = vmax.f32 %v2310, %v2311
          %2428 = vmax.xlane.f32.xlu0 %v2427
          %v2429 = vpop.xlane.xlu0 %2428
          %v2430 = vmax.f32 %v2312, %v2313
          %2431 = vmax.xlane.f32.xlu0 %v2430
          %v2432 = vpop.xlane.xlu0 %2431
          %v2433 = vmax.f32 %v2314, %v2315
          %2434 = vmax.xlane.f32.xlu0 %v2433
          %v2435 = vpop.xlane.xlu0 %2434
          %v2436 = vmax.f32 %v2316, %v2317
          %2437 = vmax.xlane.f32.xlu0 %v2436
          %v2438 = vpop.xlane.xlu0 %2437
          %v2439 = vmax.f32 %v2318, %v2319
          %2440 = vmax.xlane.f32.xlu0 %v2439
          %v2441 = vpop.xlane.xlu0 %2440
          %v2442 = vmax.f32 %v2320, %v2321
          %2443 = vmax.xlane.f32.xlu0 %v2442
          %v2444 = vpop.xlane.xlu0 %2443
          %v2445 = vmax.f32 %v2322, %v2323
          %2446 = vmax.xlane.f32.xlu0 %v2445
          %v2447 = vpop.xlane.xlu0 %2446
          %v2448 = vmax.f32 %v2324, %v2325
          %2449 = vmax.xlane.f32.xlu0 %v2448
          %v2450 = vpop.xlane.xlu0 %2449
          %v2451 = vmax.f32 %v2326, %v2327
          %2452 = vmax.xlane.f32.xlu0 %v2451
          %v2453 = vpop.xlane.xlu0 %2452
          %v2454 = vmax.f32 %v2328, %v2329
          %2455 = vmax.xlane.f32.xlu0 %v2454
          %v2456 = vpop.xlane.xlu0 %2455
          %v2457 = vmax.f32 %v2330, %v2331
          %2458 = vmax.xlane.f32.xlu0 %v2457
          %v2459 = vpop.xlane.xlu0 %2458
          %v2460 = vmax.f32 %v2332, %v2366
          %v2461 = vmax.f32 %v2333, %v2369
          %v2462 = vmax.f32 %v2334, %v2372
          %v2463 = vmax.f32 %v2335, %v2375
          %v2464 = vmax.f32 %v2336, %v2378
          %v2465 = vmax.f32 %v2337, %v2381
          %v2466 = vmax.f32 %v2338, %v2384
          %v2467 = vmax.f32 %v2339, %v2387
          %v2468 = vmax.f32 %v2340, %v2390
          %v2469 = vmax.f32 %v2341, %v2393
          %v2470 = vmax.f32 %v2342, %v2396
          %v2471 = vmax.f32 %v2343, %v2399
          %v2472 = vmax.f32 %v2344, %v2402
          %v2473 = vmax.f32 %v2345, %v2405
          %v2474 = vmax.f32 %v2346, %v2408
          %v2475 = vmax.f32 %v2347, %v2411
          %v2476 = vmax.f32 %v2348, %v2414
          %v2477 = vmax.f32 %v2349, %v2417
          %v2478 = vmax.f32 %v2350, %v2420
          %v2479 = vmax.f32 %v2351, %v2423
          %v2480 = vmax.f32 %v2352, %v2426
          %v2481 = vmax.f32 %v2353, %v2429
          %v2482 = vmax.f32 %v2354, %v2432
          %v2483 = vmax.f32 %v2355, %v2435
          %v2484 = vmax.f32 %v2356, %v2438
          %v2485 = vmax.f32 %v2357, %v2441
          %v2486 = vmax.f32 %v2358, %v2444
          %v2487 = vmax.f32 %v2359, %v2447
          %v2488 = vmax.f32 %v2360, %v2450
          %v2489 = vmax.f32 %v2361, %v2453
          %v2490 = vmax.f32 %v2362, %v2456
          %v2491 = vmax.f32 %v2363, %v2459
          %v2492 = vsub.f32 %v2332, %v2460
          %v2493 = vsub.f32 %v2333, %v2461
          %v2494 = vsub.f32 %v2334, %v2462
          %v2495 = vsub.f32 %v2335, %v2463
          %v2496 = vsub.f32 %v2336, %v2464
          %v2497 = vsub.f32 %v2337, %v2465
          %v2498 = vsub.f32 %v2338, %v2466
          %v2499 = vsub.f32 %v2339, %v2467
          %v2500 = vsub.f32 %v2340, %v2468
          %v2501 = vsub.f32 %v2341, %v2469
          %v2502 = vsub.f32 %v2342, %v2470
          %v2503 = vsub.f32 %v2343, %v2471
          %v2504 = vsub.f32 %v2344, %v2472
          %v2505 = vsub.f32 %v2345, %v2473
          %v2506 = vsub.f32 %v2346, %v2474
          %v2507 = vsub.f32 %v2347, %v2475
          %v2508 = vsub.f32 %v2348, %v2476
          %v2509 = vsub.f32 %v2349, %v2477
          %v2510 = vsub.f32 %v2350, %v2478
          %v2511 = vsub.f32 %v2351, %v2479
          %v2512 = vsub.f32 %v2352, %v2480
          %v2513 = vsub.f32 %v2353, %v2481
          %v2514 = vsub.f32 %v2354, %v2482
          %v2515 = vsub.f32 %v2355, %v2483
          %v2516 = vsub.f32 %v2356, %v2484
          %v2517 = vsub.f32 %v2357, %v2485
          %v2518 = vsub.f32 %v2358, %v2486
          %v2519 = vsub.f32 %v2359, %v2487
          %v2520 = vsub.f32 %v2360, %v2488
          %v2521 = vsub.f32 %v2361, %v2489
          %v2522 = vsub.f32 %v2362, %v2490
          %v2523 = vsub.f32 %v2363, %v2491
          %v2524 = vmul.f32 %v2492, 1.442695
          %v2525 = vpow.pop %v2524
          %v2526 = vmul.f32 %v2493, 1.442695
          %v2527 = vpow.pop %v2526
          %v2528 = vmul.f32 %v2494, 1.442695
          %v2529 = vpow.pop %v2528
          %v2530 = vmul.f32 %v2495, 1.442695
          %v2531 = vpow.pop %v2530
          %v2532 = vmul.f32 %v2496, 1.442695
          %v2533 = vpow.pop %v2532
          %v2534 = vmul.f32 %v2497, 1.442695
          %v2535 = vpow.pop %v2534
          %v2536 = vmul.f32 %v2498, 1.442695
          %v2537 = vpow.pop %v2536
          %v2538 = vmul.f32 %v2499, 1.442695
          %v2539 = vpow.pop %v2538
          %v2540 = vmul.f32 %v2500, 1.442695
          %v2541 = vpow.pop %v2540
          %v2542 = vmul.f32 %v2501, 1.442695
          %v2543 = vpow.pop %v2542
          %v2544 = vmul.f32 %v2502, 1.442695
          %v2545 = vpow.pop %v2544
          %v2546 = vmul.f32 %v2503, 1.442695
          %v2547 = vpow.pop %v2546
          %v2548 = vmul.f32 %v2504, 1.442695
          %v2549 = vpow.pop %v2548
          %v2550 = vmul.f32 %v2505, 1.442695
          %v2551 = vpow.pop %v2550
          %v2552 = vmul.f32 %v2506, 1.442695
          %v2553 = vpow.pop %v2552
          %v2554 = vmul.f32 %v2507, 1.442695
          %v2555 = vpow.pop %v2554
          %v2556 = vmul.f32 %v2508, 1.442695
          %v2557 = vpow.pop %v2556
          %v2558 = vmul.f32 %v2509, 1.442695
          %v2559 = vpow.pop %v2558
          %v2560 = vmul.f32 %v2510, 1.442695
          %v2561 = vpow.pop %v2560
          %v2562 = vmul.f32 %v2511, 1.442695
          %v2563 = vpow.pop %v2562
          %v2564 = vmul.f32 %v2512, 1.442695
          %v2565 = vpow.pop %v2564
          %v2566 = vmul.f32 %v2513, 1.442695
          %v2567 = vpow.pop %v2566
          %v2568 = vmul.f32 %v2514, 1.442695
          %v2569 = vpow.pop %v2568
          %v2570 = vmul.f32 %v2515, 1.442695
          %v2571 = vpow.pop %v2570
          %v2572 = vmul.f32 %v2516, 1.442695
          %v2573 = vpow.pop %v2572
          %v2574 = vmul.f32 %v2517, 1.442695
          %v2575 = vpow.pop %v2574
          %v2576 = vmul.f32 %v2518, 1.442695
          %v2577 = vpow.pop %v2576
          %v2578 = vmul.f32 %v2519, 1.442695
          %v2579 = vpow.pop %v2578
          %v2580 = vmul.f32 %v2520, 1.442695
          %v2581 = vpow.pop %v2580
          %v2582 = vmul.f32 %v2521, 1.442695
          %v2583 = vpow.pop %v2582
          %v2584 = vmul.f32 %v2522, 1.442695
          %v2585 = vpow.pop %v2584
          %v2586 = vmul.f32 %v2523, 1.442695
          %v2587 = vpow.pop %v2586
          %2589 = vset.pattern.permute.xlu0 0
          %2590 = vperm.xlu0 %2589, %v2460
          %v2591 = vpop.permute.xlu0 %2590
          %2594 = vset.pattern.permute.xlu0 0
          %2595 = vperm.xlu0 %2594, %v2461
          %v2596 = vpop.permute.xlu0 %2595
          %2599 = vset.pattern.permute.xlu0 0
          %2600 = vperm.xlu0 %2599, %v2462
          %v2601 = vpop.permute.xlu0 %2600
          %2604 = vset.pattern.permute.xlu0 0
          %2605 = vperm.xlu0 %2604, %v2463
          %v2606 = vpop.permute.xlu0 %2605
          %2609 = vset.pattern.permute.xlu0 0
          %2610 = vperm.xlu0 %2609, %v2464
          %v2611 = vpop.permute.xlu0 %2610
          %2614 = vset.pattern.permute.xlu0 0
          %2615 = vperm.xlu0 %2614, %v2465
          %v2616 = vpop.permute.xlu0 %2615
          %2619 = vset.pattern.permute.xlu0 0
          %2620 = vperm.xlu0 %2619, %v2466
          %v2621 = vpop.permute.xlu0 %2620
          %2624 = vset.pattern.permute.xlu0 0
          %2625 = vperm.xlu0 %2624, %v2467
          %v2626 = vpop.permute.xlu0 %2625
          %2629 = vset.pattern.permute.xlu0 0
          %2630 = vperm.xlu0 %2629, %v2468
          %v2631 = vpop.permute.xlu0 %2630
          %2634 = vset.pattern.permute.xlu0 0
          %2635 = vperm.xlu0 %2634, %v2469
          %v2636 = vpop.permute.xlu0 %2635
          %2639 = vset.pattern.permute.xlu0 0
          %2640 = vperm.xlu0 %2639, %v2470
          %v2641 = vpop.permute.xlu0 %2640
          %2644 = vset.pattern.permute.xlu0 0
          %2645 = vperm.xlu0 %2644, %v2471
          %v2646 = vpop.permute.xlu0 %2645
          %2649 = vset.pattern.permute.xlu0 0
          %2650 = vperm.xlu0 %2649, %v2472
          %v2651 = vpop.permute.xlu0 %2650
          %2654 = vset.pattern.permute.xlu0 0
          %2655 = vperm.xlu0 %2654, %v2473
          %v2656 = vpop.permute.xlu0 %2655
          %2659 = vset.pattern.permute.xlu0 0
          %2660 = vperm.xlu0 %2659, %v2474
          %v2661 = vpop.permute.xlu0 %2660
          %2664 = vset.pattern.permute.xlu0 0
          %2665 = vperm.xlu0 %2664, %v2475
          %v2666 = vpop.permute.xlu0 %2665
          %2669 = vset.pattern.permute.xlu0 0
          %2670 = vperm.xlu0 %2669, %v2476
          %v2671 = vpop.permute.xlu0 %2670
          %2674 = vset.pattern.permute.xlu0 0
          %2675 = vperm.xlu0 %2674, %v2477
          %v2676 = vpop.permute.xlu0 %2675
          %2679 = vset.pattern.permute.xlu0 0
          %2680 = vperm.xlu0 %2679, %v2478
          %v2681 = vpop.permute.xlu0 %2680
          %2684 = vset.pattern.permute.xlu0 0
          %2685 = vperm.xlu0 %2684, %v2479
          %v2686 = vpop.permute.xlu0 %2685
          %2689 = vset.pattern.permute.xlu0 0
          %2690 = vperm.xlu0 %2689, %v2480
          %v2691 = vpop.permute.xlu0 %2690
          %2694 = vset.pattern.permute.xlu0 0
          %2695 = vperm.xlu0 %2694, %v2481
          %v2696 = vpop.permute.xlu0 %2695
          %2699 = vset.pattern.permute.xlu0 0
          %2700 = vperm.xlu0 %2699, %v2482
          %v2701 = vpop.permute.xlu0 %2700
          %2704 = vset.pattern.permute.xlu0 0
          %2705 = vperm.xlu0 %2704, %v2483
          %v2706 = vpop.permute.xlu0 %2705
          %2709 = vset.pattern.permute.xlu0 0
          %2710 = vperm.xlu0 %2709, %v2484
          %v2711 = vpop.permute.xlu0 %2710
          %2714 = vset.pattern.permute.xlu0 0
          %2715 = vperm.xlu0 %2714, %v2485
          %v2716 = vpop.permute.xlu0 %2715
          %2719 = vset.pattern.permute.xlu0 0
          %2720 = vperm.xlu0 %2719, %v2486
          %v2721 = vpop.permute.xlu0 %2720
          %2724 = vset.pattern.permute.xlu0 0
          %2725 = vperm.xlu0 %2724, %v2487
          %v2726 = vpop.permute.xlu0 %2725
          %2729 = vset.pattern.permute.xlu0 0
          %2730 = vperm.xlu0 %2729, %v2488
          %v2731 = vpop.permute.xlu0 %2730
          %2734 = vset.pattern.permute.xlu0 0
          %2735 = vperm.xlu0 %2734, %v2489
          %v2736 = vpop.permute.xlu0 %2735
          %2739 = vset.pattern.permute.xlu0 0
          %2740 = vperm.xlu0 %2739, %v2490
          %v2741 = vpop.permute.xlu0 %2740
          %2744 = vset.pattern.permute.xlu0 0
          %2745 = vperm.xlu0 %2744, %v2491
          %v2746 = vpop.permute.xlu0 %2745
          %v2748 = vsub.f32 %v2268, %v2591
          %v2749 = vsub.f32 %v2269, %v2591
          %v2750 = vsub.f32 %v2270, %v2596
          %v2751 = vsub.f32 %v2271, %v2596
          %v2752 = vsub.f32 %v2272, %v2601
          %v2753 = vsub.f32 %v2273, %v2601
          %v2754 = vsub.f32 %v2274, %v2606
          %v2755 = vsub.f32 %v2275, %v2606
          %v2756 = vsub.f32 %v2276, %v2611
          %v2757 = vsub.f32 %v2277, %v2611
          %v2758 = vsub.f32 %v2278, %v2616
          %v2759 = vsub.f32 %v2279, %v2616
          %v2760 = vsub.f32 %v2280, %v2621
          %v2761 = vsub.f32 %v2281, %v2621
          %v2762 = vsub.f32 %v2282, %v2626
          %v2763 = vsub.f32 %v2283, %v2626
          %v2764 = vsub.f32 %v2284, %v2631
          %v2765 = vsub.f32 %v2285, %v2631
          %v2766 = vsub.f32 %v2286, %v2636
          %v2767 = vsub.f32 %v2287, %v2636
          %v2768 = vsub.f32 %v2288, %v2641
          %v2769 = vsub.f32 %v2289, %v2641
          %v2770 = vsub.f32 %v2290, %v2646
          %v2771 = vsub.f32 %v2291, %v2646
          %v2772 = vsub.f32 %v2292, %v2651
          %v2773 = vsub.f32 %v2293, %v2651
          %v2774 = vsub.f32 %v2294, %v2656
          %v2775 = vsub.f32 %v2295, %v2656
          %v2776 = vsub.f32 %v2296, %v2661
          %v2777 = vsub.f32 %v2297, %v2661
          %v2778 = vsub.f32 %v2298, %v2666
          %v2779 = vsub.f32 %v2299, %v2666
          %v2780 = vsub.f32 %v2300, %v2671
          %v2781 = vsub.f32 %v2301, %v2671
          %v2782 = vsub.f32 %v2302, %v2676
          %v2783 = vsub.f32 %v2303, %v2676
          %v2784 = vsub.f32 %v2304, %v2681
          %v2785 = vsub.f32 %v2305, %v2681
          %v2786 = vsub.f32 %v2306, %v2686
          %v2787 = vsub.f32 %v2307, %v2686
          %v2788 = vsub.f32 %v2308, %v2691
          %v2789 = vsub.f32 %v2309, %v2691
          %v2790 = vsub.f32 %v2310, %v2696
          %v2791 = vsub.f32 %v2311, %v2696
          %v2792 = vsub.f32 %v2312, %v2701
          %v2793 = vsub.f32 %v2313, %v2701
          %v2794 = vsub.f32 %v2314, %v2706
          %v2795 = vsub.f32 %v2315, %v2706
          %v2796 = vsub.f32 %v2316, %v2711
          %v2797 = vsub.f32 %v2317, %v2711
          %v2798 = vsub.f32 %v2318, %v2716
          %v2799 = vsub.f32 %v2319, %v2716
          %v2800 = vsub.f32 %v2320, %v2721
          %v2801 = vsub.f32 %v2321, %v2721
          %v2802 = vsub.f32 %v2322, %v2726
          %v2803 = vsub.f32 %v2323, %v2726
          %v2804 = vsub.f32 %v2324, %v2731
          %v2805 = vsub.f32 %v2325, %v2731
          %v2806 = vsub.f32 %v2326, %v2736
          %v2807 = vsub.f32 %v2327, %v2736
          %v2808 = vsub.f32 %v2328, %v2741
          %v2809 = vsub.f32 %v2329, %v2741
          %v2810 = vsub.f32 %v2330, %v2746
          %v2811 = vsub.f32 %v2331, %v2746
          %v2812 = vpack.c.bf16 %v2750, %v2748
          %v2813 = vpack.c.bf16 %v2751, %v2749
          %v2814 = vpack.c.bf16 %v2754, %v2752
          %v2815 = vpack.c.bf16 %v2755, %v2753
          %v2816 = vpack.c.bf16 %v2758, %v2756
          %v2817 = vpack.c.bf16 %v2759, %v2757
          %v2818 = vpack.c.bf16 %v2762, %v2760
          %v2819 = vpack.c.bf16 %v2763, %v2761
          %v2820 = vpack.c.bf16 %v2766, %v2764
          %v2821 = vpack.c.bf16 %v2767, %v2765
          %v2822 = vpack.c.bf16 %v2770, %v2768
          %v2823 = vpack.c.bf16 %v2771, %v2769
          %v2824 = vpack.c.bf16 %v2774, %v2772
          %v2825 = vpack.c.bf16 %v2775, %v2773
          %v2826 = vpack.c.bf16 %v2778, %v2776
          %v2827 = vpack.c.bf16 %v2779, %v2777
          %v2828 = vpack.c.bf16 %v2782, %v2780
          %v2829 = vpack.c.bf16 %v2783, %v2781
          %v2830 = vpack.c.bf16 %v2786, %v2784
          %v2831 = vpack.c.bf16 %v2787, %v2785
          %v2832 = vpack.c.bf16 %v2790, %v2788
          %v2833 = vpack.c.bf16 %v2791, %v2789
          %v2834 = vpack.c.bf16 %v2794, %v2792
          %v2835 = vpack.c.bf16 %v2795, %v2793
          %v2836 = vpack.c.bf16 %v2798, %v2796
          %v2837 = vpack.c.bf16 %v2799, %v2797
          %v2838 = vpack.c.bf16 %v2802, %v2800
          %v2839 = vpack.c.bf16 %v2803, %v2801
          %v2840 = vpack.c.bf16 %v2806, %v2804
          %v2841 = vpack.c.bf16 %v2807, %v2805
          %v2842 = vpack.c.bf16 %v2810, %v2808
          %v2843 = vpack.c.bf16 %v2811, %v2809
          %v2845 = vmul.bf16 %v2812, 1069105081
          %v2846 = vpow.bf16.pop %v2845
          %v2848 = vmul.bf16 %v2813, 1069105081
          %v2849 = vpow.bf16.pop %v2848
          %v2851 = vmul.bf16 %v2814, 1069105081
          %v2852 = vpow.bf16.pop %v2851
          %v2854 = vmul.bf16 %v2815, 1069105081
          %v2855 = vpow.bf16.pop %v2854
          %v2857 = vmul.bf16 %v2816, 1069105081
          %v2858 = vpow.bf16.pop %v2857
          %v2860 = vmul.bf16 %v2817, 1069105081
          %v2861 = vpow.bf16.pop %v2860
          %v2863 = vmul.bf16 %v2818, 1069105081
          %v2864 = vpow.bf16.pop %v2863
          %v2866 = vmul.bf16 %v2819, 1069105081
          %v2867 = vpow.bf16.pop %v2866
          %v2869 = vmul.bf16 %v2820, 1069105081
          %v2870 = vpow.bf16.pop %v2869
          %v2872 = vmul.bf16 %v2821, 1069105081
          %v2873 = vpow.bf16.pop %v2872
          %v2875 = vmul.bf16 %v2822, 1069105081
          %v2876 = vpow.bf16.pop %v2875
          %v2878 = vmul.bf16 %v2823, 1069105081
          %v2879 = vpow.bf16.pop %v2878
          %v2881 = vmul.bf16 %v2824, 1069105081
          %v2882 = vpow.bf16.pop %v2881
          %v2884 = vmul.bf16 %v2825, 1069105081
          %v2885 = vpow.bf16.pop %v2884
          %v2887 = vmul.bf16 %v2826, 1069105081
          %v2888 = vpow.bf16.pop %v2887
          %v2890 = vmul.bf16 %v2827, 1069105081
          %v2891 = vpow.bf16.pop %v2890
          %v2893 = vmul.bf16 %v2828, 1069105081
          %v2894 = vpow.bf16.pop %v2893
          %v2896 = vmul.bf16 %v2829, 1069105081
          %v2897 = vpow.bf16.pop %v2896
          %v2899 = vmul.bf16 %v2830, 1069105081
          %v2900 = vpow.bf16.pop %v2899
          %v2902 = vmul.bf16 %v2831, 1069105081
          %v2903 = vpow.bf16.pop %v2902
          %v2905 = vmul.bf16 %v2832, 1069105081
          %v2906 = vpow.bf16.pop %v2905
          %v2908 = vmul.bf16 %v2833, 1069105081
          %v2909 = vpow.bf16.pop %v2908
          %v2911 = vmul.bf16 %v2834, 1069105081
          %v2912 = vpow.bf16.pop %v2911
          %v2914 = vmul.bf16 %v2835, 1069105081
          %v2915 = vpow.bf16.pop %v2914
          %v2917 = vmul.bf16 %v2836, 1069105081
          %v2918 = vpow.bf16.pop %v2917
          %v2920 = vmul.bf16 %v2837, 1069105081
          %v2921 = vpow.bf16.pop %v2920
          %v2923 = vmul.bf16 %v2838, 1069105081
          %v2924 = vpow.bf16.pop %v2923
          %v2926 = vmul.bf16 %v2839, 1069105081
          %v2927 = vpow.bf16.pop %v2926
          %v2929 = vmul.bf16 %v2840, 1069105081
          %v2930 = vpow.bf16.pop %v2929
          %v2932 = vmul.bf16 %v2841, 1069105081
          %v2933 = vpow.bf16.pop %v2932
          %v2935 = vmul.bf16 %v2842, 1069105081
          %v2936 = vpow.bf16.pop %v2935
          %v2938 = vmul.bf16 %v2843, 1069105081
          %v2939 = vpow.bf16.pop %v2938
          %v2940 = vld [vmem:[#allocation4] sm:$0xff]
          %v2941 = vld [vmem:[#allocation4 + $0x8] sm:$0xff]
          %v2942 = vld [vmem:[#allocation4 + $0x10] sm:$0xff]
          %v2943 = vld [vmem:[#allocation4 + $0x18] sm:$0xff]
          %v2944 = vld [vmem:[#allocation4 + $0x20] sm:$0xff]
          %v2945 = vld [vmem:[#allocation4 + $0x28] sm:$0xff]
          %v2946 = vld [vmem:[#allocation4 + $0x30] sm:$0xff]
          %v2947 = vld [vmem:[#allocation4 + $0x38] sm:$0xff]
          %v2948 = vld [vmem:[#allocation4 + $0x40] sm:$0xff]
          %v2949 = vld [vmem:[#allocation4 + $0x48] sm:$0xff]
          %v2950 = vld [vmem:[#allocation4 + $0x50] sm:$0xff]
          %v2951 = vld [vmem:[#allocation4 + $0x58] sm:$0xff]
          %v2952 = vld [vmem:[#allocation4 + $0x60] sm:$0xff]
          %v2953 = vld [vmem:[#allocation4 + $0x68] sm:$0xff]
          %v2954 = vld [vmem:[#allocation4 + $0x70] sm:$0xff]
          %v2955 = vld [vmem:[#allocation4 + $0x78] sm:$0xff]
          %v2956 = vld [vmem:[#allocation4 + $0x80] sm:$0xff]
          %v2957 = vld [vmem:[#allocation4 + $0x88] sm:$0xff]
          %v2958 = vld [vmem:[#allocation4 + $0x90] sm:$0xff]
          %v2959 = vld [vmem:[#allocation4 + $0x98] sm:$0xff]
          %v2960 = vld [vmem:[#allocation4 + $0xa0] sm:$0xff]
          %v2961 = vld [vmem:[#allocation4 + $0xa8] sm:$0xff]
          %v2962 = vld [vmem:[#allocation4 + $0xb0] sm:$0xff]
          %v2963 = vld [vmem:[#allocation4 + $0xb8] sm:$0xff]
          %v2964 = vld [vmem:[#allocation4 + $0xc0] sm:$0xff]
          %v2965 = vld [vmem:[#allocation4 + $0xc8] sm:$0xff]
          %v2966 = vld [vmem:[#allocation4 + $0xd0] sm:$0xff]
          %v2967 = vld [vmem:[#allocation4 + $0xd8] sm:$0xff]
          %v2968 = vld [vmem:[#allocation4 + $0xe0] sm:$0xff]
          %v2969 = vld [vmem:[#allocation4 + $0xe8] sm:$0xff]
          %v2970 = vld [vmem:[#allocation4 + $0xf0] sm:$0xff]
          %v2971 = vld [vmem:[#allocation4 + $0xf8] sm:$0xff]
          %2973 = vset.pattern.permute.xlu0 0
          %2974 = vperm.xlu0 %2973, %v2525
          %v2975 = vpop.permute.xlu0 %2974
          %2978 = vset.pattern.permute.xlu0 0
          %2979 = vperm.xlu0 %2978, %v2527
          %v2980 = vpop.permute.xlu0 %2979
          %2983 = vset.pattern.permute.xlu0 0
          %2984 = vperm.xlu0 %2983, %v2529
          %v2985 = vpop.permute.xlu0 %2984
          %2988 = vset.pattern.permute.xlu0 0
          %2989 = vperm.xlu0 %2988, %v2531
          %v2990 = vpop.permute.xlu0 %2989
          %2993 = vset.pattern.permute.xlu0 0
          %2994 = vperm.xlu0 %2993, %v2533
          %v2995 = vpop.permute.xlu0 %2994
          %2998 = vset.pattern.permute.xlu0 0
          %2999 = vperm.xlu0 %2998, %v2535
          %v3000 = vpop.permute.xlu0 %2999
          %3003 = vset.pattern.permute.xlu0 0
          %3004 = vperm.xlu0 %3003, %v2537
          %v3005 = vpop.permute.xlu0 %3004
          %3008 = vset.pattern.permute.xlu0 0
          %3009 = vperm.xlu0 %3008, %v2539
          %v3010 = vpop.permute.xlu0 %3009
          %3013 = vset.pattern.permute.xlu0 0
          %3014 = vperm.xlu0 %3013, %v2541
          %v3015 = vpop.permute.xlu0 %3014
          %3018 = vset.pattern.permute.xlu0 0
          %3019 = vperm.xlu0 %3018, %v2543
          %v3020 = vpop.permute.xlu0 %3019
          %3023 = vset.pattern.permute.xlu0 0
          %3024 = vperm.xlu0 %3023, %v2545
          %v3025 = vpop.permute.xlu0 %3024
          %3028 = vset.pattern.permute.xlu0 0
          %3029 = vperm.xlu0 %3028, %v2547
          %v3030 = vpop.permute.xlu0 %3029
          %3033 = vset.pattern.permute.xlu0 0
          %3034 = vperm.xlu0 %3033, %v2549
          %v3035 = vpop.permute.xlu0 %3034
          %3038 = vset.pattern.permute.xlu0 0
          %3039 = vperm.xlu0 %3038, %v2551
          %v3040 = vpop.permute.xlu0 %3039
          %3043 = vset.pattern.permute.xlu0 0
          %3044 = vperm.xlu0 %3043, %v2553
          %v3045 = vpop.permute.xlu0 %3044
          %3048 = vset.pattern.permute.xlu0 0
          %3049 = vperm.xlu0 %3048, %v2555
          %v3050 = vpop.permute.xlu0 %3049
          %3053 = vset.pattern.permute.xlu0 0
          %3054 = vperm.xlu0 %3053, %v2557
          %v3055 = vpop.permute.xlu0 %3054
          %3058 = vset.pattern.permute.xlu0 0
          %3059 = vperm.xlu0 %3058, %v2559
          %v3060 = vpop.permute.xlu0 %3059
          %3063 = vset.pattern.permute.xlu0 0
          %3064 = vperm.xlu0 %3063, %v2561
          %v3065 = vpop.permute.xlu0 %3064
          %3068 = vset.pattern.permute.xlu0 0
          %3069 = vperm.xlu0 %3068, %v2563
          %v3070 = vpop.permute.xlu0 %3069
          %3073 = vset.pattern.permute.xlu0 0
          %3074 = vperm.xlu0 %3073, %v2565
          %v3075 = vpop.permute.xlu0 %3074
          %3078 = vset.pattern.permute.xlu0 0
          %3079 = vperm.xlu0 %3078, %v2567
          %v3080 = vpop.permute.xlu0 %3079
          %3083 = vset.pattern.permute.xlu0 0
          %3084 = vperm.xlu0 %3083, %v2569
          %v3085 = vpop.permute.xlu0 %3084
          %3088 = vset.pattern.permute.xlu0 0
          %3089 = vperm.xlu0 %3088, %v2571
          %v3090 = vpop.permute.xlu0 %3089
          %3093 = vset.pattern.permute.xlu0 0
          %3094 = vperm.xlu0 %3093, %v2573
          %v3095 = vpop.permute.xlu0 %3094
          %3098 = vset.pattern.permute.xlu0 0
          %3099 = vperm.xlu0 %3098, %v2575
          %v3100 = vpop.permute.xlu0 %3099
          %3103 = vset.pattern.permute.xlu0 0
          %3104 = vperm.xlu0 %3103, %v2577
          %v3105 = vpop.permute.xlu0 %3104
          %3108 = vset.pattern.permute.xlu0 0
          %3109 = vperm.xlu0 %3108, %v2579
          %v3110 = vpop.permute.xlu0 %3109
          %3113 = vset.pattern.permute.xlu0 0
          %3114 = vperm.xlu0 %3113, %v2581
          %v3115 = vpop.permute.xlu0 %3114
          %3118 = vset.pattern.permute.xlu0 0
          %3119 = vperm.xlu0 %3118, %v2583
          %v3120 = vpop.permute.xlu0 %3119
          %3123 = vset.pattern.permute.xlu0 0
          %3124 = vperm.xlu0 %3123, %v2585
          %v3125 = vpop.permute.xlu0 %3124
          %3128 = vset.pattern.permute.xlu0 0
          %3129 = vperm.xlu0 %3128, %v2587
          %v3130 = vpop.permute.xlu0 %3129
          %v3132 = vmul.f32 %v2975, %v2940
          %v3133 = vmul.f32 %v2980, %v2941
          %v3134 = vmul.f32 %v2985, %v2942
          %v3135 = vmul.f32 %v2990, %v2943
          %v3136 = vmul.f32 %v2995, %v2944
          %v3137 = vmul.f32 %v3000, %v2945
          %v3138 = vmul.f32 %v3005, %v2946
          %v3139 = vmul.f32 %v3010, %v2947
          %v3140 = vmul.f32 %v3015, %v2948
          %v3141 = vmul.f32 %v3020, %v2949
          %v3142 = vmul.f32 %v3025, %v2950
          %v3143 = vmul.f32 %v3030, %v2951
          %v3144 = vmul.f32 %v3035, %v2952
          %v3145 = vmul.f32 %v3040, %v2953
          %v3146 = vmul.f32 %v3045, %v2954
          %v3147 = vmul.f32 %v3050, %v2955
          %v3148 = vmul.f32 %v3055, %v2956
          %v3149 = vmul.f32 %v3060, %v2957
          %v3150 = vmul.f32 %v3065, %v2958
          %v3151 = vmul.f32 %v3070, %v2959
          %v3152 = vmul.f32 %v3075, %v2960
          %v3153 = vmul.f32 %v3080, %v2961
          %v3154 = vmul.f32 %v3085, %v2962
          %v3155 = vmul.f32 %v3090, %v2963
          %v3156 = vmul.f32 %v3095, %v2964
          %v3157 = vmul.f32 %v3100, %v2965
          %v3158 = vmul.f32 %v3105, %v2966
          %v3159 = vmul.f32 %v3110, %v2967
          %v3160 = vmul.f32 %v3115, %v2968
          %v3161 = vmul.f32 %v3120, %v2969
          %v3162 = vmul.f32 %v3125, %v2970
          %v3163 = vmul.f32 %v3130, %v2971
          %v3196 = vunpack.c.l.b16 %v580
          %v3197 = vunpack.c.l.b16 %v581
          %v3198 = vunpack.c.l.b16 %v582
          %v3199 = vunpack.c.l.b16 %v583
          %v3200 = vunpack.c.l.b16 %v584
          %v3201 = vunpack.c.l.b16 %v585
          %v3202 = vunpack.c.l.b16 %v586
          %v3203 = vunpack.c.l.b16 %v587
          %v3204 = vunpack.c.l.b16 %v588
          %v3205 = vunpack.c.l.b16 %v589
          %v3206 = vunpack.c.l.b16 %v590
          %v3207 = vunpack.c.l.b16 %v591
          %v3208 = vunpack.c.l.b16 %v592
          %v3209 = vunpack.c.l.b16 %v593
          %v3210 = vunpack.c.l.b16 %v594
          %v3211 = vunpack.c.l.b16 %v595
          %v3212 = vunpack.c.l.b16 %v596
          %v3213 = vunpack.c.l.b16 %v597
          %v3214 = vunpack.c.l.b16 %v598
          %v3215 = vunpack.c.l.b16 %v599
          %v3216 = vunpack.c.l.b16 %v600
          %v3217 = vunpack.c.l.b16 %v601
          %v3218 = vunpack.c.l.b16 %v602
          %v3219 = vunpack.c.l.b16 %v603
          %v3220 = vunpack.c.l.b16 %v604
          %v3221 = vunpack.c.l.b16 %v605
          %v3222 = vunpack.c.l.b16 %v606
          %v3223 = vunpack.c.l.b16 %v607
          %v3224 = vunpack.c.l.b16 %v608
          %v3225 = vunpack.c.l.b16 %v609
          %v3226 = vunpack.c.l.b16 %v610
          %v3227 = vunpack.c.l.b16 %v611
          %v3228 = vpack.c.b16 %v3197, %v3196
          %v3229 = vpack.c.b16 %v3199, %v3198
          %v3230 = vpack.c.b16 %v3201, %v3200
          %v3231 = vpack.c.b16 %v3203, %v3202
          %v3232 = vpack.c.b16 %v3205, %v3204
          %v3233 = vpack.c.b16 %v3207, %v3206
          %v3234 = vpack.c.b16 %v3209, %v3208
          %v3235 = vpack.c.b16 %v3211, %v3210
          %v3236 = vpack.c.b16 %v3213, %v3212
          %v3237 = vpack.c.b16 %v3215, %v3214
          %v3238 = vpack.c.b16 %v3217, %v3216
          %v3239 = vpack.c.b16 %v3219, %v3218
          %v3240 = vpack.c.b16 %v3221, %v3220
          %v3241 = vpack.c.b16 %v3223, %v3222
          %v3242 = vpack.c.b16 %v3225, %v3224
          %v3243 = vpack.c.b16 %v3227, %v3226
          %3260 = vmatprep.subr.bf16.mxu0 0
          %3261 = vmatpush1.bf16.msra.mxu0 %v3235
          %3262 = vmatprep.subr.bf16.mxu0 0
          %3263 = vmatpush1.bf16.msra.mxu0 %v3234
          %3264 = vmatprep.subr.bf16.mxu0 0
          %3265 = vmatpush1.bf16.msra.mxu0 %v3233
          %3266 = vmatprep.subr.bf16.mxu0 0
          %3267 = vmatpush1.bf16.msra.mxu0 %v3232
          %3268 = vmatprep.subr.bf16.mxu0 0
          %3269 = vmatpush1.bf16.msra.mxu0 %v3231
          %3270 = vmatprep.subr.bf16.mxu0 0
          %3271 = vmatpush1.bf16.msra.mxu0 %v3230
          %3272 = vmatprep.subr.bf16.mxu0 0
          %3273 = vmatpush1.bf16.msra.mxu0 %v3229
          %3274 = vmatprep.subr.bf16.mxu0 0
          %3275 = vmatpush1.bf16.msra.mxu0 %v3228
          %3276 = vmatprep.subr.bf16.mxu0 0
          %3277 = vmatpush2.bf16.msra.mxu0 %v3243
          %3278 = vmatprep.subr.bf16.mxu0 0
          %3279 = vmatpush2.bf16.msra.mxu0 %v3242
          %3280 = vmatprep.subr.bf16.mxu0 0
          %3281 = vmatpush2.bf16.msra.mxu0 %v3241
          %3282 = vmatprep.subr.bf16.mxu0 0
          %3283 = vmatpush2.bf16.msra.mxu0 %v3240
          %3284 = vmatprep.subr.bf16.mxu0 0
          %3285 = vmatpush2.bf16.msra.mxu0 %v3239
          %3286 = vmatprep.subr.bf16.mxu0 0
          %3287 = vmatpush2.bf16.msra.mxu0 %v3238
          %3288 = vmatprep.subr.bf16.mxu0 0
          %3289 = vmatpush2.bf16.msra.mxu0 %v3237
          %3290 = vmatprep.subr.bf16.mxu0 0
          %3291 = vmatpush2.bf16.msra.mxu0 %v3236
          %3292 = vmatprep.mubr.bf16.mxu0 %v2849
          %3293 = vmatmul.mubr.bf16.gmra.mxu0 %v2846
          %v3294 = vpop.f32.mrf.mxu0
          %v3295 = vadd.f32 0.0, %v3294
          %v3296 = vpop.f32.mrf.mxu0
          %v3297 = vpop.f32.mrf.mxu0
          %v3298 = vadd.f32 0.0, %v3297
          %v3299 = vpop.f32.mrf.mxu0
          %3300 = vmatprep.mubr.bf16.mxu0 %v2855
          %3301 = vmatmul.mubr.bf16.gmra.mxu0 %v2852
          %v3302 = vpop.f32.mrf.mxu0
          %v3303 = vadd.f32 0.0, %v3302
          %v3304 = vpop.f32.mrf.mxu0
          %v3305 = vpop.f32.mrf.mxu0
          %v3306 = vadd.f32 0.0, %v3305
          %v3307 = vpop.f32.mrf.mxu0
          %3308 = vmatprep.mubr.bf16.mxu0 %v2861
          %3309 = vmatmul.mubr.bf16.gmra.mxu0 %v2858
          %v3310 = vpop.f32.mrf.mxu0
          %v3311 = vadd.f32 0.0, %v3310
          %v3312 = vpop.f32.mrf.mxu0
          %v3313 = vpop.f32.mrf.mxu0
          %v3314 = vadd.f32 0.0, %v3313
          %v3315 = vpop.f32.mrf.mxu0
          %3316 = vmatprep.mubr.bf16.mxu0 %v2867
          %3317 = vmatmul.mubr.bf16.gmra.mxu0 %v2864
          %v3318 = vpop.f32.mrf.mxu0
          %v3319 = vadd.f32 0.0, %v3318
          %v3320 = vpop.f32.mrf.mxu0
          %v3321 = vpop.f32.mrf.mxu0
          %v3322 = vadd.f32 0.0, %v3321
          %v3323 = vpop.f32.mrf.mxu0
          %3324 = vmatprep.mubr.bf16.mxu0 %v2873
          %3325 = vmatmul.mubr.bf16.gmra.mxu0 %v2870
          %v3326 = vpop.f32.mrf.mxu0
          %v3327 = vadd.f32 0.0, %v3326
          %v3328 = vpop.f32.mrf.mxu0
          %v3329 = vpop.f32.mrf.mxu0
          %v3330 = vadd.f32 0.0, %v3329
          %v3331 = vpop.f32.mrf.mxu0
          %3332 = vmatprep.mubr.bf16.mxu0 %v2879
          %3333 = vmatmul.mubr.bf16.gmra.mxu0 %v2876
          %v3334 = vpop.f32.mrf.mxu0
          %v3335 = vadd.f32 0.0, %v3334
          %v3336 = vpop.f32.mrf.mxu0
          %v3337 = vpop.f32.mrf.mxu0
          %v3338 = vadd.f32 0.0, %v3337
          %v3339 = vpop.f32.mrf.mxu0
          %3340 = vmatprep.mubr.bf16.mxu0 %v2885
          %3341 = vmatmul.mubr.bf16.gmra.mxu0 %v2882
          %v3342 = vpop.f32.mrf.mxu0
          %v3343 = vadd.f32 0.0, %v3342
          %v3344 = vpop.f32.mrf.mxu0
          %v3345 = vpop.f32.mrf.mxu0
          %v3346 = vadd.f32 0.0, %v3345
          %v3347 = vpop.f32.mrf.mxu0
          %3348 = vmatprep.mubr.bf16.mxu0 %v2891
          %3349 = vmatmul.mubr.bf16.gmra.mxu0 %v2888
          %v3350 = vpop.f32.mrf.mxu0
          %v3351 = vadd.f32 0.0, %v3350
          %v3352 = vpop.f32.mrf.mxu0
          %v3353 = vpop.f32.mrf.mxu0
          %v3354 = vadd.f32 0.0, %v3353
          %v3355 = vpop.f32.mrf.mxu0
          %3356 = vmatprep.mubr.bf16.mxu0 %v2897
          %3357 = vmatmul.mubr.bf16.gmra.mxu0 %v2894
          %v3358 = vpop.f32.mrf.mxu0
          %v3359 = vadd.f32 0.0, %v3358
          %v3360 = vpop.f32.mrf.mxu0
          %v3361 = vpop.f32.mrf.mxu0
          %v3362 = vadd.f32 0.0, %v3361
          %v3363 = vpop.f32.mrf.mxu0
          %3364 = vmatprep.mubr.bf16.mxu0 %v2903
          %3365 = vmatmul.mubr.bf16.gmra.mxu0 %v2900
          %v3366 = vpop.f32.mrf.mxu0
          %v3367 = vadd.f32 0.0, %v3366
          %v3368 = vpop.f32.mrf.mxu0
          %v3369 = vpop.f32.mrf.mxu0
          %v3370 = vadd.f32 0.0, %v3369
          %v3371 = vpop.f32.mrf.mxu0
          %3372 = vmatprep.mubr.bf16.mxu0 %v2909
          %3373 = vmatmul.mubr.bf16.gmra.mxu0 %v2906
          %v3374 = vpop.f32.mrf.mxu0
          %v3375 = vadd.f32 0.0, %v3374
          %v3376 = vpop.f32.mrf.mxu0
          %v3377 = vpop.f32.mrf.mxu0
          %v3378 = vadd.f32 0.0, %v3377
          %v3379 = vpop.f32.mrf.mxu0
          %3380 = vmatprep.mubr.bf16.mxu0 %v2915
          %3381 = vmatmul.mubr.bf16.gmra.mxu0 %v2912
          %v3382 = vpop.f32.mrf.mxu0
          %v3383 = vadd.f32 0.0, %v3382
          %v3384 = vpop.f32.mrf.mxu0
          %v3385 = vpop.f32.mrf.mxu0
          %v3386 = vadd.f32 0.0, %v3385
          %v3387 = vpop.f32.mrf.mxu0
          %3388 = vmatprep.mubr.bf16.mxu0 %v2921
          %3389 = vmatmul.mubr.bf16.gmra.mxu0 %v2918
          %v3390 = vpop.f32.mrf.mxu0
          %v3391 = vadd.f32 0.0, %v3390
          %v3392 = vpop.f32.mrf.mxu0
          %v3393 = vpop.f32.mrf.mxu0
          %v3394 = vadd.f32 0.0, %v3393
          %v3395 = vpop.f32.mrf.mxu0
          %3396 = vmatprep.mubr.bf16.mxu0 %v2927
          %3397 = vmatmul.mubr.bf16.gmra.mxu0 %v2924
          %v3398 = vpop.f32.mrf.mxu0
          %v3399 = vadd.f32 0.0, %v3398
          %v3400 = vpop.f32.mrf.mxu0
          %v3401 = vpop.f32.mrf.mxu0
          %v3402 = vadd.f32 0.0, %v3401
          %v3403 = vpop.f32.mrf.mxu0
          %3404 = vmatprep.mubr.bf16.mxu0 %v2933
          %3405 = vmatmul.mubr.bf16.gmra.mxu0 %v2930
          %v3406 = vpop.f32.mrf.mxu0
          %v3407 = vadd.f32 0.0, %v3406
          %v3408 = vpop.f32.mrf.mxu0
          %v3409 = vpop.f32.mrf.mxu0
          %v3410 = vadd.f32 0.0, %v3409
          %v3411 = vpop.f32.mrf.mxu0
          %3412 = vmatprep.mubr.bf16.mxu0 %v2939
          %3413 = vmatmul.mubr.bf16.gmra.mxu0 %v2936
          %v3414 = vpop.f32.mrf.mxu0
          %v3415 = vadd.f32 0.0, %v3414
          %v3416 = vpop.f32.mrf.mxu0
          %v3417 = vpop.f32.mrf.mxu0
          %v3418 = vadd.f32 0.0, %v3417
          %v3419 = vpop.f32.mrf.mxu0
          %3420 = vdwg.mxu0
          %v3421 = vadd.f32 %v3132, %v3295
          %v3422 = vadd.f32 %v3133, %v3298
          %v3423 = vadd.f32 %v3134, %v3303
          %v3424 = vadd.f32 %v3135, %v3306
          %v3425 = vadd.f32 %v3136, %v3311
          %v3426 = vadd.f32 %v3137, %v3314
          %v3427 = vadd.f32 %v3138, %v3319
          %v3428 = vadd.f32 %v3139, %v3322
          %v3429 = vadd.f32 %v3140, %v3327
          %v3430 = vadd.f32 %v3141, %v3330
          %v3431 = vadd.f32 %v3142, %v3335
          %v3432 = vadd.f32 %v3143, %v3338
          %v3433 = vadd.f32 %v3144, %v3343
          %v3434 = vadd.f32 %v3145, %v3346
          %v3435 = vadd.f32 %v3146, %v3351
          %v3436 = vadd.f32 %v3147, %v3354
          %v3437 = vadd.f32 %v3148, %v3359
          %v3438 = vadd.f32 %v3149, %v3362
          %v3439 = vadd.f32 %v3150, %v3367
          %v3440 = vadd.f32 %v3151, %v3370
          %v3441 = vadd.f32 %v3152, %v3375
          %v3442 = vadd.f32 %v3153, %v3378
          %v3443 = vadd.f32 %v3154, %v3383
          %v3444 = vadd.f32 %v3155, %v3386
          %v3445 = vadd.f32 %v3156, %v3391
          %v3446 = vadd.f32 %v3157, %v3394
          %v3447 = vadd.f32 %v3158, %v3399
          %v3448 = vadd.f32 %v3159, %v3402
          %v3449 = vadd.f32 %v3160, %v3407
          %v3450 = vadd.f32 %v3161, %v3410
          %v3451 = vadd.f32 %v3162, %v3415
          %v3452 = vadd.f32 %v3163, %v3418
          %3453 = vst [vmem:[#allocation4] sm:$0xff] %v3421
          %3454 = vst [vmem:[#allocation4 + $0x8] sm:$0xff] %v3422
          %3455 = vst [vmem:[#allocation4 + $0x10] sm:$0xff] %v3423
          %3456 = vst [vmem:[#allocation4 + $0x18] sm:$0xff] %v3424
          %3457 = vst [vmem:[#allocation4 + $0x20] sm:$0xff] %v3425
          %3458 = vst [vmem:[#allocation4 + $0x28] sm:$0xff] %v3426
          %3459 = vst [vmem:[#allocation4 + $0x30] sm:$0xff] %v3427
          %3460 = vst [vmem:[#allocation4 + $0x38] sm:$0xff] %v3428
          %3461 = vst [vmem:[#allocation4 + $0x40] sm:$0xff] %v3429
          %3462 = vst [vmem:[#allocation4 + $0x48] sm:$0xff] %v3430
          %3463 = vst [vmem:[#allocation4 + $0x50] sm:$0xff] %v3431
          %3464 = vst [vmem:[#allocation4 + $0x58] sm:$0xff] %v3432
          %3465 = vst [vmem:[#allocation4 + $0x60] sm:$0xff] %v3433
          %3466 = vst [vmem:[#allocation4 + $0x68] sm:$0xff] %v3434
          %3467 = vst [vmem:[#allocation4 + $0x70] sm:$0xff] %v3435
          %3468 = vst [vmem:[#allocation4 + $0x78] sm:$0xff] %v3436
          %3469 = vst [vmem:[#allocation4 + $0x80] sm:$0xff] %v3437
          %3470 = vst [vmem:[#allocation4 + $0x88] sm:$0xff] %v3438
          %3471 = vst [vmem:[#allocation4 + $0x90] sm:$0xff] %v3439
          %3472 = vst [vmem:[#allocation4 + $0x98] sm:$0xff] %v3440
          %3473 = vst [vmem:[#allocation4 + $0xa0] sm:$0xff] %v3441
          %3474 = vst [vmem:[#allocation4 + $0xa8] sm:$0xff] %v3442
          %3475 = vst [vmem:[#allocation4 + $0xb0] sm:$0xff] %v3443
          %3476 = vst [vmem:[#allocation4 + $0xb8] sm:$0xff] %v3444
          %3477 = vst [vmem:[#allocation4 + $0xc0] sm:$0xff] %v3445
          %3478 = vst [vmem:[#allocation4 + $0xc8] sm:$0xff] %v3446
          %3479 = vst [vmem:[#allocation4 + $0xd0] sm:$0xff] %v3447
          %3480 = vst [vmem:[#allocation4 + $0xd8] sm:$0xff] %v3448
          %3481 = vst [vmem:[#allocation4 + $0xe0] sm:$0xff] %v3449
          %3482 = vst [vmem:[#allocation4 + $0xe8] sm:$0xff] %v3450
          %3483 = vst [vmem:[#allocation4 + $0xf0] sm:$0xff] %v3451
          %3484 = vst [vmem:[#allocation4 + $0xf8] sm:$0xff] %v3452
          %vm3485 = vcmask 7168
          %3486 = vst.msk [vmem:[#allocation3] sm:$0xff] %vm3485, %v2460
          %3487 = vst.msk [vmem:[#allocation3 + $0x8] sm:$0xff] %vm3485, %v2461
          %3488 = vst.msk [vmem:[#allocation3 + $0x10] sm:$0xff] %vm3485, %v2462
          %3489 = vst.msk [vmem:[#allocation3 + $0x18] sm:$0xff] %vm3485, %v2463
          %3490 = vst.msk [vmem:[#allocation3 + $0x20] sm:$0xff] %vm3485, %v2464
          %3491 = vst.msk [vmem:[#allocation3 + $0x28] sm:$0xff] %vm3485, %v2465
          %3492 = vst.msk [vmem:[#allocation3 + $0x30] sm:$0xff] %vm3485, %v2466
          %3493 = vst.msk [vmem:[#allocation3 + $0x38] sm:$0xff] %vm3485, %v2467
          %3494 = vst.msk [vmem:[#allocation3 + $0x40] sm:$0xff] %vm3485, %v2468
          %3495 = vst.msk [vmem:[#allocation3 + $0x48] sm:$0xff] %vm3485, %v2469
          %3496 = vst.msk [vmem:[#allocation3 + $0x50] sm:$0xff] %vm3485, %v2470
          %3497 = vst.msk [vmem:[#allocation3 + $0x58] sm:$0xff] %vm3485, %v2471
          %3498 = vst.msk [vmem:[#allocation3 + $0x60] sm:$0xff] %vm3485, %v2472
          %3499 = vst.msk [vmem:[#allocation3 + $0x68] sm:$0xff] %vm3485, %v2473
          %3500 = vst.msk [vmem:[#allocation3 + $0x70] sm:$0xff] %vm3485, %v2474
          %3501 = vst.msk [vmem:[#allocation3 + $0x78] sm:$0xff] %vm3485, %v2475
          %3502 = vst.msk [vmem:[#allocation3 + $0x80] sm:$0xff] %vm3485, %v2476
          %3503 = vst.msk [vmem:[#allocation3 + $0x88] sm:$0xff] %vm3485, %v2477
          %3504 = vst.msk [vmem:[#allocation3 + $0x90] sm:$0xff] %vm3485, %v2478
          %3505 = vst.msk [vmem:[#allocation3 + $0x98] sm:$0xff] %vm3485, %v2479
          %3506 = vst.msk [vmem:[#allocation3 + $0xa0] sm:$0xff] %vm3485, %v2480
          %3507 = vst.msk [vmem:[#allocation3 + $0xa8] sm:$0xff] %vm3485, %v2481
          %3508 = vst.msk [vmem:[#allocation3 + $0xb0] sm:$0xff] %vm3485, %v2482
          %3509 = vst.msk [vmem:[#allocation3 + $0xb8] sm:$0xff] %vm3485, %v2483
          %3510 = vst.msk [vmem:[#allocation3 + $0xc0] sm:$0xff] %vm3485, %v2484
          %3511 = vst.msk [vmem:[#allocation3 + $0xc8] sm:$0xff] %vm3485, %v2485
          %3512 = vst.msk [vmem:[#allocation3 + $0xd0] sm:$0xff] %vm3485, %v2486
          %3513 = vst.msk [vmem:[#allocation3 + $0xd8] sm:$0xff] %vm3485, %v2487
          %3514 = vst.msk [vmem:[#allocation3 + $0xe0] sm:$0xff] %vm3485, %v2488
          %3515 = vst.msk [vmem:[#allocation3 + $0xe8] sm:$0xff] %vm3485, %v2489
          %3516 = vst.msk [vmem:[#allocation3 + $0xf0] sm:$0xff] %vm3485, %v2490
          %3517 = vst.msk [vmem:[#allocation3 + $0xf8] sm:$0xff] %vm3485, %v2491
          %v3518 = vld [vmem:[#allocation4] sm:$0xff]
          %v3519 = vld [vmem:[#allocation4 + $0x8] sm:$0xff]
          %v3520 = vld [vmem:[#allocation4 + $0x10] sm:$0xff]
          %v3521 = vld [vmem:[#allocation4 + $0x18] sm:$0xff]
          %v3522 = vld [vmem:[#allocation4 + $0x20] sm:$0xff]
          %v3523 = vld [vmem:[#allocation4 + $0x28] sm:$0xff]
          %v3524 = vld [vmem:[#allocation4 + $0x30] sm:$0xff]
          %v3525 = vld [vmem:[#allocation4 + $0x38] sm:$0xff]
          %v3526 = vld [vmem:[#allocation4 + $0x40] sm:$0xff]
          %v3527 = vld [vmem:[#allocation4 + $0x48] sm:$0xff]
          %v3528 = vld [vmem:[#allocation4 + $0x50] sm:$0xff]
          %v3529 = vld [vmem:[#allocation4 + $0x58] sm:$0xff]
          %v3530 = vld [vmem:[#allocation4 + $0x60] sm:$0xff]
          %v3531 = vld [vmem:[#allocation4 + $0x68] sm:$0xff]
          %v3532 = vld [vmem:[#allocation4 + $0x70] sm:$0xff]
          %v3533 = vld [vmem:[#allocation4 + $0x78] sm:$0xff]
          %v3534 = vld [vmem:[#allocation4 + $0x80] sm:$0xff]
          %v3535 = vld [vmem:[#allocation4 + $0x88] sm:$0xff]
          %v3536 = vld [vmem:[#allocation4 + $0x90] sm:$0xff]
          %v3537 = vld [vmem:[#allocation4 + $0x98] sm:$0xff]
          %v3538 = vld [vmem:[#allocation4 + $0xa0] sm:$0xff]
          %v3539 = vld [vmem:[#allocation4 + $0xa8] sm:$0xff]
          %v3540 = vld [vmem:[#allocation4 + $0xb0] sm:$0xff]
          %v3541 = vld [vmem:[#allocation4 + $0xb8] sm:$0xff]
          %v3542 = vld [vmem:[#allocation4 + $0xc0] sm:$0xff]
          %v3543 = vld [vmem:[#allocation4 + $0xc8] sm:$0xff]
          %v3544 = vld [vmem:[#allocation4 + $0xd0] sm:$0xff]
          %v3545 = vld [vmem:[#allocation4 + $0xd8] sm:$0xff]
          %v3546 = vld [vmem:[#allocation4 + $0xe0] sm:$0xff]
          %v3547 = vld [vmem:[#allocation4 + $0xe8] sm:$0xff]
          %v3548 = vld [vmem:[#allocation4 + $0xf0] sm:$0xff]
          %v3549 = vld [vmem:[#allocation4 + $0xf8] sm:$0xff]
          %v3550 = vrcp.pop %v3518
          %v3551 = vrcp.pop %v3519
          %v3552 = vrcp.pop %v3520
          %v3553 = vrcp.pop %v3521
          %v3554 = vrcp.pop %v3522
          %v3555 = vrcp.pop %v3523
          %v3556 = vrcp.pop %v3524
          %v3557 = vrcp.pop %v3525
          %v3558 = vrcp.pop %v3526
          %v3559 = vrcp.pop %v3527
          %v3560 = vrcp.pop %v3528
          %v3561 = vrcp.pop %v3529
          %v3562 = vrcp.pop %v3530
          %v3563 = vrcp.pop %v3531
          %v3564 = vrcp.pop %v3532
          %v3565 = vrcp.pop %v3533
          %v3566 = vrcp.pop %v3534
          %v3567 = vrcp.pop %v3535
          %v3568 = vrcp.pop %v3536
          %v3569 = vrcp.pop %v3537
          %v3570 = vrcp.pop %v3538
          %v3571 = vrcp.pop %v3539
          %v3572 = vrcp.pop %v3540
          %v3573 = vrcp.pop %v3541
          %v3574 = vrcp.pop %v3542
          %v3575 = vrcp.pop %v3543
          %v3576 = vrcp.pop %v3544
          %v3577 = vrcp.pop %v3545
          %v3578 = vrcp.pop %v3546
          %v3579 = vrcp.pop %v3547
          %v3580 = vrcp.pop %v3548
          %v3581 = vrcp.pop %v3549
          %3614 = vrot.lane.b32.xlu0 %v3550, 64
          %v3615 = vpop.permute.xlu0 %3614
          %3616 = vrot.lane.b32.xlu0 %v3551, 64
          %v3617 = vpop.permute.xlu0 %3616
          %3618 = vrot.lane.b32.xlu0 %v3552, 64
          %v3619 = vpop.permute.xlu0 %3618
          %3620 = vrot.lane.b32.xlu0 %v3553, 64
          %v3621 = vpop.permute.xlu0 %3620
          %3622 = vrot.lane.b32.xlu0 %v3554, 64
          %v3623 = vpop.permute.xlu0 %3622
          %3624 = vrot.lane.b32.xlu0 %v3555, 64
          %v3625 = vpop.permute.xlu0 %3624
          %3626 = vrot.lane.b32.xlu0 %v3556, 64
          %v3627 = vpop.permute.xlu0 %3626
          %3628 = vrot.lane.b32.xlu0 %v3557, 64
          %v3629 = vpop.permute.xlu0 %3628
          %3630 = vrot.lane.b32.xlu0 %v3558, 64
          %v3631 = vpop.permute.xlu0 %3630
          %3632 = vrot.lane.b32.xlu0 %v3559, 64
          %v3633 = vpop.permute.xlu0 %3632
          %3634 = vrot.lane.b32.xlu0 %v3560, 64
          %v3635 = vpop.permute.xlu0 %3634
          %3636 = vrot.lane.b32.xlu0 %v3561, 64
          %v3637 = vpop.permute.xlu0 %3636
          %3638 = vrot.lane.b32.xlu0 %v3562, 64
          %v3639 = vpop.permute.xlu0 %3638
          %3640 = vrot.lane.b32.xlu0 %v3563, 64
          %v3641 = vpop.permute.xlu0 %3640
          %3642 = vrot.lane.b32.xlu0 %v3564, 64
          %v3643 = vpop.permute.xlu0 %3642
          %3644 = vrot.lane.b32.xlu0 %v3565, 64
          %v3645 = vpop.permute.xlu0 %3644
          %3646 = vrot.lane.b32.xlu0 %v3566, 64
          %v3647 = vpop.permute.xlu0 %3646
          %3648 = vrot.lane.b32.xlu0 %v3567, 64
          %v3649 = vpop.permute.xlu0 %3648
          %3650 = vrot.lane.b32.xlu0 %v3568, 64
          %v3651 = vpop.permute.xlu0 %3650
          %3652 = vrot.lane.b32.xlu0 %v3569, 64
          %v3653 = vpop.permute.xlu0 %3652
          %3654 = vrot.lane.b32.xlu0 %v3570, 64
          %v3655 = vpop.permute.xlu0 %3654
          %3656 = vrot.lane.b32.xlu0 %v3571, 64
          %v3657 = vpop.permute.xlu0 %3656
          %3658 = vrot.lane.b32.xlu0 %v3572, 64
          %v3659 = vpop.permute.xlu0 %3658
          %3660 = vrot.lane.b32.xlu0 %v3573, 64
          %v3661 = vpop.permute.xlu0 %3660
          %3662 = vrot.lane.b32.xlu0 %v3574, 64
          %v3663 = vpop.permute.xlu0 %3662
          %3664 = vrot.lane.b32.xlu0 %v3575, 64
          %v3665 = vpop.permute.xlu0 %3664
          %3666 = vrot.lane.b32.xlu0 %v3576, 64
          %v3667 = vpop.permute.xlu0 %3666
          %3668 = vrot.lane.b32.xlu0 %v3577, 64
          %v3669 = vpop.permute.xlu0 %3668
          %3670 = vrot.lane.b32.xlu0 %v3578, 64
          %v3671 = vpop.permute.xlu0 %3670
          %3672 = vrot.lane.b32.xlu0 %v3579, 64
          %v3673 = vpop.permute.xlu0 %3672
          %3674 = vrot.lane.b32.xlu0 %v3580, 64
          %v3675 = vpop.permute.xlu0 %3674
          %3676 = vrot.lane.b32.xlu0 %v3581, 64
          %v3677 = vpop.permute.xlu0 %3676
          %v3710 = vmul.f32 %v3518, %v3615
          %v3711 = vmul.f32 %v3519, %v3617
          %v3712 = vmul.f32 %v3520, %v3619
          %v3713 = vmul.f32 %v3521, %v3621
          %v3714 = vmul.f32 %v3522, %v3623
          %v3715 = vmul.f32 %v3523, %v3625
          %v3716 = vmul.f32 %v3524, %v3627
          %v3717 = vmul.f32 %v3525, %v3629
          %v3718 = vmul.f32 %v3526, %v3631
          %v3719 = vmul.f32 %v3527, %v3633
          %v3720 = vmul.f32 %v3528, %v3635
          %v3721 = vmul.f32 %v3529, %v3637
          %v3722 = vmul.f32 %v3530, %v3639
          %v3723 = vmul.f32 %v3531, %v3641
          %v3724 = vmul.f32 %v3532, %v3643
          %v3725 = vmul.f32 %v3533, %v3645
          %v3726 = vmul.f32 %v3534, %v3647
          %v3727 = vmul.f32 %v3535, %v3649
          %v3728 = vmul.f32 %v3536, %v3651
          %v3729 = vmul.f32 %v3537, %v3653
          %v3730 = vmul.f32 %v3538, %v3655
          %v3731 = vmul.f32 %v3539, %v3657
          %v3732 = vmul.f32 %v3540, %v3659
          %v3733 = vmul.f32 %v3541, %v3661
          %v3734 = vmul.f32 %v3542, %v3663
          %v3735 = vmul.f32 %v3543, %v3665
          %v3736 = vmul.f32 %v3544, %v3667
          %v3737 = vmul.f32 %v3545, %v3669
          %v3738 = vmul.f32 %v3546, %v3671
          %v3739 = vmul.f32 %v3547, %v3673
          %v3740 = vmul.f32 %v3548, %v3675
          %v3741 = vmul.f32 %v3549, %v3677
          %v3742 = vpack.c.bf16 %v3711, %v3710
          %v3743 = vpack.c.bf16 %v3713, %v3712
          %v3744 = vpack.c.bf16 %v3715, %v3714
          %v3745 = vpack.c.bf16 %v3717, %v3716
          %v3746 = vpack.c.bf16 %v3719, %v3718
          %v3747 = vpack.c.bf16 %v3721, %v3720
          %v3748 = vpack.c.bf16 %v3723, %v3722
          %v3749 = vpack.c.bf16 %v3725, %v3724
          %v3750 = vpack.c.bf16 %v3727, %v3726
          %v3751 = vpack.c.bf16 %v3729, %v3728
          %v3752 = vpack.c.bf16 %v3731, %v3730
          %v3753 = vpack.c.bf16 %v3733, %v3732
          %v3754 = vpack.c.bf16 %v3735, %v3734
          %v3755 = vpack.c.bf16 %v3737, %v3736
          %v3756 = vpack.c.bf16 %v3739, %v3738
          %v3757 = vpack.c.bf16 %v3741, %v3740
          %v3774 = vunpack.c.l.b16 %v3742
          %v3775 = vunpack.c.h.b16 %v3742
          %v3776 = vunpack.c.l.b16 %v3743
          %v3777 = vunpack.c.h.b16 %v3743
          %v3778 = vunpack.c.l.b16 %v3744
          %v3779 = vunpack.c.h.b16 %v3744
          %v3780 = vunpack.c.l.b16 %v3745
          %v3781 = vunpack.c.h.b16 %v3745
          %v3782 = vunpack.c.l.b16 %v3746
          %v3783 = vunpack.c.h.b16 %v3746
          %v3784 = vunpack.c.l.b16 %v3747
          %v3785 = vunpack.c.h.b16 %v3747
          %v3786 = vunpack.c.l.b16 %v3748
          %v3787 = vunpack.c.h.b16 %v3748
          %v3788 = vunpack.c.l.b16 %v3749
          %v3789 = vunpack.c.h.b16 %v3749
          %v3790 = vunpack.c.l.b16 %v3750
          %v3791 = vunpack.c.h.b16 %v3750
          %v3792 = vunpack.c.l.b16 %v3751
          %v3793 = vunpack.c.h.b16 %v3751
          %v3794 = vunpack.c.l.b16 %v3752
          %v3795 = vunpack.c.h.b16 %v3752
          %v3796 = vunpack.c.l.b16 %v3753
          %v3797 = vunpack.c.h.b16 %v3753
          %v3798 = vunpack.c.l.b16 %v3754
          %v3799 = vunpack.c.h.b16 %v3754
          %v3800 = vunpack.c.l.b16 %v3755
          %v3801 = vunpack.c.h.b16 %v3755
          %v3802 = vunpack.c.l.b16 %v3756
          %v3803 = vunpack.c.h.b16 %v3756
          %v3804 = vunpack.c.l.b16 %v3757
          %v3805 = vunpack.c.h.b16 %v3757
          %v3806 = vpack.c.b16 %v3774, %v3774
          %v3807 = vpack.c.b16 %v3775, %v3775
          %v3808 = vpack.c.b16 %v3776, %v3776
          %v3809 = vpack.c.b16 %v3777, %v3777
          %v3810 = vpack.c.b16 %v3778, %v3778
          %v3811 = vpack.c.b16 %v3779, %v3779
          %v3812 = vpack.c.b16 %v3780, %v3780
          %v3813 = vpack.c.b16 %v3781, %v3781
          %v3814 = vpack.c.b16 %v3782, %v3782
          %v3815 = vpack.c.b16 %v3783, %v3783
          %v3816 = vpack.c.b16 %v3784, %v3784
          %v3817 = vpack.c.b16 %v3785, %v3785
          %v3818 = vpack.c.b16 %v3786, %v3786
          %v3819 = vpack.c.b16 %v3787, %v3787
          %v3820 = vpack.c.b16 %v3788, %v3788
          %v3821 = vpack.c.b16 %v3789, %v3789
          %v3822 = vpack.c.b16 %v3790, %v3790
          %v3823 = vpack.c.b16 %v3791, %v3791
          %v3824 = vpack.c.b16 %v3792, %v3792
          %v3825 = vpack.c.b16 %v3793, %v3793
          %v3826 = vpack.c.b16 %v3794, %v3794
          %v3827 = vpack.c.b16 %v3795, %v3795
          %v3828 = vpack.c.b16 %v3796, %v3796
          %v3829 = vpack.c.b16 %v3797, %v3797
          %v3830 = vpack.c.b16 %v3798, %v3798
          %v3831 = vpack.c.b16 %v3799, %v3799
          %v3832 = vpack.c.b16 %v3800, %v3800
          %v3833 = vpack.c.b16 %v3801, %v3801
          %v3834 = vpack.c.b16 %v3802, %v3802
          %v3835 = vpack.c.b16 %v3803, %v3803
          %v3836 = vpack.c.b16 %v3804, %v3804
          %v3837 = vpack.c.b16 %v3805, %v3805
          %vm3870 = vcmask 519168
          %3871 = vst.msk [vmem:[%s367] sm:$0xf] %vm3870, %v3806
          %3872 = vst.msk [vmem:[%s367 + $0x4] sm:$0xf] %vm3870, %v3807
          %3873 = vst.msk [vmem:[%s367 + $0x8] sm:$0xf] %vm3870, %v3808
          %3874 = vst.msk [vmem:[%s367 + $0xc] sm:$0xf] %vm3870, %v3809
          %3875 = vst.msk [vmem:[%s367 + $0x10] sm:$0xf] %vm3870, %v3810
          %3876 = vst.msk [vmem:[%s367 + $0x14] sm:$0xf] %vm3870, %v3811
          %3877 = vst.msk [vmem:[%s367 + $0x18] sm:$0xf] %vm3870, %v3812
          %3878 = vst.msk [vmem:[%s367 + $0x1c] sm:$0xf] %vm3870, %v3813
          %3879 = vst.msk [vmem:[%s367 + $0x20] sm:$0xf] %vm3870, %v3814
          %3880 = vst.msk [vmem:[%s367 + $0x24] sm:$0xf] %vm3870, %v3815
          %3881 = vst.msk [vmem:[%s367 + $0x28] sm:$0xf] %vm3870, %v3816
          %3882 = vst.msk [vmem:[%s367 + $0x2c] sm:$0xf] %vm3870, %v3817
          %3883 = vst.msk [vmem:[%s367 + $0x30] sm:$0xf] %vm3870, %v3818
          %3884 = vst.msk [vmem:[%s367 + $0x34] sm:$0xf] %vm3870, %v3819
          %3885 = vst.msk [vmem:[%s367 + $0x38] sm:$0xf] %vm3870, %v3820
          %3886 = vst.msk [vmem:[%s367 + $0x3c] sm:$0xf] %vm3870, %v3821
          %3887 = vst.msk [vmem:[%s367 + $0x40] sm:$0xf] %vm3870, %v3822
          %3888 = vst.msk [vmem:[%s367 + $0x44] sm:$0xf] %vm3870, %v3823
          %3889 = vst.msk [vmem:[%s367 + $0x48] sm:$0xf] %vm3870, %v3824
          %3890 = vst.msk [vmem:[%s367 + $0x4c] sm:$0xf] %vm3870, %v3825
          %3891 = vst.msk [vmem:[%s367 + $0x50] sm:$0xf] %vm3870, %v3826
          %3892 = vst.msk [vmem:[%s367 + $0x54] sm:$0xf] %vm3870, %v3827
          %3893 = vst.msk [vmem:[%s367 + $0x58] sm:$0xf] %vm3870, %v3828
          %3894 = vst.msk [vmem:[%s367 + $0x5c] sm:$0xf] %vm3870, %v3829
          %3895 = vst.msk [vmem:[%s367 + $0x60] sm:$0xf] %vm3870, %v3830
          %3896 = vst.msk [vmem:[%s367 + $0x64] sm:$0xf] %vm3870, %v3831
          %3897 = vst.msk [vmem:[%s367 + $0x68] sm:$0xf] %vm3870, %v3832
          %3898 = vst.msk [vmem:[%s367 + $0x6c] sm:$0xf] %vm3870, %v3833
          %3899 = vst.msk [vmem:[%s367 + $0x70] sm:$0xf] %vm3870, %v3834
          %3900 = vst.msk [vmem:[%s367 + $0x74] sm:$0xf] %vm3870, %v3835
          %3901 = vst.msk [vmem:[%s367 + $0x78] sm:$0xf] %vm3870, %v3836
          %3902 = vst.msk [vmem:[%s367 + $0x7c] sm:$0xf] %vm3870, %v3837
        $region82: #{a_call__.1} parent=65 // pred_fallthru
          _
        %s3903 = sld [smem:[#allocation6 + %s31]]
        %s3904 = smul.u32 32, %s3903
        %p3905 = scmp.lt.s32.totalorder %s30, 3
        %s3906 = scalar_select %p3905, %s30, 3
        %p3907 = scmp.lt.s32.totalorder %s3904, 63
        %s3908 = scalar_select %p3907, %s3904, 63
        %s3909 = smul.addr %s3906, 64
        %s3910 = sadd.s32 %s3908, %s3909
        %s3911 = smul.addr %s3910, 4
        %s3912 = scalar_lea.vmem %s5, %s3911
        // Predicated region
        $region83: #{a_call__.1} parent=65 // pred_check
          %p3913 = pneg %p150
        $region84: #{a_call__.1} parent=65 // pred_check_branch
          %3915 = sbr.rel (%p3913) target = $region86
        $region85: #{a_call__.1} parent=65 // pred_region
          %s3916 = sld [smem:[#allocation6 + %s31]]
          %s3917 = smul.u32 32, %s3916
        $region86: #{a_call__.1} parent=65 // pred_fallthru
          _
      $region66: #{a_call__.1} parent=5 // pred_fallthru
        _
      %p3918 = scmp.le.s32.totalorder 2, %s21
      // Predicated region
      $region87: #{a_call__.1} parent=5 // pred_check
        %p3919 = pneg %p3918
      $region88: #{a_call__.1} parent=5 // pred_check_branch
        %3921 = sbr.rel (%p3919) target = $region90
      $region89: #{a_call__.1} parent=5 // pred_region
        %s3922 = ssub.s32 %s21, 2
        // Predicated region
        $region91: #{a_call__.1} parent=89 // pred_check
          %p3923 = pneg %p156
        $region92: #{a_call__.1} parent=89 // pred_check_branch
          %3925 = sbr.rel (%p3923) target = $region94
        $region93: #{a_call__.1} parent=89 // pred_region
          %s3926 = sld [smem:[#allocation6 + %s33]]
          %s3927 = smul.u32 32, %s3926
          %p3928 = scmp.lt.s32.totalorder %s32, 3
          %s3929 = scalar_select %p3928, %s32, 3
          %p3930 = scmp.lt.s32.totalorder %s3927, 63
          %s3931 = scalar_select %p3930, %s3927, 63
          %s3932 = smul.addr %s3929, 64
          %s3933 = sadd.s32 %s3931, %s3932
          %s3934 = smul.addr %s3933, 4
          %s3935 = scalar_lea.vmem %s5, %s3934
        $region94: #{a_call__.1} parent=89 // pred_fallthru
          _
      $region90: #{a_call__.1} parent=5 // pred_fallthru
        _
    $region6: #{a_call__.1} parent=1 // loop_footer
      %s25 = sadd.s32 1, %s21
    $region7: #{a_call__.1} parent=1 // loop_footer_branch
      %20 = sbr.rel target = $region3
    $region8: #{a_call__.1} parent=1 // loop_exit
      _

</llo_original>
